<compile_context>
chip_gen: v5e
topology: v5e:2x2
jax: 0.10.0
libtpu: 0.0.40
codegen_flags: <defaults>
</compile_context>

<pallas_src>
import jax
import jax.numpy as jnp
from jax.experimental import pallas as pl
from jax.experimental.pallas import tpu as pltpu

D_IN = 4096        # feature_reduce input dim
D_EMB = 256        # embed dim
N_HEADS = 4
D_HEAD = D_EMB // N_HEADS   # 64
D_CAT = 2 * D_EMB  # 512  (attn output reshaped to (-1, 512))
D_CONV = 32


def _hdetector_kernel(fi_ref, fj_ref,
                      w_red_ref, b_red_ref,
                      w_qkv_ref, b_qkv_ref,
                      hmask_ref,
                      w0_ref, w1_ref, b_out_ref,
                      out_ref):
    f32 = jnp.float32

    # ---- feature_reduce (Linear 4096 -> 256), bf16 inputs/weight, f32 acc ----
    x0 = jnp.dot(fi_ref[...], w_red_ref[...], preferred_element_type=f32) + b_red_ref[...]
    x1 = jnp.dot(fj_ref[...], w_red_ref[...], preferred_element_type=f32) + b_red_ref[...]

    # ---- fused q|k|v projection (256 -> 768), then lane-aligned slices ----
    qkv0 = jnp.dot(x0, w_qkv_ref[...], preferred_element_type=f32) + b_qkv_ref[...]
    qkv1 = jnp.dot(x1, w_qkv_ref[...], preferred_element_type=f32) + b_qkv_ref[...]
    q0, k0, v0 = qkv0[:, :D_EMB], qkv0[:, D_EMB:2 * D_EMB], qkv0[:, 2 * D_EMB:]
    q1, k1, v1 = qkv1[:, :D_EMB], qkv1[:, D_EMB:2 * D_EMB], qkv1[:, 2 * D_EMB:]

    # ---- per-head scores via block-diagonal (pre-scaled) head-mask matmul ----
    # (q*k) @ hmask == per-head sum(q_h * k_h) broadcast across that head's
    # lanes; everything stays lane-dense (no in-kernel concatenates).
    hm = hmask_ref[...]
    s00 = jnp.dot(q0 * k0, hm, preferred_element_type=f32)
    s01 = jnp.dot(q0 * k1, hm, preferred_element_type=f32)
    s10 = jnp.dot(q1 * k0, hm, preferred_element_type=f32)
    s11 = jnp.dot(q1 * k1, hm, preferred_element_type=f32)

    # ---- softmax over the 2 keys (scores constant within each head block) ----
    m0 = jnp.maximum(s00, s01)
    e00 = jnp.exp(s00 - m0)
    e01 = jnp.exp(s01 - m0)
    inv0 = pl.reciprocal(e00 + e01, approx=True)
    m1 = jnp.maximum(s10, s11)
    e10 = jnp.exp(s10 - m1)
    e11 = jnp.exp(s11 - m1)
    inv1 = pl.reciprocal(e10 + e11, approx=True)

    o0 = (e00 * v0 + e01 * v1) * inv0   # (TB, 256)
    o1 = (e10 * v0 + e11 * v1) * inv1   # (TB, 256)

    # ---- folded affine tail: out_proj -> conv1x1 -> fc, for both N and P ----
    out_ref[...] = (jnp.dot(o0, w0_ref[...], preferred_element_type=f32)
                    + jnp.dot(o1, w1_ref[...], preferred_element_type=f32)
                    + b_out_ref[...])


def _round_up(x, m):
    return ((x + m - 1) // m) * m


def hdetector_forward(feature_i, feature_j, kparams, *, block_b=256):
    """feature_i/feature_j: (B, 4096). Returns (hardN, hardP), each (B, 1)."""
    B = feature_i.shape[0]
    tb = min(block_b, _round_up(B, 8))
    grid = (pl.cdiv(B, tb),)

    # bf16 feature tiles: half the HBM traffic of the dominant DMA stream and
    # native-rate MXU for the 4096->256 matmul (f32 accumulation in-kernel).
    fi = feature_i.astype(jnp.bfloat16)
    fj = feature_j.astype(jnp.bfloat16)

    def feat_spec():
        return pl.BlockSpec((tb, D_IN), lambda i: (i, 0))

    def resident(shape):
        nd = len(shape)
        return pl.BlockSpec(shape, lambda i, _nd=nd: (0,) * _nd)

    args = (fi, fj,
            kparams["w_red"], kparams["b_red"],
            kparams["w_qkv"], kparams["b_qkv"],
            kparams["hmask"],
            kparams["w0"], kparams["w1"], kparams["b_out"])

    in_specs = [feat_spec(), feat_spec()] + [resident(a.shape) for a in args[2:]]

    out = pl.pallas_call(
        _hdetector_kernel,
        grid=grid,
        in_specs=in_specs,
        out_specs=pl.BlockSpec((tb, 2), lambda i: (i, 0)),
        out_shape=jax.ShapeDtypeStruct((B, 2), jnp.float32),
        compiler_params=pltpu.CompilerParams(
            dimension_semantics=("parallel",),      # megacore on v7x
            vmem_limit_bytes=48 << 20,              # < 64 MiB/TC on v7x
        ),
    )(*args)
    return out[:, 0:1], out[:, 1:2]


def init_params(key):
    """Deterministic synthetic parameters.  All weights are stored transposed
    (in_features, out_features) so the math uses plain x @ W."""
    ks = jax.random.split(key, 12)

    def w(k, shape, fan_in):
        return jax.random.normal(k, shape, jnp.float32) / jnp.sqrt(jnp.float32(fan_in))

    return {
        # nn.Linear(4096, 256)
        "w_red": w(ks[0], (D_IN, D_EMB), D_IN),
        "b_red": w(ks[1], (1, D_EMB), D_IN),
        # nn.MultiheadAttention in_proj split into q/k/v (transposed)
        "wq": w(ks[2], (D_EMB, D_EMB), D_EMB),
        "bq": w(ks[3], (1, D_EMB), D_EMB),
        "wk": w(ks[4], (D_EMB, D_EMB), D_EMB),
        "bk": w(ks[5], (1, D_EMB), D_EMB),
        "wv": w(ks[6], (D_EMB, D_EMB), D_EMB),
        "bv": w(ks[7], (1, D_EMB), D_EMB),
        # out_proj (256, 256)
        "wo": w(ks[8], (D_EMB, D_EMB), D_EMB),
        "bo": jnp.zeros((1, D_EMB), jnp.float32),
        # Conv1d(512, 32, k=1)  -> weight (32, 512, 1) stored as (512, 32)
        "w_convN": w(ks[9], (D_CAT, D_CONV), D_CAT),
        "b_convN": jnp.full((1, D_CONV), 0.01, jnp.float32),
        "w_convP": w(ks[10], (D_CAT, D_CONV), D_CAT),
        "b_convP": jnp.full((1, D_CONV), -0.01, jnp.float32),
        # nn.Linear(32, 1) -> stored as (32, 1)
        "w_fcN": w(ks[11], (D_CONV, 1), D_CONV),
        "b_fcN": jnp.full((1, 1), 0.05, jnp.float32),
        "w_fcP": w(ks[11], (D_CONV, 1), D_CONV) * 0.5,
        "b_fcP": jnp.full((1, 1), -0.05, jnp.float32),
    }


def prepare_kernel_params(p):
    """Host-side fusion/folding of the raw module parameters."""
    f32 = jnp.float32
    scale = jnp.float32(1.0 / (D_HEAD ** 0.5))

    # Block-diagonal head mask, pre-multiplied by the attention scale
    # (hoisted out of the kernel — it is a compile-time constant).
    row_h = jnp.arange(D_EMB)[:, None] // D_HEAD
    col_h = jnp.arange(D_EMB)[None, :] // D_HEAD
    hmask = (row_h == col_h).astype(f32) * scale

    # Fused in-projection.
    w_qkv = jnp.concatenate([p["wq"], p["wk"], p["wv"]], axis=1)   # (256, 768)
    b_qkv = jnp.concatenate([p["bq"], p["bk"], p["bv"]], axis=1)   # (1, 768)

    # Fold out_proj -> conv1x1 -> fc (all affine) into per-token GEMV weights.
    def fold(w_conv, b_conv, w_fc, b_fc):
        w0 = p["wo"] @ w_conv[:D_EMB] @ w_fc                       # (256, 1)
        w1 = p["wo"] @ w_conv[D_EMB:] @ w_fc                       # (256, 1)
        const = (p["bo"] @ (w_conv[:D_EMB] + w_conv[D_EMB:]) @ w_fc
                 + b_conv @ w_fc + b_fc)                           # (1, 1)
        return w0, w1, const

    wn0, wn1, cn = fold(p["w_convN"], p["b_convN"], p["w_fcN"], p["b_fcN"])
    wp0, wp1, cp = fold(p["w_convP"], p["b_convP"], p["w_fcP"], p["b_fcP"])

    return {
        "w_red": p["w_red"].astype(jnp.bfloat16),
        "b_red": p["b_red"].astype(f32),
        "w_qkv": w_qkv.astype(f32),
        "b_qkv": b_qkv.astype(f32),
        "hmask": hmask,
        "w0": jnp.concatenate([wn0, wp0], axis=1).astype(f32),     # (256, 2)
        "w1": jnp.concatenate([wn1, wp1], axis=1).astype(f32),     # (256, 2)
        "b_out": jnp.concatenate([cn, cp], axis=1).astype(f32),    # (1, 2)
    }


def reference_forward(fi, fj, p):
    """Pure-JAX f32 reference mirroring the PyTorch forward."""
    B = fi.shape[0]
    x0 = fi @ p["w_red"] + p["b_red"]
    x1 = fj @ p["w_red"] + p["b_red"]
    x = jnp.stack([x0, x1], axis=1)                       # (B, 2, 256)

    def proj(w, b):
        y = x @ w + b                                      # (B, 2, 256)
        return y.reshape(B, 2, N_HEADS, D_HEAD).transpose(0, 2, 1, 3)  # (B, H, 2, 64)

    q, k, v = proj(p["wq"], p["bq"]), proj(p["wk"], p["bk"]), proj(p["wv"], p["bv"])
    s = jnp.einsum("bhqd,bhkd->bhqk", q, k) / jnp.sqrt(jnp.float32(D_HEAD))
    a = jax.nn.softmax(s, axis=-1)
    o = jnp.einsum("bhqk,bhkd->bhqd", a, v).transpose(0, 2, 1, 3).reshape(B, 2, D_EMB)
    attn = o @ p["wo"] + p["bo"]
    cat = attn.reshape(B, D_CAT)                           # (B, 512)
    cN = cat @ p["w_convN"] + p["b_convN"]
    cP = cat @ p["w_convP"] + p["b_convP"]
    return cN @ p["w_fcN"] + p["b_fcN"], cP @ p["w_fcP"] + p["b_fcP"]


if __name__ == "__main__":
    key = jax.random.PRNGKey(0)
    k_i, k_j, k_p = jax.random.split(key, 3)

    B = 8
    feature_i = jax.random.normal(k_i, (B, D_IN), jnp.float32)
    feature_j = jax.random.normal(k_j, (B, D_IN), jnp.float32)
    params = init_params(k_p)
    kparams = prepare_kernel_params(params)

    hardN, hardP = hdetector_forward(feature_i, feature_j, kparams)
    jax.block_until_ready((hardN, hardP))

    refN, refP = reference_forward(feature_i, feature_j, params)
    assert hardN.shape == (B, 1) and hardP.shape == (B, 1)
    # bf16 feature_reduce + folded affine tail vs. pure-f32 reference.
    assert jnp.allclose(hardN, refN, atol=3e-2, rtol=3e-2)
    assert jnp.allclose(hardP, refP, atol=3e-2, rtol=3e-2)

    print("KERNEL_OK")
</pallas_src>

<mosaic_0001>
module attributes {stable_mosaic.version = 11 : i64} {
  func.func @_hdetector_kernel(%arg0: i32, %arg1: memref<8x4096xbf16, #tpu.memory_space<vmem>>, %arg2: memref<8x4096xbf16, #tpu.memory_space<vmem>>, %arg3: memref<4096x256xbf16, #tpu.memory_space<vmem>>, %arg4: memref<1x256xf32, #tpu.memory_space<vmem>>, %arg5: memref<256x768xf32, #tpu.memory_space<vmem>>, %arg6: memref<1x768xf32, #tpu.memory_space<vmem>>, %arg7: memref<256x256xf32, #tpu.memory_space<vmem>>, %arg8: memref<256x2xf32, #tpu.memory_space<vmem>>, %arg9: memref<256x2xf32, #tpu.memory_space<vmem>>, %arg10: memref<1x2xf32, #tpu.memory_space<vmem>>, %arg11: memref<8x2xf32, #tpu.memory_space<vmem>>) attributes {dimension_semantics = [#tpu.dimension_semantics<parallel>], iteration_bounds = array<i64: 1>, scalar_prefetch = 0 : i64, scratch_operands = 0 : i64, tpu.core_type = #tpu.core_type<tc>, window_params = [{transform_indices = @transform_0, window_bounds = array<i64: 8, 4096>}, {transform_indices = @transform_1, window_bounds = array<i64: 8, 4096>}, {pipeline_mode = #tpu.pipeline_mode<synchronous>, transform_indices = @transform_2, window_bounds = array<i64: 4096, 256>}, {pipeline_mode = #tpu.pipeline_mode<synchronous>, transform_indices = @transform_3, window_bounds = array<i64: 1, 256>}, {pipeline_mode = #tpu.pipeline_mode<synchronous>, transform_indices = @transform_4, window_bounds = array<i64: 256, 768>}, {pipeline_mode = #tpu.pipeline_mode<synchronous>, transform_indices = @transform_5, window_bounds = array<i64: 1, 768>}, {pipeline_mode = #tpu.pipeline_mode<synchronous>, transform_indices = @transform_6, window_bounds = array<i64: 256, 256>}, {pipeline_mode = #tpu.pipeline_mode<synchronous>, transform_indices = @transform_7, window_bounds = array<i64: 256, 2>}, {pipeline_mode = #tpu.pipeline_mode<synchronous>, transform_indices = @transform_8, window_bounds = array<i64: 256, 2>}, {pipeline_mode = #tpu.pipeline_mode<synchronous>, transform_indices = @transform_9, window_bounds = array<i64: 1, 2>}, {transform_indices = @transform_10, window_bounds = array<i64: 8, 2>}]} {
    %c0 = arith.constant 0 : index
    %c0_0 = arith.constant 0 : index
    %0 = vector.load %arg1[%c0, %c0_0] : memref<8x4096xbf16, #tpu.memory_space<vmem>>, vector<8x4096xbf16>
    %c0_1 = arith.constant 0 : index
    %c0_2 = arith.constant 0 : index
    %1 = vector.load %arg3[%c0_1, %c0_2] : memref<4096x256xbf16, #tpu.memory_space<vmem>>, vector<4096x256xbf16>
    %cst = arith.constant dense<0.000000e+00> : vector<8x256xf32>
    %2 = tpu.matmul %0, %1, %cst {dimension_numbers = #tpu.dot_dimension_numbers<[1], [0], [0], [1], [0, 0, 1, 1], [], []>} : vector<8x4096xbf16>, vector<4096x256xbf16>, vector<8x256xf32> -> vector<8x256xf32>
    %c0_3 = arith.constant 0 : index
    %c0_4 = arith.constant 0 : index
    %3 = vector.load %arg4[%c0_3, %c0_4] : memref<1x256xf32, #tpu.memory_space<vmem>>, vector<1x256xf32>
    %4 = vector.broadcast %3 : vector<1x256xf32> to vector<8x256xf32>
    %5 = arith.addf %2, %4 : vector<8x256xf32>
    %c0_5 = arith.constant 0 : index
    %c0_6 = arith.constant 0 : index
    %6 = vector.load %arg2[%c0_5, %c0_6] : memref<8x4096xbf16, #tpu.memory_space<vmem>>, vector<8x4096xbf16>
    %c0_7 = arith.constant 0 : index
    %c0_8 = arith.constant 0 : index
    %7 = vector.load %arg3[%c0_7, %c0_8] : memref<4096x256xbf16, #tpu.memory_space<vmem>>, vector<4096x256xbf16>
    %cst_9 = arith.constant dense<0.000000e+00> : vector<8x256xf32>
    %8 = tpu.matmul %6, %7, %cst_9 {dimension_numbers = #tpu.dot_dimension_numbers<[1], [0], [0], [1], [0, 0, 1, 1], [], []>} : vector<8x4096xbf16>, vector<4096x256xbf16>, vector<8x256xf32> -> vector<8x256xf32>
    %c0_10 = arith.constant 0 : index
    %c0_11 = arith.constant 0 : index
    %9 = vector.load %arg4[%c0_10, %c0_11] : memref<1x256xf32, #tpu.memory_space<vmem>>, vector<1x256xf32>
    %10 = vector.broadcast %9 : vector<1x256xf32> to vector<8x256xf32>
    %11 = arith.addf %8, %10 : vector<8x256xf32>
    %c0_12 = arith.constant 0 : index
    %c0_13 = arith.constant 0 : index
    %12 = vector.load %arg5[%c0_12, %c0_13] : memref<256x768xf32, #tpu.memory_space<vmem>>, vector<256x768xf32>
    %cst_14 = arith.constant dense<0.000000e+00> : vector<8x768xf32>
    %13 = tpu.matmul %5, %12, %cst_14 {dimension_numbers = #tpu.dot_dimension_numbers<[1], [0], [0], [1], [0, 0, 1, 1], [], []>} : vector<8x256xf32>, vector<256x768xf32>, vector<8x768xf32> -> vector<8x768xf32>
    %c0_15 = arith.constant 0 : index
    %c0_16 = arith.constant 0 : index
    %14 = vector.load %arg6[%c0_15, %c0_16] : memref<1x768xf32, #tpu.memory_space<vmem>>, vector<1x768xf32>
    %15 = vector.broadcast %14 : vector<1x768xf32> to vector<8x768xf32>
    %16 = arith.addf %13, %15 : vector<8x768xf32>
    %c0_17 = arith.constant 0 : index
    %c0_18 = arith.constant 0 : index
    %17 = vector.load %arg5[%c0_17, %c0_18] : memref<256x768xf32, #tpu.memory_space<vmem>>, vector<256x768xf32>
    %cst_19 = arith.constant dense<0.000000e+00> : vector<8x768xf32>
    %18 = tpu.matmul %11, %17, %cst_19 {dimension_numbers = #tpu.dot_dimension_numbers<[1], [0], [0], [1], [0, 0, 1, 1], [], []>} : vector<8x256xf32>, vector<256x768xf32>, vector<8x768xf32> -> vector<8x768xf32>
    %c0_20 = arith.constant 0 : index
    %c0_21 = arith.constant 0 : index
    %19 = vector.load %arg6[%c0_20, %c0_21] : memref<1x768xf32, #tpu.memory_space<vmem>>, vector<1x768xf32>
    %20 = vector.broadcast %19 : vector<1x768xf32> to vector<8x768xf32>
    %21 = arith.addf %18, %20 : vector<8x768xf32>
    %22 = vector.extract_strided_slice %16 {offsets = [0, 0], sizes = [8, 256], strides = [1, 1]} : vector<8x768xf32> to vector<8x256xf32>
    %23 = vector.extract_strided_slice %16 {offsets = [0, 256], sizes = [8, 256], strides = [1, 1]} : vector<8x768xf32> to vector<8x256xf32>
    %24 = vector.extract_strided_slice %16 {offsets = [0, 512], sizes = [8, 256], strides = [1, 1]} : vector<8x768xf32> to vector<8x256xf32>
    %25 = vector.extract_strided_slice %21 {offsets = [0, 0], sizes = [8, 256], strides = [1, 1]} : vector<8x768xf32> to vector<8x256xf32>
    %26 = vector.extract_strided_slice %21 {offsets = [0, 256], sizes = [8, 256], strides = [1, 1]} : vector<8x768xf32> to vector<8x256xf32>
    %27 = vector.extract_strided_slice %21 {offsets = [0, 512], sizes = [8, 256], strides = [1, 1]} : vector<8x768xf32> to vector<8x256xf32>
    %c0_22 = arith.constant 0 : index
    %c0_23 = arith.constant 0 : index
    %28 = vector.load %arg7[%c0_22, %c0_23] : memref<256x256xf32, #tpu.memory_space<vmem>>, vector<256x256xf32>
    %29 = arith.mulf %22, %23 : vector<8x256xf32>
    %cst_24 = arith.constant dense<0.000000e+00> : vector<8x256xf32>
    %30 = tpu.matmul %29, %28, %cst_24 {dimension_numbers = #tpu.dot_dimension_numbers<[1], [0], [0], [1], [0, 0, 1, 1], [], []>} : vector<8x256xf32>, vector<256x256xf32>, vector<8x256xf32> -> vector<8x256xf32>
    %31 = arith.mulf %22, %26 : vector<8x256xf32>
    %cst_25 = arith.constant dense<0.000000e+00> : vector<8x256xf32>
    %32 = tpu.matmul %31, %28, %cst_25 {dimension_numbers = #tpu.dot_dimension_numbers<[1], [0], [0], [1], [0, 0, 1, 1], [], []>} : vector<8x256xf32>, vector<256x256xf32>, vector<8x256xf32> -> vector<8x256xf32>
    %33 = arith.mulf %25, %23 : vector<8x256xf32>
    %cst_26 = arith.constant dense<0.000000e+00> : vector<8x256xf32>
    %34 = tpu.matmul %33, %28, %cst_26 {dimension_numbers = #tpu.dot_dimension_numbers<[1], [0], [0], [1], [0, 0, 1, 1], [], []>} : vector<8x256xf32>, vector<256x256xf32>, vector<8x256xf32> -> vector<8x256xf32>
    %35 = arith.mulf %25, %26 : vector<8x256xf32>
    %cst_27 = arith.constant dense<0.000000e+00> : vector<8x256xf32>
    %36 = tpu.matmul %35, %28, %cst_27 {dimension_numbers = #tpu.dot_dimension_numbers<[1], [0], [0], [1], [0, 0, 1, 1], [], []>} : vector<8x256xf32>, vector<256x256xf32>, vector<8x256xf32> -> vector<8x256xf32>
    %37 = arith.maximumf %30, %32 : vector<8x256xf32>
    %38 = arith.subf %30, %37 : vector<8x256xf32>
    %39 = math.exp %38 : vector<8x256xf32>
    %40 = arith.subf %32, %37 : vector<8x256xf32>
    %41 = math.exp %40 : vector<8x256xf32>
    %42 = arith.addf %39, %41 : vector<8x256xf32>
    %43 = tpu.reciprocal %42 {approx = true} : vector<8x256xf32> -> vector<8x256xf32>
    %44 = arith.maximumf %34, %36 : vector<8x256xf32>
    %45 = arith.subf %34, %44 : vector<8x256xf32>
    %46 = math.exp %45 : vector<8x256xf32>
    %47 = arith.subf %36, %44 : vector<8x256xf32>
    %48 = math.exp %47 : vector<8x256xf32>
    %49 = arith.addf %46, %48 : vector<8x256xf32>
    %50 = tpu.reciprocal %49 {approx = true} : vector<8x256xf32> -> vector<8x256xf32>
    %51 = arith.mulf %39, %24 : vector<8x256xf32>
    %52 = arith.mulf %41, %27 : vector<8x256xf32>
    %53 = arith.addf %51, %52 : vector<8x256xf32>
    %54 = arith.mulf %53, %43 : vector<8x256xf32>
    %55 = arith.mulf %46, %24 : vector<8x256xf32>
    %56 = arith.mulf %48, %27 : vector<8x256xf32>
    %57 = arith.addf %55, %56 : vector<8x256xf32>
    %58 = arith.mulf %57, %50 : vector<8x256xf32>
    %c0_28 = arith.constant 0 : index
    %c0_29 = arith.constant 0 : index
    %59 = vector.load %arg8[%c0_28, %c0_29] : memref<256x2xf32, #tpu.memory_space<vmem>>, vector<256x2xf32>
    %cst_30 = arith.constant dense<0.000000e+00> : vector<8x2xf32>
    %60 = tpu.matmul %54, %59, %cst_30 {dimension_numbers = #tpu.dot_dimension_numbers<[1], [0], [0], [1], [0, 0, 1, 1], [], []>} : vector<8x256xf32>, vector<256x2xf32>, vector<8x2xf32> -> vector<8x2xf32>
    %c0_31 = arith.constant 0 : index
    %c0_32 = arith.constant 0 : index
    %61 = vector.load %arg9[%c0_31, %c0_32] : memref<256x2xf32, #tpu.memory_space<vmem>>, vector<256x2xf32>
    %cst_33 = arith.constant dense<0.000000e+00> : vector<8x2xf32>
    %62 = tpu.matmul %58, %61, %cst_33 {dimension_numbers = #tpu.dot_dimension_numbers<[1], [0], [0], [1], [0, 0, 1, 1], [], []>} : vector<8x256xf32>, vector<256x2xf32>, vector<8x2xf32> -> vector<8x2xf32>
    %63 = arith.addf %60, %62 : vector<8x2xf32>
    %c0_34 = arith.constant 0 : index
    %c0_35 = arith.constant 0 : index
    %64 = vector.load %arg10[%c0_34, %c0_35] : memref<1x2xf32, #tpu.memory_space<vmem>>, vector<1x2xf32>
    %65 = vector.broadcast %64 : vector<1x2xf32> to vector<8x2xf32>
    %66 = arith.addf %63, %65 : vector<8x2xf32>
    %c0_36 = arith.constant 0 : index
    %c0_37 = arith.constant 0 : index
    %67 = vector.load %arg11[%c0_36, %c0_37] : memref<8x2xf32, #tpu.memory_space<vmem>>, vector<8x2xf32>
    tpu.vector_store %arg11[%c0_36, %c0_37], %66 {strides = array<i32>} : memref<8x2xf32, #tpu.memory_space<vmem>>, vector<8x2xf32>,
    return
  }
  func.func @transform_0(%arg0: i32) -> (i32, i32) {
    %c0_i32 = arith.constant 0 : i32
    %c0_i32_0 = arith.constant 0 : i32
    return %arg0, %c0_i32 : i32, i32
  }
  func.func @transform_1(%arg0: i32) -> (i32, i32) {
    %c0_i32 = arith.constant 0 : i32
    %c0_i32_0 = arith.constant 0 : i32
    return %arg0, %c0_i32 : i32, i32
  }
  func.func @transform_2(%arg0: i32) -> (i32, i32) {
    %c0_i32 = arith.constant 0 : i32
    %c0_i32_0 = arith.constant 0 : i32
    %c0_i32_1 = arith.constant 0 : i32
    return %c0_i32, %c0_i32_0 : i32, i32
  }
  func.func @transform_3(%arg0: i32) -> (i32, i32) {
    %c0_i32 = arith.constant 0 : i32
    %c0_i32_0 = arith.constant 0 : i32
    %c0_i32_1 = arith.constant 0 : i32
    return %c0_i32, %c0_i32_0 : i32, i32
  }
  func.func @transform_4(%arg0: i32) -> (i32, i32) {
    %c0_i32 = arith.constant 0 : i32
    %c0_i32_0 = arith.constant 0 : i32
    %c0_i32_1 = arith.constant 0 : i32
    return %c0_i32, %c0_i32_0 : i32, i32
  }
  func.func @transform_5(%arg0: i32) -> (i32, i32) {
    %c0_i32 = arith.constant 0 : i32
    %c0_i32_0 = arith.constant 0 : i32
    %c0_i32_1 = arith.constant 0 : i32
    return %c0_i32, %c0_i32_0 : i32, i32
  }
  func.func @transform_6(%arg0: i32) -> (i32, i32) {
    %c0_i32 = arith.constant 0 : i32
    %c0_i32_0 = arith.constant 0 : i32
    %c0_i32_1 = arith.constant 0 : i32
    return %c0_i32, %c0_i32_0 : i32, i32
  }
  func.func @transform_7(%arg0: i32) -> (i32, i32) {
    %c0_i32 = arith.constant 0 : i32
    %c0_i32_0 = arith.constant 0 : i32
    %c0_i32_1 = arith.constant 0 : i32
    return %c0_i32, %c0_i32_0 : i32, i32
  }
  func.func @transform_8(%arg0: i32) -> (i32, i32) {
    %c0_i32 = arith.constant 0 : i32
    %c0_i32_0 = arith.constant 0 : i32
    %c0_i32_1 = arith.constant 0 : i32
    return %c0_i32, %c0_i32_0 : i32, i32
  }
  func.func @transform_9(%arg0: i32) -> (i32, i32) {
    %c0_i32 = arith.constant 0 : i32
    %c0_i32_0 = arith.constant 0 : i32
    %c0_i32_1 = arith.constant 0 : i32
    return %c0_i32, %c0_i32_0 : i32, i32
  }
  func.func @transform_10(%arg0: i32) -> (i32, i32) {
    %c0_i32 = arith.constant 0 : i32
    %c0_i32_0 = arith.constant 0 : i32
    return %arg0, %c0_i32 : i32, i32
  }
}

</mosaic_0001>

<llo_original>
// kernel: tpu_custom_call.1
$region0: #{tpu_custom_call.1}
  #allocation0 [shape = 'u32[]', space=smem, size = 0x4, offset = 0x4, fixed_abs, tag = 'smem constant byte address 0x4 - core index']
  #allocation1 [shape = 'u32[72,128]{1,0:T(1,128)}', space=vmem, size = 0x9000, scoped, tag = 'internal scratch']
  %s0 = inlined_call_operand.hbm [shape: bf16[8,4096], index: 0, kind: input, shape index: {}]
  %s1 = inlined_call_operand.hbm [shape: bf16[8,4096], index: 1, kind: input, shape index: {}]
  %s2 = inlined_call_operand.hbm [shape: bf16[4096,256], index: 2, kind: input, shape index: {}]
  %s3 = inlined_call_operand.hbm [shape: f32[1,256], index: 3, kind: input, shape index: {}]
  %s4 = inlined_call_operand.hbm [shape: f32[256,768], index: 4, kind: input, shape index: {}]
  %s5 = inlined_call_operand.hbm [shape: f32[1,768], index: 5, kind: input, shape index: {}]
  %s6 = inlined_call_operand.hbm [shape: f32[256,256], index: 6, kind: input, shape index: {}]
  %s7 = inlined_call_operand.vmem [shape: f32[256,2], index: 7, kind: input, shape index: {}]
  %s8 = inlined_call_operand.vmem [shape: f32[256,2], index: 8, kind: input, shape index: {}]
  %s9 = inlined_call_operand.hbm [shape: f32[1,2], index: 9, kind: input, shape index: {}]
  %s10 = inlined_call_operand.vmem [shape: f32[8,2], index: 10, kind: output, shape index: {}]
  %s11 = sld [smem:[#allocation0]]
  $region82: #{tpu_custom_call.1} parent=0
    _
  %s13 = ssub.s32 1, %s11
  %s14 = scalar_select 0, %s13, %s11
  $region1: #{tpu_custom_call.1} parent=0
    #allocation2 [shape = 'u8[65536]{0}', space=vmem, size = 0x10000, scoped, tag = 'input window, operand 0, single buffered']
    #allocation3 [shape = 's32[1]{0}', space=sflag, size = 0x4, scoped, tag = 'scoped memory for tpu_custom_call.1']
    #allocation4 [shape = 'u8[65536]{0}', space=vmem, size = 0x10000, scoped, tag = 'input window, operand 1, single buffered']
    #allocation5 [shape = 's32[1]{0}', space=sflag, size = 0x4, scoped, tag = 'scoped memory for tpu_custom_call.1']
    #allocation6 [shape = 'u8[2097152]{0}', space=vmem, size = 0x200000, scoped, tag = 'input window, operand 2, single buffered']
    #allocation7 [shape = 'u8[1024]{0}', space=vmem, size = 0x400, scoped, tag = 'input window, operand 3, single buffered']
    #allocation8 [shape = 's32[1]{0}', space=sflag, size = 0x4, scoped, tag = 'scoped memory for tpu_custom_call.1']
    #allocation9 [shape = 'u8[786432]{0}', space=vmem, size = 0xc0000, scoped, tag = 'input window, operand 4, single buffered']
    #allocation10 [shape = 'u8[3072]{0}', space=vmem, size = 0xc00, scoped, tag = 'input window, operand 5, single buffered']
    #allocation11 [shape = 's32[1]{0}', space=sflag, size = 0x4, scoped, tag = 'scoped memory for tpu_custom_call.1']
    #allocation12 [shape = 'u8[262144]{0}', space=vmem, size = 0x40000, scoped, tag = 'input window, operand 6, single buffered']
    #allocation13 [shape = 'u8[512]{0}', space=vmem, size = 0x400, scoped, tag = 'input window, operand 9, single buffered']
    #allocation14 [shape = 's32[1]{0}', space=sflag, size = 0x4, scoped, tag = 'scoped memory for tpu_custom_call.1']
    %15 = vsyncpa [#allocation3], 0
    %16 = vsyncpa [#allocation5], 0
    %17 = vsyncpa [#allocation8], 0
    %18 = vsyncpa [#allocation11], 0
    %19 = vsyncpa [#allocation14], 0
    // Predicated region
    $region2: #{tpu_custom_call.1} parent=1 // pred_check
      _
    $region3: #{tpu_custom_call.1} parent=1 // pred_check_branch
      %21 = sbr.rel (0) target = $region5
    $region4: #{tpu_custom_call.1} parent=1 // pred_region
      %23 = vsyncadd [#allocation3], 0
      %s25 = sshll.u32 %s0, 4
      %s26 = int_to_ptr.hbm [resolvable:$true] %s25
      %s27 = sshll.u32 [#allocation2], 4
      %s28 = int_to_ptr.vmem [resolvable:$true] %s27
      %30 = dma.hbm_to_vmem [thread:$0]  %s26, 2048, %s28, [#allocation3]
    $region5: #{tpu_custom_call.1} parent=1 // pred_fallthru
      _
    // Predicated region
    $region6: #{tpu_custom_call.1} parent=1 // pred_check
      _
    $region7: #{tpu_custom_call.1} parent=1 // pred_check_branch
      %32 = sbr.rel (0) target = $region9
    $region8: #{tpu_custom_call.1} parent=1 // pred_region
      %34 = vsyncadd [#allocation5], 0
      %s36 = sshll.u32 %s1, 4
      %s37 = int_to_ptr.hbm [resolvable:$true] %s36
      %s38 = sshll.u32 [#allocation4], 4
      %s39 = int_to_ptr.vmem [resolvable:$true] %s38
      %41 = dma.hbm_to_vmem [thread:$0]  %s37, 2048, %s39, [#allocation5]
    $region9: #{tpu_custom_call.1} parent=1 // pred_fallthru
      _
    // Predicated region
    $region10: #{tpu_custom_call.1} parent=1 // pred_check
      _
    $region11: #{tpu_custom_call.1} parent=1 // pred_check_branch
      %43 = sbr.rel (0) target = $region13
    $region12: #{tpu_custom_call.1} parent=1 // pred_region
      %45 = vsyncadd [#allocation5], 0
      %s46 = sshll.u32 %s2, 4
      %s47 = int_to_ptr.hbm [resolvable:$true] %s46
      %s48 = sshll.u32 [#allocation6], 4
      %s49 = int_to_ptr.vmem [resolvable:$true] %s48
      %54 = dma.hbm_to_vmem [thread:$0]  %s47, 65536, %s49, [#allocation5], 128, 128, 8
    $region13: #{tpu_custom_call.1} parent=1 // pred_fallthru
      _
    // Predicated region
    $region14: #{tpu_custom_call.1} parent=1 // pred_check
      _
    $region15: #{tpu_custom_call.1} parent=1 // pred_check_branch
      %56 = sbr.rel (0) target = $region17
    $region16: #{tpu_custom_call.1} parent=1 // pred_region
      %58 = vsyncadd [#allocation8], 0
      %s60 = sshll.u32 %s3, 4
      %s61 = int_to_ptr.hbm [resolvable:$true] %s60
      %s62 = sshll.u32 [#allocation7], 4
      %s63 = int_to_ptr.vmem [resolvable:$true] %s62
      %65 = dma.hbm_to_vmem [thread:$0]  %s61, 32, %s63, [#allocation8]
    $region17: #{tpu_custom_call.1} parent=1 // pred_fallthru
      _
    // Predicated region
    $region18: #{tpu_custom_call.1} parent=1 // pred_check
      _
    $region19: #{tpu_custom_call.1} parent=1 // pred_check_branch
      %67 = sbr.rel (0) target = $region21
    $region20: #{tpu_custom_call.1} parent=1 // pred_region
      %69 = vsyncadd [#allocation8], 0
      %s70 = sshll.u32 %s4, 4
      %s71 = int_to_ptr.hbm [resolvable:$true] %s70
      %s72 = sshll.u32 [#allocation9], 4
      %s73 = int_to_ptr.vmem [resolvable:$true] %s72
      %78 = dma.hbm_to_vmem [thread:$0]  %s71, 24576, %s73, [#allocation8], 768, 768, 48
    $region21: #{tpu_custom_call.1} parent=1 // pred_fallthru
      _
    // Predicated region
    $region22: #{tpu_custom_call.1} parent=1 // pred_check
      _
    $region23: #{tpu_custom_call.1} parent=1 // pred_check_branch
      %80 = sbr.rel (0) target = $region25
    $region24: #{tpu_custom_call.1} parent=1 // pred_region
      %82 = vsyncadd [#allocation11], 0
      %s84 = sshll.u32 %s5, 4
      %s85 = int_to_ptr.hbm [resolvable:$true] %s84
      %s86 = sshll.u32 [#allocation10], 4
      %s87 = int_to_ptr.vmem [resolvable:$true] %s86
      %89 = dma.hbm_to_vmem [thread:$0]  %s85, 96, %s87, [#allocation11]
    $region25: #{tpu_custom_call.1} parent=1 // pred_fallthru
      _
    // Predicated region
    $region26: #{tpu_custom_call.1} parent=1 // pred_check
      _
    $region27: #{tpu_custom_call.1} parent=1 // pred_check_branch
      %91 = sbr.rel (0) target = $region29
    $region28: #{tpu_custom_call.1} parent=1 // pred_region
      %93 = vsyncadd [#allocation11], 0
      %s94 = sshll.u32 %s6, 4
      %s95 = int_to_ptr.hbm [resolvable:$true] %s94
      %s96 = sshll.u32 [#allocation12], 4
      %s97 = int_to_ptr.vmem [resolvable:$true] %s96
      %102 = dma.hbm_to_vmem [thread:$0]  %s95, 8192, %s97, [#allocation11], 256, 256, 16
    $region29: #{tpu_custom_call.1} parent=1 // pred_fallthru
      _
    // Predicated region
    $region30: #{tpu_custom_call.1} parent=1 // pred_check
      _
    $region31: #{tpu_custom_call.1} parent=1 // pred_check_branch
      %104 = sbr.rel (0) target = $region33
    $region32: #{tpu_custom_call.1} parent=1 // pred_region
      _
    $region33: #{tpu_custom_call.1} parent=1 // pred_fallthru
      _
    // Predicated region
    $region34: #{tpu_custom_call.1} parent=1 // pred_check
      _
    $region35: #{tpu_custom_call.1} parent=1 // pred_check_branch
      %106 = sbr.rel (0) target = $region37
    $region36: #{tpu_custom_call.1} parent=1 // pred_region
      _
    $region37: #{tpu_custom_call.1} parent=1 // pred_fallthru
      _
    // Predicated region
    $region38: #{tpu_custom_call.1} parent=1 // pred_check
      _
    $region39: #{tpu_custom_call.1} parent=1 // pred_check_branch
      %108 = sbr.rel (0) target = $region41
    $region40: #{tpu_custom_call.1} parent=1 // pred_region
      %110 = vsyncadd [#allocation14], 0
      %s112 = sshll.u32 %s9, 4
      %s113 = int_to_ptr.hbm [resolvable:$true] %s112
      %s114 = sshll.u32 [#allocation13], 4
      %s115 = int_to_ptr.vmem [resolvable:$true] %s114
      %117 = dma.hbm_to_vmem [thread:$0]  %s113, 16, %s115, [#allocation14]
    $region41: #{tpu_custom_call.1} parent=1 // pred_fallthru
      _
    // Predicated region
    $region42: #{tpu_custom_call.1} parent=1 // pred_check
      _
    $region43: #{tpu_custom_call.1} parent=1 // pred_check_branch
      %119 = sbr.rel (0) target = $region45
    $region44: #{tpu_custom_call.1} parent=1 // pred_region
      %121 = dma.done [#allocation3], 2048
    $region45: #{tpu_custom_call.1} parent=1 // pred_fallthru
      _
    // Predicated region
    $region46: #{tpu_custom_call.1} parent=1 // pred_check
      _
    $region47: #{tpu_custom_call.1} parent=1 // pred_check_branch
      %123 = sbr.rel (0) target = $region49
    $region48: #{tpu_custom_call.1} parent=1 // pred_region
      %125 = dma.done [#allocation5], 2048
    $region49: #{tpu_custom_call.1} parent=1 // pred_fallthru
      _
    // Predicated region
    $region50: #{tpu_custom_call.1} parent=1 // pred_check
      _
    $region51: #{tpu_custom_call.1} parent=1 // pred_check_branch
      %127 = sbr.rel (0) target = $region53
    $region52: #{tpu_custom_call.1} parent=1 // pred_region
      %129 = dma.done [#allocation5], 65536
    $region53: #{tpu_custom_call.1} parent=1 // pred_fallthru
      _
    // Predicated region
    $region54: #{tpu_custom_call.1} parent=1 // pred_check
      _
    $region55: #{tpu_custom_call.1} parent=1 // pred_check_branch
      %131 = sbr.rel (0) target = $region57
    $region56: #{tpu_custom_call.1} parent=1 // pred_region
      %133 = dma.done [#allocation8], 32
    $region57: #{tpu_custom_call.1} parent=1 // pred_fallthru
      _
    // Predicated region
    $region58: #{tpu_custom_call.1} parent=1 // pred_check
      _
    $region59: #{tpu_custom_call.1} parent=1 // pred_check_branch
      %135 = sbr.rel (0) target = $region61
    $region60: #{tpu_custom_call.1} parent=1 // pred_region
      %137 = dma.done [#allocation8], 24576
    $region61: #{tpu_custom_call.1} parent=1 // pred_fallthru
      _
    // Predicated region
    $region62: #{tpu_custom_call.1} parent=1 // pred_check
      _
    $region63: #{tpu_custom_call.1} parent=1 // pred_check_branch
      %139 = sbr.rel (0) target = $region65
    $region64: #{tpu_custom_call.1} parent=1 // pred_region
      %141 = dma.done [#allocation11], 96
    $region65: #{tpu_custom_call.1} parent=1 // pred_fallthru
      _
    // Predicated region
    $region66: #{tpu_custom_call.1} parent=1 // pred_check
      _
    $region67: #{tpu_custom_call.1} parent=1 // pred_check_branch
      %143 = sbr.rel (0) target = $region69
    $region68: #{tpu_custom_call.1} parent=1 // pred_region
      %145 = dma.done [#allocation11], 8192
    $region69: #{tpu_custom_call.1} parent=1 // pred_fallthru
      _
    // Predicated region
    $region70: #{tpu_custom_call.1} parent=1 // pred_check
      _
    $region71: #{tpu_custom_call.1} parent=1 // pred_check_branch
      %147 = sbr.rel (0) target = $region73
    $region72: #{tpu_custom_call.1} parent=1 // pred_region
      %149 = dma.done [#allocation14], 16
    $region73: #{tpu_custom_call.1} parent=1 // pred_fallthru
      _
    %v150 = vld [vmem:[#allocation2] sm:$0xff]
    %v151 = vld [vmem:[#allocation2 + $0x8] sm:$0xff]
    %v152 = vld [vmem:[#allocation2 + $0x10] sm:$0xff]
    %v153 = vld [vmem:[#allocation2 + $0x18] sm:$0xff]
    %v154 = vld [vmem:[#allocation2 + $0x20] sm:$0xff]
    %v155 = vld [vmem:[#allocation2 + $0x28] sm:$0xff]
    %v156 = vld [vmem:[#allocation2 + $0x30] sm:$0xff]
    %v157 = vld [vmem:[#allocation2 + $0x38] sm:$0xff]
    %v158 = vld [vmem:[#allocation2 + $0x40] sm:$0xff]
    %v159 = vld [vmem:[#allocation2 + $0x48] sm:$0xff]
    %v160 = vld [vmem:[#allocation2 + $0x50] sm:$0xff]
    %v161 = vld [vmem:[#allocation2 + $0x58] sm:$0xff]
    %v162 = vld [vmem:[#allocation2 + $0x60] sm:$0xff]
    %v163 = vld [vmem:[#allocation2 + $0x68] sm:$0xff]
    %v164 = vld [vmem:[#allocation2 + $0x70] sm:$0xff]
    %v165 = vld [vmem:[#allocation2 + $0x78] sm:$0xff]
    %v166 = vld [vmem:[#allocation6] sm:$0xff]
    %v167 = vld [vmem:[#allocation6 + $0x8] sm:$0xff]
    %v168 = vld [vmem:[#allocation6 + $0x10] sm:$0xff]
    %v169 = vld [vmem:[#allocation6 + $0x18] sm:$0xff]
    %v170 = vld [vmem:[#allocation6 + $0x20] sm:$0xff]
    %v171 = vld [vmem:[#allocation6 + $0x28] sm:$0xff]
    %v172 = vld [vmem:[#allocation6 + $0x30] sm:$0xff]
    %v173 = vld [vmem:[#allocation6 + $0x38] sm:$0xff]
    %v174 = vld [vmem:[#allocation6 + $0x40] sm:$0xff]
    %v175 = vld [vmem:[#allocation6 + $0x48] sm:$0xff]
    %v176 = vld [vmem:[#allocation6 + $0x50] sm:$0xff]
    %v177 = vld [vmem:[#allocation6 + $0x58] sm:$0xff]
    %v178 = vld [vmem:[#allocation6 + $0x60] sm:$0xff]
    %v179 = vld [vmem:[#allocation6 + $0x68] sm:$0xff]
    %v180 = vld [vmem:[#allocation6 + $0x70] sm:$0xff]
    %v181 = vld [vmem:[#allocation6 + $0x78] sm:$0xff]
    %v182 = vld [vmem:[#allocation6 + $0x80] sm:$0xff]
    %v183 = vld [vmem:[#allocation6 + $0x88] sm:$0xff]
    %v184 = vld [vmem:[#allocation6 + $0x90] sm:$0xff]
    %v185 = vld [vmem:[#allocation6 + $0x98] sm:$0xff]
    %v186 = vld [vmem:[#allocation6 + $0xa0] sm:$0xff]
    %v187 = vld [vmem:[#allocation6 + $0xa8] sm:$0xff]
    %v188 = vld [vmem:[#allocation6 + $0xb0] sm:$0xff]
    %v189 = vld [vmem:[#allocation6 + $0xb8] sm:$0xff]
    %v190 = vld [vmem:[#allocation6 + $0xc0] sm:$0xff]
    %v191 = vld [vmem:[#allocation6 + $0xc8] sm:$0xff]
    %v192 = vld [vmem:[#allocation6 + $0xd0] sm:$0xff]
    %v193 = vld [vmem:[#allocation6 + $0xd8] sm:$0xff]
    %v194 = vld [vmem:[#allocation6 + $0xe0] sm:$0xff]
    %v195 = vld [vmem:[#allocation6 + $0xe8] sm:$0xff]
    %v196 = vld [vmem:[#allocation6 + $0xf0] sm:$0xff]
    %v197 = vld [vmem:[#allocation6 + $0xf8] sm:$0xff]
    %v198 = vld [vmem:[#allocation6 + $0x100] sm:$0xff]
    %v199 = vld [vmem:[#allocation6 + $0x108] sm:$0xff]
    %v200 = vld [vmem:[#allocation6 + $0x110] sm:$0xff]
    %v201 = vld [vmem:[#allocation6 + $0x118] sm:$0xff]
    %v202 = vld [vmem:[#allocation6 + $0x120] sm:$0xff]
    %v203 = vld [vmem:[#allocation6 + $0x128] sm:$0xff]
    %v204 = vld [vmem:[#allocation6 + $0x130] sm:$0xff]
    %v205 = vld [vmem:[#allocation6 + $0x138] sm:$0xff]
    %v206 = vld [vmem:[#allocation6 + $0x140] sm:$0xff]
    %v207 = vld [vmem:[#allocation6 + $0x148] sm:$0xff]
    %v208 = vld [vmem:[#allocation6 + $0x150] sm:$0xff]
    %v209 = vld [vmem:[#allocation6 + $0x158] sm:$0xff]
    %v210 = vld [vmem:[#allocation6 + $0x160] sm:$0xff]
    %v211 = vld [vmem:[#allocation6 + $0x168] sm:$0xff]
    %v212 = vld [vmem:[#allocation6 + $0x170] sm:$0xff]
    %v213 = vld [vmem:[#allocation6 + $0x178] sm:$0xff]
    %v214 = vld [vmem:[#allocation6 + $0x180] sm:$0xff]
    %v215 = vld [vmem:[#allocation6 + $0x188] sm:$0xff]
    %v216 = vld [vmem:[#allocation6 + $0x190] sm:$0xff]
    %v217 = vld [vmem:[#allocation6 + $0x198] sm:$0xff]
    %v218 = vld [vmem:[#allocation6 + $0x1a0] sm:$0xff]
    %v219 = vld [vmem:[#allocation6 + $0x1a8] sm:$0xff]
    %v220 = vld [vmem:[#allocation6 + $0x1b0] sm:$0xff]
    %v221 = vld [vmem:[#allocation6 + $0x1b8] sm:$0xff]
    %v222 = vld [vmem:[#allocation6 + $0x1c0] sm:$0xff]
    %v223 = vld [vmem:[#allocation6 + $0x1c8] sm:$0xff]
    %v224 = vld [vmem:[#allocation6 + $0x1d0] sm:$0xff]
    %v225 = vld [vmem:[#allocation6 + $0x1d8] sm:$0xff]
    %v226 = vld [vmem:[#allocation6 + $0x1e0] sm:$0xff]
    %v227 = vld [vmem:[#allocation6 + $0x1e8] sm:$0xff]
    %v228 = vld [vmem:[#allocation6 + $0x1f0] sm:$0xff]
    %v229 = vld [vmem:[#allocation6 + $0x1f8] sm:$0xff]
    %v230 = vld [vmem:[#allocation6 + $0x200] sm:$0xff]
    %v231 = vld [vmem:[#allocation6 + $0x208] sm:$0xff]
    %v232 = vld [vmem:[#allocation6 + $0x210] sm:$0xff]
    %v233 = vld [vmem:[#allocation6 + $0x218] sm:$0xff]
    %v234 = vld [vmem:[#allocation6 + $0x220] sm:$0xff]
    %v235 = vld [vmem:[#allocation6 + $0x228] sm:$0xff]
    %v236 = vld [vmem:[#allocation6 + $0x230] sm:$0xff]
    %v237 = vld [vmem:[#allocation6 + $0x238] sm:$0xff]
    %v238 = vld [vmem:[#allocation6 + $0x240] sm:$0xff]
    %v239 = vld [vmem:[#allocation6 + $0x248] sm:$0xff]
    %v240 = vld [vmem:[#allocation6 + $0x250] sm:$0xff]
    %v241 = vld [vmem:[#allocation6 + $0x258] sm:$0xff]
    %v242 = vld [vmem:[#allocation6 + $0x260] sm:$0xff]
    %v243 = vld [vmem:[#allocation6 + $0x268] sm:$0xff]
    %v244 = vld [vmem:[#allocation6 + $0x270] sm:$0xff]
    %v245 = vld [vmem:[#allocation6 + $0x278] sm:$0xff]
    %v246 = vld [vmem:[#allocation6 + $0x280] sm:$0xff]
    %v247 = vld [vmem:[#allocation6 + $0x288] sm:$0xff]
    %v248 = vld [vmem:[#allocation6 + $0x290] sm:$0xff]
    %v249 = vld [vmem:[#allocation6 + $0x298] sm:$0xff]
    %v250 = vld [vmem:[#allocation6 + $0x2a0] sm:$0xff]
    %v251 = vld [vmem:[#allocation6 + $0x2a8] sm:$0xff]
    %v252 = vld [vmem:[#allocation6 + $0x2b0] sm:$0xff]
    %v253 = vld [vmem:[#allocation6 + $0x2b8] sm:$0xff]
    %v254 = vld [vmem:[#allocation6 + $0x2c0] sm:$0xff]
    %v255 = vld [vmem:[#allocation6 + $0x2c8] sm:$0xff]
    %v256 = vld [vmem:[#allocation6 + $0x2d0] sm:$0xff]
    %v257 = vld [vmem:[#allocation6 + $0x2d8] sm:$0xff]
    %v258 = vld [vmem:[#allocation6 + $0x2e0] sm:$0xff]
    %v259 = vld [vmem:[#allocation6 + $0x2e8] sm:$0xff]
    %v260 = vld [vmem:[#allocation6 + $0x2f0] sm:$0xff]
    %v261 = vld [vmem:[#allocation6 + $0x2f8] sm:$0xff]
    %v262 = vld [vmem:[#allocation6 + $0x300] sm:$0xff]
    %v263 = vld [vmem:[#allocation6 + $0x308] sm:$0xff]
    %v264 = vld [vmem:[#allocation6 + $0x310] sm:$0xff]
    %v265 = vld [vmem:[#allocation6 + $0x318] sm:$0xff]
    %v266 = vld [vmem:[#allocation6 + $0x320] sm:$0xff]
    %v267 = vld [vmem:[#allocation6 + $0x328] sm:$0xff]
    %v268 = vld [vmem:[#allocation6 + $0x330] sm:$0xff]
    %v269 = vld [vmem:[#allocation6 + $0x338] sm:$0xff]
    %v270 = vld [vmem:[#allocation6 + $0x340] sm:$0xff]
    %v271 = vld [vmem:[#allocation6 + $0x348] sm:$0xff]
    %v272 = vld [vmem:[#allocation6 + $0x350] sm:$0xff]
    %v273 = vld [vmem:[#allocation6 + $0x358] sm:$0xff]
    %v274 = vld [vmem:[#allocation6 + $0x360] sm:$0xff]
    %v275 = vld [vmem:[#allocation6 + $0x368] sm:$0xff]
    %v276 = vld [vmem:[#allocation6 + $0x370] sm:$0xff]
    %v277 = vld [vmem:[#allocation6 + $0x378] sm:$0xff]
    %v278 = vld [vmem:[#allocation6 + $0x380] sm:$0xff]
    %v279 = vld [vmem:[#allocation6 + $0x388] sm:$0xff]
    %v280 = vld [vmem:[#allocation6 + $0x390] sm:$0xff]
    %v281 = vld [vmem:[#allocation6 + $0x398] sm:$0xff]
    %v282 = vld [vmem:[#allocation6 + $0x3a0] sm:$0xff]
    %v283 = vld [vmem:[#allocation6 + $0x3a8] sm:$0xff]
    %v284 = vld [vmem:[#allocation6 + $0x3b0] sm:$0xff]
    %v285 = vld [vmem:[#allocation6 + $0x3b8] sm:$0xff]
    %v286 = vld [vmem:[#allocation6 + $0x3c0] sm:$0xff]
    %v287 = vld [vmem:[#allocation6 + $0x3c8] sm:$0xff]
    %v288 = vld [vmem:[#allocation6 + $0x3d0] sm:$0xff]
    %v289 = vld [vmem:[#allocation6 + $0x3d8] sm:$0xff]
    %v290 = vld [vmem:[#allocation6 + $0x3e0] sm:$0xff]
    %v291 = vld [vmem:[#allocation6 + $0x3e8] sm:$0xff]
    %v292 = vld [vmem:[#allocation6 + $0x3f0] sm:$0xff]
    %v293 = vld [vmem:[#allocation6 + $0x3f8] sm:$0xff]
    %v294 = vld [vmem:[#allocation6 + $0x400] sm:$0xff]
    %v295 = vld [vmem:[#allocation6 + $0x408] sm:$0xff]
    %v296 = vld [vmem:[#allocation6 + $0x410] sm:$0xff]
    %v297 = vld [vmem:[#allocation6 + $0x418] sm:$0xff]
    %v298 = vld [vmem:[#allocation6 + $0x420] sm:$0xff]
    %v299 = vld [vmem:[#allocation6 + $0x428] sm:$0xff]
    %v300 = vld [vmem:[#allocation6 + $0x430] sm:$0xff]
    %v301 = vld [vmem:[#allocation6 + $0x438] sm:$0xff]
    %v302 = vld [vmem:[#allocation6 + $0x440] sm:$0xff]
    %v303 = vld [vmem:[#allocation6 + $0x448] sm:$0xff]
    %v304 = vld [vmem:[#allocation6 + $0x450] sm:$0xff]
    %v305 = vld [vmem:[#allocation6 + $0x458] sm:$0xff]
    %v306 = vld [vmem:[#allocation6 + $0x460] sm:$0xff]
    %v307 = vld [vmem:[#allocation6 + $0x468] sm:$0xff]
    %v308 = vld [vmem:[#allocation6 + $0x470] sm:$0xff]
    %v309 = vld [vmem:[#allocation6 + $0x478] sm:$0xff]
    %v310 = vld [vmem:[#allocation6 + $0x480] sm:$0xff]
    %v311 = vld [vmem:[#allocation6 + $0x488] sm:$0xff]
    %v312 = vld [vmem:[#allocation6 + $0x490] sm:$0xff]
    %v313 = vld [vmem:[#allocation6 + $0x498] sm:$0xff]
    %v314 = vld [vmem:[#allocation6 + $0x4a0] sm:$0xff]
    %v315 = vld [vmem:[#allocation6 + $0x4a8] sm:$0xff]
    %v316 = vld [vmem:[#allocation6 + $0x4b0] sm:$0xff]
    %v317 = vld [vmem:[#allocation6 + $0x4b8] sm:$0xff]
    %v318 = vld [vmem:[#allocation6 + $0x4c0] sm:$0xff]
    %v319 = vld [vmem:[#allocation6 + $0x4c8] sm:$0xff]
    %v320 = vld [vmem:[#allocation6 + $0x4d0] sm:$0xff]
    %v321 = vld [vmem:[#allocation6 + $0x4d8] sm:$0xff]
    %v322 = vld [vmem:[#allocation6 + $0x4e0] sm:$0xff]
    %v323 = vld [vmem:[#allocation6 + $0x4e8] sm:$0xff]
    %v324 = vld [vmem:[#allocation6 + $0x4f0] sm:$0xff]
    %v325 = vld [vmem:[#allocation6 + $0x4f8] sm:$0xff]
    %v326 = vld [vmem:[#allocation6 + $0x500] sm:$0xff]
    %v327 = vld [vmem:[#allocation6 + $0x508] sm:$0xff]
    %v328 = vld [vmem:[#allocation6 + $0x510] sm:$0xff]
    %v329 = vld [vmem:[#allocation6 + $0x518] sm:$0xff]
    %v330 = vld [vmem:[#allocation6 + $0x520] sm:$0xff]
    %v331 = vld [vmem:[#allocation6 + $0x528] sm:$0xff]
    %v332 = vld [vmem:[#allocation6 + $0x530] sm:$0xff]
    %v333 = vld [vmem:[#allocation6 + $0x538] sm:$0xff]
    %v334 = vld [vmem:[#allocation6 + $0x540] sm:$0xff]
    %v335 = vld [vmem:[#allocation6 + $0x548] sm:$0xff]
    %v336 = vld [vmem:[#allocation6 + $0x550] sm:$0xff]
    %v337 = vld [vmem:[#allocation6 + $0x558] sm:$0xff]
    %v338 = vld [vmem:[#allocation6 + $0x560] sm:$0xff]
    %v339 = vld [vmem:[#allocation6 + $0x568] sm:$0xff]
    %v340 = vld [vmem:[#allocation6 + $0x570] sm:$0xff]
    %v341 = vld [vmem:[#allocation6 + $0x578] sm:$0xff]
    %v342 = vld [vmem:[#allocation6 + $0x580] sm:$0xff]
    %v343 = vld [vmem:[#allocation6 + $0x588] sm:$0xff]
    %v344 = vld [vmem:[#allocation6 + $0x590] sm:$0xff]
    %v345 = vld [vmem:[#allocation6 + $0x598] sm:$0xff]
    %v346 = vld [vmem:[#allocation6 + $0x5a0] sm:$0xff]
    %v347 = vld [vmem:[#allocation6 + $0x5a8] sm:$0xff]
    %v348 = vld [vmem:[#allocation6 + $0x5b0] sm:$0xff]
    %v349 = vld [vmem:[#allocation6 + $0x5b8] sm:$0xff]
    %v350 = vld [vmem:[#allocation6 + $0x5c0] sm:$0xff]
    %v351 = vld [vmem:[#allocation6 + $0x5c8] sm:$0xff]
    %v352 = vld [vmem:[#allocation6 + $0x5d0] sm:$0xff]
    %v353 = vld [vmem:[#allocation6 + $0x5d8] sm:$0xff]
    %v354 = vld [vmem:[#allocation6 + $0x5e0] sm:$0xff]
    %v355 = vld [vmem:[#allocation6 + $0x5e8] sm:$0xff]
    %v356 = vld [vmem:[#allocation6 + $0x5f0] sm:$0xff]
    %v357 = vld [vmem:[#allocation6 + $0x5f8] sm:$0xff]
    %v358 = vld [vmem:[#allocation6 + $0x600] sm:$0xff]
    %v359 = vld [vmem:[#allocation6 + $0x608] sm:$0xff]
    %v360 = vld [vmem:[#allocation6 + $0x610] sm:$0xff]
    %v361 = vld [vmem:[#allocation6 + $0x618] sm:$0xff]
    %v362 = vld [vmem:[#allocation6 + $0x620] sm:$0xff]
    %v363 = vld [vmem:[#allocation6 + $0x628] sm:$0xff]
    %v364 = vld [vmem:[#allocation6 + $0x630] sm:$0xff]
    %v365 = vld [vmem:[#allocation6 + $0x638] sm:$0xff]
    %v366 = vld [vmem:[#allocation6 + $0x640] sm:$0xff]
    %v367 = vld [vmem:[#allocation6 + $0x648] sm:$0xff]
    %v368 = vld [vmem:[#allocation6 + $0x650] sm:$0xff]
    %v369 = vld [vmem:[#allocation6 + $0x658] sm:$0xff]
    %v370 = vld [vmem:[#allocation6 + $0x660] sm:$0xff]
    %v371 = vld [vmem:[#allocation6 + $0x668] sm:$0xff]
    %v372 = vld [vmem:[#allocation6 + $0x670] sm:$0xff]
    %v373 = vld [vmem:[#allocation6 + $0x678] sm:$0xff]
    %v374 = vld [vmem:[#allocation6 + $0x680] sm:$0xff]
    %v375 = vld [vmem:[#allocation6 + $0x688] sm:$0xff]
    %v376 = vld [vmem:[#allocation6 + $0x690] sm:$0xff]
    %v377 = vld [vmem:[#allocation6 + $0x698] sm:$0xff]
    %v378 = vld [vmem:[#allocation6 + $0x6a0] sm:$0xff]
    %v379 = vld [vmem:[#allocation6 + $0x6a8] sm:$0xff]
    %v380 = vld [vmem:[#allocation6 + $0x6b0] sm:$0xff]
    %v381 = vld [vmem:[#allocation6 + $0x6b8] sm:$0xff]
    %v382 = vld [vmem:[#allocation6 + $0x6c0] sm:$0xff]
    %v383 = vld [vmem:[#allocation6 + $0x6c8] sm:$0xff]
    %v384 = vld [vmem:[#allocation6 + $0x6d0] sm:$0xff]
    %v385 = vld [vmem:[#allocation6 + $0x6d8] sm:$0xff]
    %v386 = vld [vmem:[#allocation6 + $0x6e0] sm:$0xff]
    %v387 = vld [vmem:[#allocation6 + $0x6e8] sm:$0xff]
    %v388 = vld [vmem:[#allocation6 + $0x6f0] sm:$0xff]
    %v389 = vld [vmem:[#allocation6 + $0x6f8] sm:$0xff]
    %v390 = vld [vmem:[#allocation6 + $0x700] sm:$0xff]
    %v391 = vld [vmem:[#allocation6 + $0x708] sm:$0xff]
    %v392 = vld [vmem:[#allocation6 + $0x710] sm:$0xff]
    %v393 = vld [vmem:[#allocation6 + $0x718] sm:$0xff]
    %v394 = vld [vmem:[#allocation6 + $0x720] sm:$0xff]
    %v395 = vld [vmem:[#allocation6 + $0x728] sm:$0xff]
    %v396 = vld [vmem:[#allocation6 + $0x730] sm:$0xff]
    %v397 = vld [vmem:[#allocation6 + $0x738] sm:$0xff]
    %v398 = vld [vmem:[#allocation6 + $0x740] sm:$0xff]
    %v399 = vld [vmem:[#allocation6 + $0x748] sm:$0xff]
    %v400 = vld [vmem:[#allocation6 + $0x750] sm:$0xff]
    %v401 = vld [vmem:[#allocation6 + $0x758] sm:$0xff]
    %v402 = vld [vmem:[#allocation6 + $0x760] sm:$0xff]
    %v403 = vld [vmem:[#allocation6 + $0x768] sm:$0xff]
    %v404 = vld [vmem:[#allocation6 + $0x770] sm:$0xff]
    %v405 = vld [vmem:[#allocation6 + $0x778] sm:$0xff]
    %v406 = vld [vmem:[#allocation6 + $0x780] sm:$0xff]
    %v407 = vld [vmem:[#allocation6 + $0x788] sm:$0xff]
    %v408 = vld [vmem:[#allocation6 + $0x790] sm:$0xff]
    %v409 = vld [vmem:[#allocation6 + $0x798] sm:$0xff]
    %v410 = vld [vmem:[#allocation6 + $0x7a0] sm:$0xff]
    %v411 = vld [vmem:[#allocation6 + $0x7a8] sm:$0xff]
    %v412 = vld [vmem:[#allocation6 + $0x7b0] sm:$0xff]
    %v413 = vld [vmem:[#allocation6 + $0x7b8] sm:$0xff]
    %v414 = vld [vmem:[#allocation6 + $0x7c0] sm:$0xff]
    %v415 = vld [vmem:[#allocation6 + $0x7c8] sm:$0xff]
    %v416 = vld [vmem:[#allocation6 + $0x7d0] sm:$0xff]
    %v417 = vld [vmem:[#allocation6 + $0x7d8] sm:$0xff]
    %v418 = vld [vmem:[#allocation6 + $0x7e0] sm:$0xff]
    %v419 = vld [vmem:[#allocation6 + $0x7e8] sm:$0xff]
    %v420 = vld [vmem:[#allocation6 + $0x7f0] sm:$0xff]
    %v421 = vld [vmem:[#allocation6 + $0x7f8] sm:$0xff]
    %v422 = vld [vmem:[#allocation6 + $0x800] sm:$0xff]
    %v423 = vld [vmem:[#allocation6 + $0x808] sm:$0xff]
    %v424 = vld [vmem:[#allocation6 + $0x810] sm:$0xff]
    %v425 = vld [vmem:[#allocation6 + $0x818] sm:$0xff]
    %v426 = vld [vmem:[#allocation6 + $0x820] sm:$0xff]
    %v427 = vld [vmem:[#allocation6 + $0x828] sm:$0xff]
    %v428 = vld [vmem:[#allocation6 + $0x830] sm:$0xff]
    %v429 = vld [vmem:[#allocation6 + $0x838] sm:$0xff]
    %v430 = vld [vmem:[#allocation6 + $0x840] sm:$0xff]
    %v431 = vld [vmem:[#allocation6 + $0x848] sm:$0xff]
    %v432 = vld [vmem:[#allocation6 + $0x850] sm:$0xff]
    %v433 = vld [vmem:[#allocation6 + $0x858] sm:$0xff]
    %v434 = vld [vmem:[#allocation6 + $0x860] sm:$0xff]
    %v435 = vld [vmem:[#allocation6 + $0x868] sm:$0xff]
    %v436 = vld [vmem:[#allocation6 + $0x870] sm:$0xff]
    %v437 = vld [vmem:[#allocation6 + $0x878] sm:$0xff]
    %v438 = vld [vmem:[#allocation6 + $0x880] sm:$0xff]
    %v439 = vld [vmem:[#allocation6 + $0x888] sm:$0xff]
    %v440 = vld [vmem:[#allocation6 + $0x890] sm:$0xff]
    %v441 = vld [vmem:[#allocation6 + $0x898] sm:$0xff]
    %v442 = vld [vmem:[#allocation6 + $0x8a0] sm:$0xff]
    %v443 = vld [vmem:[#allocation6 + $0x8a8] sm:$0xff]
    %v444 = vld [vmem:[#allocation6 + $0x8b0] sm:$0xff]
    %v445 = vld [vmem:[#allocation6 + $0x8b8] sm:$0xff]
    %v446 = vld [vmem:[#allocation6 + $0x8c0] sm:$0xff]
    %v447 = vld [vmem:[#allocation6 + $0x8c8] sm:$0xff]
    %v448 = vld [vmem:[#allocation6 + $0x8d0] sm:$0xff]
    %v449 = vld [vmem:[#allocation6 + $0x8d8] sm:$0xff]
    %v450 = vld [vmem:[#allocation6 + $0x8e0] sm:$0xff]
    %v451 = vld [vmem:[#allocation6 + $0x8e8] sm:$0xff]
    %v452 = vld [vmem:[#allocation6 + $0x8f0] sm:$0xff]
    %v453 = vld [vmem:[#allocation6 + $0x8f8] sm:$0xff]
    %v454 = vld [vmem:[#allocation6 + $0x900] sm:$0xff]
    %v455 = vld [vmem:[#allocation6 + $0x908] sm:$0xff]
    %v456 = vld [vmem:[#allocation6 + $0x910] sm:$0xff]
    %v457 = vld [vmem:[#allocation6 + $0x918] sm:$0xff]
    %v458 = vld [vmem:[#allocation6 + $0x920] sm:$0xff]
    %v459 = vld [vmem:[#allocation6 + $0x928] sm:$0xff]
    %v460 = vld [vmem:[#allocation6 + $0x930] sm:$0xff]
    %v461 = vld [vmem:[#allocation6 + $0x938] sm:$0xff]
    %v462 = vld [vmem:[#allocation6 + $0x940] sm:$0xff]
    %v463 = vld [vmem:[#allocation6 + $0x948] sm:$0xff]
    %v464 = vld [vmem:[#allocation6 + $0x950] sm:$0xff]
    %v465 = vld [vmem:[#allocation6 + $0x958] sm:$0xff]
    %v466 = vld [vmem:[#allocation6 + $0x960] sm:$0xff]
    %v467 = vld [vmem:[#allocation6 + $0x968] sm:$0xff]
    %v468 = vld [vmem:[#allocation6 + $0x970] sm:$0xff]
    %v469 = vld [vmem:[#allocation6 + $0x978] sm:$0xff]
    %v470 = vld [vmem:[#allocation6 + $0x980] sm:$0xff]
    %v471 = vld [vmem:[#allocation6 + $0x988] sm:$0xff]
    %v472 = vld [vmem:[#allocation6 + $0x990] sm:$0xff]
    %v473 = vld [vmem:[#allocation6 + $0x998] sm:$0xff]
    %v474 = vld [vmem:[#allocation6 + $0x9a0] sm:$0xff]
    %v475 = vld [vmem:[#allocation6 + $0x9a8] sm:$0xff]
    %v476 = vld [vmem:[#allocation6 + $0x9b0] sm:$0xff]
    %v477 = vld [vmem:[#allocation6 + $0x9b8] sm:$0xff]
    %v478 = vld [vmem:[#allocation6 + $0x9c0] sm:$0xff]
    %v479 = vld [vmem:[#allocation6 + $0x9c8] sm:$0xff]
    %v480 = vld [vmem:[#allocation6 + $0x9d0] sm:$0xff]
    %v481 = vld [vmem:[#allocation6 + $0x9d8] sm:$0xff]
    %v482 = vld [vmem:[#allocation6 + $0x9e0] sm:$0xff]
    %v483 = vld [vmem:[#allocation6 + $0x9e8] sm:$0xff]
    %v484 = vld [vmem:[#allocation6 + $0x9f0] sm:$0xff]
    %v485 = vld [vmem:[#allocation6 + $0x9f8] sm:$0xff]
    %v486 = vld [vmem:[#allocation6 + $0xa00] sm:$0xff]
    %v487 = vld [vmem:[#allocation6 + $0xa08] sm:$0xff]
    %v488 = vld [vmem:[#allocation6 + $0xa10] sm:$0xff]
    %v489 = vld [vmem:[#allocation6 + $0xa18] sm:$0xff]
    %v490 = vld [vmem:[#allocation6 + $0xa20] sm:$0xff]
    %v491 = vld [vmem:[#allocation6 + $0xa28] sm:$0xff]
    %v492 = vld [vmem:[#allocation6 + $0xa30] sm:$0xff]
    %v493 = vld [vmem:[#allocation6 + $0xa38] sm:$0xff]
    %v494 = vld [vmem:[#allocation6 + $0xa40] sm:$0xff]
    %v495 = vld [vmem:[#allocation6 + $0xa48] sm:$0xff]
    %v496 = vld [vmem:[#allocation6 + $0xa50] sm:$0xff]
    %v497 = vld [vmem:[#allocation6 + $0xa58] sm:$0xff]
    %v498 = vld [vmem:[#allocation6 + $0xa60] sm:$0xff]
    %v499 = vld [vmem:[#allocation6 + $0xa68] sm:$0xff]
    %v500 = vld [vmem:[#allocation6 + $0xa70] sm:$0xff]
    %v501 = vld [vmem:[#allocation6 + $0xa78] sm:$0xff]
    %v502 = vld [vmem:[#allocation6 + $0xa80] sm:$0xff]
    %v503 = vld [vmem:[#allocation6 + $0xa88] sm:$0xff]
    %v504 = vld [vmem:[#allocation6 + $0xa90] sm:$0xff]
    %v505 = vld [vmem:[#allocation6 + $0xa98] sm:$0xff]
    %v506 = vld [vmem:[#allocation6 + $0xaa0] sm:$0xff]
    %v507 = vld [vmem:[#allocation6 + $0xaa8] sm:$0xff]
    %v508 = vld [vmem:[#allocation6 + $0xab0] sm:$0xff]
    %v509 = vld [vmem:[#allocation6 + $0xab8] sm:$0xff]
    %v510 = vld [vmem:[#allocation6 + $0xac0] sm:$0xff]
    %v511 = vld [vmem:[#allocation6 + $0xac8] sm:$0xff]
    %v512 = vld [vmem:[#allocation6 + $0xad0] sm:$0xff]
    %v513 = vld [vmem:[#allocation6 + $0xad8] sm:$0xff]
    %v514 = vld [vmem:[#allocation6 + $0xae0] sm:$0xff]
    %v515 = vld [vmem:[#allocation6 + $0xae8] sm:$0xff]
    %v516 = vld [vmem:[#allocation6 + $0xaf0] sm:$0xff]
    %v517 = vld [vmem:[#allocation6 + $0xaf8] sm:$0xff]
    %v518 = vld [vmem:[#allocation6 + $0xb00] sm:$0xff]
    %v519 = vld [vmem:[#allocation6 + $0xb08] sm:$0xff]
    %v520 = vld [vmem:[#allocation6 + $0xb10] sm:$0xff]
    %v521 = vld [vmem:[#allocation6 + $0xb18] sm:$0xff]
    %v522 = vld [vmem:[#allocation6 + $0xb20] sm:$0xff]
    %v523 = vld [vmem:[#allocation6 + $0xb28] sm:$0xff]
    %v524 = vld [vmem:[#allocation6 + $0xb30] sm:$0xff]
    %v525 = vld [vmem:[#allocation6 + $0xb38] sm:$0xff]
    %v526 = vld [vmem:[#allocation6 + $0xb40] sm:$0xff]
    %v527 = vld [vmem:[#allocation6 + $0xb48] sm:$0xff]
    %v528 = vld [vmem:[#allocation6 + $0xb50] sm:$0xff]
    %v529 = vld [vmem:[#allocation6 + $0xb58] sm:$0xff]
    %v530 = vld [vmem:[#allocation6 + $0xb60] sm:$0xff]
    %v531 = vld [vmem:[#allocation6 + $0xb68] sm:$0xff]
    %v532 = vld [vmem:[#allocation6 + $0xb70] sm:$0xff]
    %v533 = vld [vmem:[#allocation6 + $0xb78] sm:$0xff]
    %v534 = vld [vmem:[#allocation6 + $0xb80] sm:$0xff]
    %v535 = vld [vmem:[#allocation6 + $0xb88] sm:$0xff]
    %v536 = vld [vmem:[#allocation6 + $0xb90] sm:$0xff]
    %v537 = vld [vmem:[#allocation6 + $0xb98] sm:$0xff]
    %v538 = vld [vmem:[#allocation6 + $0xba0] sm:$0xff]
    %v539 = vld [vmem:[#allocation6 + $0xba8] sm:$0xff]
    %v540 = vld [vmem:[#allocation6 + $0xbb0] sm:$0xff]
    %v541 = vld [vmem:[#allocation6 + $0xbb8] sm:$0xff]
    %v542 = vld [vmem:[#allocation6 + $0xbc0] sm:$0xff]
    %v543 = vld [vmem:[#allocation6 + $0xbc8] sm:$0xff]
    %v544 = vld [vmem:[#allocation6 + $0xbd0] sm:$0xff]
    %v545 = vld [vmem:[#allocation6 + $0xbd8] sm:$0xff]
    %v546 = vld [vmem:[#allocation6 + $0xbe0] sm:$0xff]
    %v547 = vld [vmem:[#allocation6 + $0xbe8] sm:$0xff]
    %v548 = vld [vmem:[#allocation6 + $0xbf0] sm:$0xff]
    %v549 = vld [vmem:[#allocation6 + $0xbf8] sm:$0xff]
    %v550 = vld [vmem:[#allocation6 + $0xc00] sm:$0xff]
    %v551 = vld [vmem:[#allocation6 + $0xc08] sm:$0xff]
    %v552 = vld [vmem:[#allocation6 + $0xc10] sm:$0xff]
    %v553 = vld [vmem:[#allocation6 + $0xc18] sm:$0xff]
    %v554 = vld [vmem:[#allocation6 + $0xc20] sm:$0xff]
    %v555 = vld [vmem:[#allocation6 + $0xc28] sm:$0xff]
    %v556 = vld [vmem:[#allocation6 + $0xc30] sm:$0xff]
    %v557 = vld [vmem:[#allocation6 + $0xc38] sm:$0xff]
    %v558 = vld [vmem:[#allocation6 + $0xc40] sm:$0xff]
    %v559 = vld [vmem:[#allocation6 + $0xc48] sm:$0xff]
    %v560 = vld [vmem:[#allocation6 + $0xc50] sm:$0xff]
    %v561 = vld [vmem:[#allocation6 + $0xc58] sm:$0xff]
    %v562 = vld [vmem:[#allocation6 + $0xc60] sm:$0xff]
    %v563 = vld [vmem:[#allocation6 + $0xc68] sm:$0xff]
    %v564 = vld [vmem:[#allocation6 + $0xc70] sm:$0xff]
    %v565 = vld [vmem:[#allocation6 + $0xc78] sm:$0xff]
    %v566 = vld [vmem:[#allocation6 + $0xc80] sm:$0xff]
    %v567 = vld [vmem:[#allocation6 + $0xc88] sm:$0xff]
    %v568 = vld [vmem:[#allocation6 + $0xc90] sm:$0xff]
    %v569 = vld [vmem:[#allocation6 + $0xc98] sm:$0xff]
    %v570 = vld [vmem:[#allocation6 + $0xca0] sm:$0xff]
    %v571 = vld [vmem:[#allocation6 + $0xca8] sm:$0xff]
    %v572 = vld [vmem:[#allocation6 + $0xcb0] sm:$0xff]
    %v573 = vld [vmem:[#allocation6 + $0xcb8] sm:$0xff]
    %v574 = vld [vmem:[#allocation6 + $0xcc0] sm:$0xff]
    %v575 = vld [vmem:[#allocation6 + $0xcc8] sm:$0xff]
    %v576 = vld [vmem:[#allocation6 + $0xcd0] sm:$0xff]
    %v577 = vld [vmem:[#allocation6 + $0xcd8] sm:$0xff]
    %v578 = vld [vmem:[#allocation6 + $0xce0] sm:$0xff]
    %v579 = vld [vmem:[#allocation6 + $0xce8] sm:$0xff]
    %v580 = vld [vmem:[#allocation6 + $0xcf0] sm:$0xff]
    %v581 = vld [vmem:[#allocation6 + $0xcf8] sm:$0xff]
    %v582 = vld [vmem:[#allocation6 + $0xd00] sm:$0xff]
    %v583 = vld [vmem:[#allocation6 + $0xd08] sm:$0xff]
    %v584 = vld [vmem:[#allocation6 + $0xd10] sm:$0xff]
    %v585 = vld [vmem:[#allocation6 + $0xd18] sm:$0xff]
    %v586 = vld [vmem:[#allocation6 + $0xd20] sm:$0xff]
    %v587 = vld [vmem:[#allocation6 + $0xd28] sm:$0xff]
    %v588 = vld [vmem:[#allocation6 + $0xd30] sm:$0xff]
    %v589 = vld [vmem:[#allocation6 + $0xd38] sm:$0xff]
    %v590 = vld [vmem:[#allocation6 + $0xd40] sm:$0xff]
    %v591 = vld [vmem:[#allocation6 + $0xd48] sm:$0xff]
    %v592 = vld [vmem:[#allocation6 + $0xd50] sm:$0xff]
    %v593 = vld [vmem:[#allocation6 + $0xd58] sm:$0xff]
    %v594 = vld [vmem:[#allocation6 + $0xd60] sm:$0xff]
    %v595 = vld [vmem:[#allocation6 + $0xd68] sm:$0xff]
    %v596 = vld [vmem:[#allocation6 + $0xd70] sm:$0xff]
    %v597 = vld [vmem:[#allocation6 + $0xd78] sm:$0xff]
    %v598 = vld [vmem:[#allocation6 + $0xd80] sm:$0xff]
    %v599 = vld [vmem:[#allocation6 + $0xd88] sm:$0xff]
    %v600 = vld [vmem:[#allocation6 + $0xd90] sm:$0xff]
    %v601 = vld [vmem:[#allocation6 + $0xd98] sm:$0xff]
    %v602 = vld [vmem:[#allocation6 + $0xda0] sm:$0xff]
    %v603 = vld [vmem:[#allocation6 + $0xda8] sm:$0xff]
    %v604 = vld [vmem:[#allocation6 + $0xdb0] sm:$0xff]
    %v605 = vld [vmem:[#allocation6 + $0xdb8] sm:$0xff]
    %v606 = vld [vmem:[#allocation6 + $0xdc0] sm:$0xff]
    %v607 = vld [vmem:[#allocation6 + $0xdc8] sm:$0xff]
    %v608 = vld [vmem:[#allocation6 + $0xdd0] sm:$0xff]
    %v609 = vld [vmem:[#allocation6 + $0xdd8] sm:$0xff]
    %v610 = vld [vmem:[#allocation6 + $0xde0] sm:$0xff]
    %v611 = vld [vmem:[#allocation6 + $0xde8] sm:$0xff]
    %v612 = vld [vmem:[#allocation6 + $0xdf0] sm:$0xff]
    %v613 = vld [vmem:[#allocation6 + $0xdf8] sm:$0xff]
    %v614 = vld [vmem:[#allocation6 + $0xe00] sm:$0xff]
    %v615 = vld [vmem:[#allocation6 + $0xe08] sm:$0xff]
    %v616 = vld [vmem:[#allocation6 + $0xe10] sm:$0xff]
    %v617 = vld [vmem:[#allocation6 + $0xe18] sm:$0xff]
    %v618 = vld [vmem:[#allocation6 + $0xe20] sm:$0xff]
    %v619 = vld [vmem:[#allocation6 + $0xe28] sm:$0xff]
    %v620 = vld [vmem:[#allocation6 + $0xe30] sm:$0xff]
    %v621 = vld [vmem:[#allocation6 + $0xe38] sm:$0xff]
    %v622 = vld [vmem:[#allocation6 + $0xe40] sm:$0xff]
    %v623 = vld [vmem:[#allocation6 + $0xe48] sm:$0xff]
    %v624 = vld [vmem:[#allocation6 + $0xe50] sm:$0xff]
    %v625 = vld [vmem:[#allocation6 + $0xe58] sm:$0xff]
    %v626 = vld [vmem:[#allocation6 + $0xe60] sm:$0xff]
    %v627 = vld [vmem:[#allocation6 + $0xe68] sm:$0xff]
    %v628 = vld [vmem:[#allocation6 + $0xe70] sm:$0xff]
    %v629 = vld [vmem:[#allocation6 + $0xe78] sm:$0xff]
    %v630 = vld [vmem:[#allocation6 + $0xe80] sm:$0xff]
    %v631 = vld [vmem:[#allocation6 + $0xe88] sm:$0xff]
    %v632 = vld [vmem:[#allocation6 + $0xe90] sm:$0xff]
    %v633 = vld [vmem:[#allocation6 + $0xe98] sm:$0xff]
    %v634 = vld [vmem:[#allocation6 + $0xea0] sm:$0xff]
    %v635 = vld [vmem:[#allocation6 + $0xea8] sm:$0xff]
    %v636 = vld [vmem:[#allocation6 + $0xeb0] sm:$0xff]
    %v637 = vld [vmem:[#allocation6 + $0xeb8] sm:$0xff]
    %v638 = vld [vmem:[#allocation6 + $0xec0] sm:$0xff]
    %v639 = vld [vmem:[#allocation6 + $0xec8] sm:$0xff]
    %v640 = vld [vmem:[#allocation6 + $0xed0] sm:$0xff]
    %v641 = vld [vmem:[#allocation6 + $0xed8] sm:$0xff]
    %v642 = vld [vmem:[#allocation6 + $0xee0] sm:$0xff]
    %v643 = vld [vmem:[#allocation6 + $0xee8] sm:$0xff]
    %v644 = vld [vmem:[#allocation6 + $0xef0] sm:$0xff]
    %v645 = vld [vmem:[#allocation6 + $0xef8] sm:$0xff]
    %v646 = vld [vmem:[#allocation6 + $0xf00] sm:$0xff]
    %v647 = vld [vmem:[#allocation6 + $0xf08] sm:$0xff]
    %v648 = vld [vmem:[#allocation6 + $0xf10] sm:$0xff]
    %v649 = vld [vmem:[#allocation6 + $0xf18] sm:$0xff]
    %v650 = vld [vmem:[#allocation6 + $0xf20] sm:$0xff]
    %v651 = vld [vmem:[#allocation6 + $0xf28] sm:$0xff]
    %v652 = vld [vmem:[#allocation6 + $0xf30] sm:$0xff]
    %v653 = vld [vmem:[#allocation6 + $0xf38] sm:$0xff]
    %v654 = vld [vmem:[#allocation6 + $0xf40] sm:$0xff]
    %v655 = vld [vmem:[#allocation6 + $0xf48] sm:$0xff]
    %v656 = vld [vmem:[#allocation6 + $0xf50] sm:$0xff]
    %v657 = vld [vmem:[#allocation6 + $0xf58] sm:$0xff]
    %v658 = vld [vmem:[#allocation6 + $0xf60] sm:$0xff]
    %v659 = vld [vmem:[#allocation6 + $0xf68] sm:$0xff]
    %v660 = vld [vmem:[#allocation6 + $0xf70] sm:$0xff]
    %v661 = vld [vmem:[#allocation6 + $0xf78] sm:$0xff]
    %v662 = vld [vmem:[#allocation6 + $0xf80] sm:$0xff]
    %v663 = vld [vmem:[#allocation6 + $0xf88] sm:$0xff]
    %v664 = vld [vmem:[#allocation6 + $0xf90] sm:$0xff]
    %v665 = vld [vmem:[#allocation6 + $0xf98] sm:$0xff]
    %v666 = vld [vmem:[#allocation6 + $0xfa0] sm:$0xff]
    %v667 = vld [vmem:[#allocation6 + $0xfa8] sm:$0xff]
    %v668 = vld [vmem:[#allocation6 + $0xfb0] sm:$0xff]
    %v669 = vld [vmem:[#allocation6 + $0xfb8] sm:$0xff]
    %v670 = vld [vmem:[#allocation6 + $0xfc0] sm:$0xff]
    %v671 = vld [vmem:[#allocation6 + $0xfc8] sm:$0xff]
    %v672 = vld [vmem:[#allocation6 + $0xfd0] sm:$0xff]
    %v673 = vld [vmem:[#allocation6 + $0xfd8] sm:$0xff]
    %v674 = vld [vmem:[#allocation6 + $0xfe0] sm:$0xff]
    %v675 = vld [vmem:[#allocation6 + $0xfe8] sm:$0xff]
    %v676 = vld [vmem:[#allocation6 + $0xff0] sm:$0xff]
    %v677 = vld [vmem:[#allocation6 + $0xff8] sm:$0xff]
    %v678 = vld [vmem:[#allocation7] sm:$0x3]
    %v680 = vperm.slane %v678, 0
    %v681 = vperm.slane %v678, 1
    %v700 = vunpack.c.l.b16 %v150
    %v701 = vunpack.c.h.b16 %v150
    %v702 = vunpack.c.l.b16 %v151
    %v703 = vunpack.c.h.b16 %v151
    %v704 = vunpack.c.l.b16 %v152
    %v705 = vunpack.c.h.b16 %v152
    %v706 = vunpack.c.l.b16 %v153
    %v707 = vunpack.c.h.b16 %v153
    %v708 = vunpack.c.l.b16 %v154
    %v709 = vunpack.c.h.b16 %v154
    %v710 = vunpack.c.l.b16 %v155
    %v711 = vunpack.c.h.b16 %v155
    %v712 = vunpack.c.l.b16 %v156
    %v713 = vunpack.c.h.b16 %v156
    %v714 = vunpack.c.l.b16 %v157
    %v715 = vunpack.c.h.b16 %v157
    %v716 = vunpack.c.l.b16 %v158
    %v717 = vunpack.c.h.b16 %v158
    %v718 = vunpack.c.l.b16 %v159
    %v719 = vunpack.c.h.b16 %v159
    %v720 = vunpack.c.l.b16 %v160
    %v721 = vunpack.c.h.b16 %v160
    %v722 = vunpack.c.l.b16 %v161
    %v723 = vunpack.c.h.b16 %v161
    %v724 = vunpack.c.l.b16 %v162
    %v725 = vunpack.c.h.b16 %v162
    %v726 = vunpack.c.l.b16 %v163
    %v727 = vunpack.c.h.b16 %v163
    %v728 = vunpack.c.l.b16 %v164
    %v729 = vunpack.c.h.b16 %v164
    %v730 = vunpack.c.l.b16 %v165
    %v731 = vunpack.c.h.b16 %v165
    %v732 = vpack.c.b16 %v700, %v700
    %v733 = vpack.c.b16 %v701, %v701
    %v734 = vpack.c.b16 %v702, %v702
    %v735 = vpack.c.b16 %v703, %v703
    %v736 = vpack.c.b16 %v704, %v704
    %v737 = vpack.c.b16 %v705, %v705
    %v738 = vpack.c.b16 %v706, %v706
    %v739 = vpack.c.b16 %v707, %v707
    %v740 = vpack.c.b16 %v708, %v708
    %v741 = vpack.c.b16 %v709, %v709
    %v742 = vpack.c.b16 %v710, %v710
    %v743 = vpack.c.b16 %v711, %v711
    %v744 = vpack.c.b16 %v712, %v712
    %v745 = vpack.c.b16 %v713, %v713
    %v746 = vpack.c.b16 %v714, %v714
    %v747 = vpack.c.b16 %v715, %v715
    %v748 = vpack.c.b16 %v716, %v716
    %v749 = vpack.c.b16 %v717, %v717
    %v750 = vpack.c.b16 %v718, %v718
    %v751 = vpack.c.b16 %v719, %v719
    %v752 = vpack.c.b16 %v720, %v720
    %v753 = vpack.c.b16 %v721, %v721
    %v754 = vpack.c.b16 %v722, %v722
    %v755 = vpack.c.b16 %v723, %v723
    %v756 = vpack.c.b16 %v724, %v724
    %v757 = vpack.c.b16 %v725, %v725
    %v758 = vpack.c.b16 %v726, %v726
    %v759 = vpack.c.b16 %v727, %v727
    %v760 = vpack.c.b16 %v728, %v728
    %v761 = vpack.c.b16 %v729, %v729
    %v762 = vpack.c.b16 %v730, %v730
    %v763 = vpack.c.b16 %v731, %v731
    %v1308 = vunpack.c.l.b16 %v166
    %v1309 = vunpack.c.h.b16 %v166
    %v1310 = vunpack.c.l.b16 %v167
    %v1311 = vunpack.c.h.b16 %v167
    %v1312 = vunpack.c.l.b16 %v168
    %v1313 = vunpack.c.h.b16 %v168
    %v1314 = vunpack.c.l.b16 %v169
    %v1315 = vunpack.c.h.b16 %v169
    %v1316 = vunpack.c.l.b16 %v170
    %v1317 = vunpack.c.h.b16 %v170
    %v1318 = vunpack.c.l.b16 %v171
    %v1319 = vunpack.c.h.b16 %v171
    %v1320 = vunpack.c.l.b16 %v172
    %v1321 = vunpack.c.h.b16 %v172
    %v1322 = vunpack.c.l.b16 %v173
    %v1323 = vunpack.c.h.b16 %v173
    %v1324 = vunpack.c.l.b16 %v174
    %v1325 = vunpack.c.h.b16 %v174
    %v1326 = vunpack.c.l.b16 %v175
    %v1327 = vunpack.c.h.b16 %v175
    %v1328 = vunpack.c.l.b16 %v176
    %v1329 = vunpack.c.h.b16 %v176
    %v1330 = vunpack.c.l.b16 %v177
    %v1331 = vunpack.c.h.b16 %v177
    %v1332 = vunpack.c.l.b16 %v178
    %v1333 = vunpack.c.h.b16 %v178
    %v1334 = vunpack.c.l.b16 %v179
    %v1335 = vunpack.c.h.b16 %v179
    %v1336 = vunpack.c.l.b16 %v180
    %v1337 = vunpack.c.h.b16 %v180
    %v1338 = vunpack.c.l.b16 %v181
    %v1339 = vunpack.c.h.b16 %v181
    %v1340 = vunpack.c.l.b16 %v182
    %v1341 = vunpack.c.h.b16 %v182
    %v1342 = vunpack.c.l.b16 %v183
    %v1343 = vunpack.c.h.b16 %v183
    %v1344 = vunpack.c.l.b16 %v184
    %v1345 = vunpack.c.h.b16 %v184
    %v1346 = vunpack.c.l.b16 %v185
    %v1347 = vunpack.c.h.b16 %v185
    %v1348 = vunpack.c.l.b16 %v186
    %v1349 = vunpack.c.h.b16 %v186
    %v1350 = vunpack.c.l.b16 %v187
    %v1351 = vunpack.c.h.b16 %v187
    %v1352 = vunpack.c.l.b16 %v188
    %v1353 = vunpack.c.h.b16 %v188
    %v1354 = vunpack.c.l.b16 %v189
    %v1355 = vunpack.c.h.b16 %v189
    %v1356 = vunpack.c.l.b16 %v190
    %v1357 = vunpack.c.h.b16 %v190
    %v1358 = vunpack.c.l.b16 %v191
    %v1359 = vunpack.c.h.b16 %v191
    %v1360 = vunpack.c.l.b16 %v192
    %v1361 = vunpack.c.h.b16 %v192
    %v1362 = vunpack.c.l.b16 %v193
    %v1363 = vunpack.c.h.b16 %v193
    %v1364 = vunpack.c.l.b16 %v194
    %v1365 = vunpack.c.h.b16 %v194
    %v1366 = vunpack.c.l.b16 %v195
    %v1367 = vunpack.c.h.b16 %v195
    %v1368 = vunpack.c.l.b16 %v196
    %v1369 = vunpack.c.h.b16 %v196
    %v1370 = vunpack.c.l.b16 %v197
    %v1371 = vunpack.c.h.b16 %v197
    %v1372 = vunpack.c.l.b16 %v198
    %v1373 = vunpack.c.h.b16 %v198
    %v1374 = vunpack.c.l.b16 %v199
    %v1375 = vunpack.c.h.b16 %v199
    %v1376 = vunpack.c.l.b16 %v200
    %v1377 = vunpack.c.h.b16 %v200
    %v1378 = vunpack.c.l.b16 %v201
    %v1379 = vunpack.c.h.b16 %v201
    %v1380 = vunpack.c.l.b16 %v202
    %v1381 = vunpack.c.h.b16 %v202
    %v1382 = vunpack.c.l.b16 %v203
    %v1383 = vunpack.c.h.b16 %v203
    %v1384 = vunpack.c.l.b16 %v204
    %v1385 = vunpack.c.h.b16 %v204
    %v1386 = vunpack.c.l.b16 %v205
    %v1387 = vunpack.c.h.b16 %v205
    %v1388 = vunpack.c.l.b16 %v206
    %v1389 = vunpack.c.h.b16 %v206
    %v1390 = vunpack.c.l.b16 %v207
    %v1391 = vunpack.c.h.b16 %v207
    %v1392 = vunpack.c.l.b16 %v208
    %v1393 = vunpack.c.h.b16 %v208
    %v1394 = vunpack.c.l.b16 %v209
    %v1395 = vunpack.c.h.b16 %v209
    %v1396 = vunpack.c.l.b16 %v210
    %v1397 = vunpack.c.h.b16 %v210
    %v1398 = vunpack.c.l.b16 %v211
    %v1399 = vunpack.c.h.b16 %v211
    %v1400 = vunpack.c.l.b16 %v212
    %v1401 = vunpack.c.h.b16 %v212
    %v1402 = vunpack.c.l.b16 %v213
    %v1403 = vunpack.c.h.b16 %v213
    %v1404 = vunpack.c.l.b16 %v214
    %v1405 = vunpack.c.h.b16 %v214
    %v1406 = vunpack.c.l.b16 %v215
    %v1407 = vunpack.c.h.b16 %v215
    %v1408 = vunpack.c.l.b16 %v216
    %v1409 = vunpack.c.h.b16 %v216
    %v1410 = vunpack.c.l.b16 %v217
    %v1411 = vunpack.c.h.b16 %v217
    %v1412 = vunpack.c.l.b16 %v218
    %v1413 = vunpack.c.h.b16 %v218
    %v1414 = vunpack.c.l.b16 %v219
    %v1415 = vunpack.c.h.b16 %v219
    %v1416 = vunpack.c.l.b16 %v220
    %v1417 = vunpack.c.h.b16 %v220
    %v1418 = vunpack.c.l.b16 %v221
    %v1419 = vunpack.c.h.b16 %v221
    %v1420 = vunpack.c.l.b16 %v222
    %v1421 = vunpack.c.h.b16 %v222
    %v1422 = vunpack.c.l.b16 %v223
    %v1423 = vunpack.c.h.b16 %v223
    %v1424 = vunpack.c.l.b16 %v224
    %v1425 = vunpack.c.h.b16 %v224
    %v1426 = vunpack.c.l.b16 %v225
    %v1427 = vunpack.c.h.b16 %v225
    %v1428 = vunpack.c.l.b16 %v226
    %v1429 = vunpack.c.h.b16 %v226
    %v1430 = vunpack.c.l.b16 %v227
    %v1431 = vunpack.c.h.b16 %v227
    %v1432 = vunpack.c.l.b16 %v228
    %v1433 = vunpack.c.h.b16 %v228
    %v1434 = vunpack.c.l.b16 %v229
    %v1435 = vunpack.c.h.b16 %v229
    %v1436 = vunpack.c.l.b16 %v230
    %v1437 = vunpack.c.h.b16 %v230
    %v1438 = vunpack.c.l.b16 %v231
    %v1439 = vunpack.c.h.b16 %v231
    %v1440 = vunpack.c.l.b16 %v232
    %v1441 = vunpack.c.h.b16 %v232
    %v1442 = vunpack.c.l.b16 %v233
    %v1443 = vunpack.c.h.b16 %v233
    %v1444 = vunpack.c.l.b16 %v234
    %v1445 = vunpack.c.h.b16 %v234
    %v1446 = vunpack.c.l.b16 %v235
    %v1447 = vunpack.c.h.b16 %v235
    %v1448 = vunpack.c.l.b16 %v236
    %v1449 = vunpack.c.h.b16 %v236
    %v1450 = vunpack.c.l.b16 %v237
    %v1451 = vunpack.c.h.b16 %v237
    %v1452 = vunpack.c.l.b16 %v238
    %v1453 = vunpack.c.h.b16 %v238
    %v1454 = vunpack.c.l.b16 %v239
    %v1455 = vunpack.c.h.b16 %v239
    %v1456 = vunpack.c.l.b16 %v240
    %v1457 = vunpack.c.h.b16 %v240
    %v1458 = vunpack.c.l.b16 %v241
    %v1459 = vunpack.c.h.b16 %v241
    %v1460 = vunpack.c.l.b16 %v242
    %v1461 = vunpack.c.h.b16 %v242
    %v1462 = vunpack.c.l.b16 %v243
    %v1463 = vunpack.c.h.b16 %v243
    %v1464 = vunpack.c.l.b16 %v244
    %v1465 = vunpack.c.h.b16 %v244
    %v1466 = vunpack.c.l.b16 %v245
    %v1467 = vunpack.c.h.b16 %v245
    %v1468 = vunpack.c.l.b16 %v246
    %v1469 = vunpack.c.h.b16 %v246
    %v1470 = vunpack.c.l.b16 %v247
    %v1471 = vunpack.c.h.b16 %v247
    %v1472 = vunpack.c.l.b16 %v248
    %v1473 = vunpack.c.h.b16 %v248
    %v1474 = vunpack.c.l.b16 %v249
    %v1475 = vunpack.c.h.b16 %v249
    %v1476 = vunpack.c.l.b16 %v250
    %v1477 = vunpack.c.h.b16 %v250
    %v1478 = vunpack.c.l.b16 %v251
    %v1479 = vunpack.c.h.b16 %v251
    %v1480 = vunpack.c.l.b16 %v252
    %v1481 = vunpack.c.h.b16 %v252
    %v1482 = vunpack.c.l.b16 %v253
    %v1483 = vunpack.c.h.b16 %v253
    %v1484 = vunpack.c.l.b16 %v254
    %v1485 = vunpack.c.h.b16 %v254
    %v1486 = vunpack.c.l.b16 %v255
    %v1487 = vunpack.c.h.b16 %v255
    %v1488 = vunpack.c.l.b16 %v256
    %v1489 = vunpack.c.h.b16 %v256
    %v1490 = vunpack.c.l.b16 %v257
    %v1491 = vunpack.c.h.b16 %v257
    %v1492 = vunpack.c.l.b16 %v258
    %v1493 = vunpack.c.h.b16 %v258
    %v1494 = vunpack.c.l.b16 %v259
    %v1495 = vunpack.c.h.b16 %v259
    %v1496 = vunpack.c.l.b16 %v260
    %v1497 = vunpack.c.h.b16 %v260
    %v1498 = vunpack.c.l.b16 %v261
    %v1499 = vunpack.c.h.b16 %v261
    %v1500 = vunpack.c.l.b16 %v262
    %v1501 = vunpack.c.h.b16 %v262
    %v1502 = vunpack.c.l.b16 %v263
    %v1503 = vunpack.c.h.b16 %v263
    %v1504 = vunpack.c.l.b16 %v264
    %v1505 = vunpack.c.h.b16 %v264
    %v1506 = vunpack.c.l.b16 %v265
    %v1507 = vunpack.c.h.b16 %v265
    %v1508 = vunpack.c.l.b16 %v266
    %v1509 = vunpack.c.h.b16 %v266
    %v1510 = vunpack.c.l.b16 %v267
    %v1511 = vunpack.c.h.b16 %v267
    %v1512 = vunpack.c.l.b16 %v268
    %v1513 = vunpack.c.h.b16 %v268
    %v1514 = vunpack.c.l.b16 %v269
    %v1515 = vunpack.c.h.b16 %v269
    %v1516 = vunpack.c.l.b16 %v270
    %v1517 = vunpack.c.h.b16 %v270
    %v1518 = vunpack.c.l.b16 %v271
    %v1519 = vunpack.c.h.b16 %v271
    %v1520 = vunpack.c.l.b16 %v272
    %v1521 = vunpack.c.h.b16 %v272
    %v1522 = vunpack.c.l.b16 %v273
    %v1523 = vunpack.c.h.b16 %v273
    %v1524 = vunpack.c.l.b16 %v274
    %v1525 = vunpack.c.h.b16 %v274
    %v1526 = vunpack.c.l.b16 %v275
    %v1527 = vunpack.c.h.b16 %v275
    %v1528 = vunpack.c.l.b16 %v276
    %v1529 = vunpack.c.h.b16 %v276
    %v1530 = vunpack.c.l.b16 %v277
    %v1531 = vunpack.c.h.b16 %v277
    %v1532 = vunpack.c.l.b16 %v278
    %v1533 = vunpack.c.h.b16 %v278
    %v1534 = vunpack.c.l.b16 %v279
    %v1535 = vunpack.c.h.b16 %v279
    %v1536 = vunpack.c.l.b16 %v280
    %v1537 = vunpack.c.h.b16 %v280
    %v1538 = vunpack.c.l.b16 %v281
    %v1539 = vunpack.c.h.b16 %v281
    %v1540 = vunpack.c.l.b16 %v282
    %v1541 = vunpack.c.h.b16 %v282
    %v1542 = vunpack.c.l.b16 %v283
    %v1543 = vunpack.c.h.b16 %v283
    %v1544 = vunpack.c.l.b16 %v284
    %v1545 = vunpack.c.h.b16 %v284
    %v1546 = vunpack.c.l.b16 %v285
    %v1547 = vunpack.c.h.b16 %v285
    %v1548 = vunpack.c.l.b16 %v286
    %v1549 = vunpack.c.h.b16 %v286
    %v1550 = vunpack.c.l.b16 %v287
    %v1551 = vunpack.c.h.b16 %v287
    %v1552 = vunpack.c.l.b16 %v288
    %v1553 = vunpack.c.h.b16 %v288
    %v1554 = vunpack.c.l.b16 %v289
    %v1555 = vunpack.c.h.b16 %v289
    %v1556 = vunpack.c.l.b16 %v290
    %v1557 = vunpack.c.h.b16 %v290
    %v1558 = vunpack.c.l.b16 %v291
    %v1559 = vunpack.c.h.b16 %v291
    %v1560 = vunpack.c.l.b16 %v292
    %v1561 = vunpack.c.h.b16 %v292
    %v1562 = vunpack.c.l.b16 %v293
    %v1563 = vunpack.c.h.b16 %v293
    %v1564 = vunpack.c.l.b16 %v294
    %v1565 = vunpack.c.h.b16 %v294
    %v1566 = vunpack.c.l.b16 %v295
    %v1567 = vunpack.c.h.b16 %v295
    %v1568 = vunpack.c.l.b16 %v296
    %v1569 = vunpack.c.h.b16 %v296
    %v1570 = vunpack.c.l.b16 %v297
    %v1571 = vunpack.c.h.b16 %v297
    %v1572 = vunpack.c.l.b16 %v298
    %v1573 = vunpack.c.h.b16 %v298
    %v1574 = vunpack.c.l.b16 %v299
    %v1575 = vunpack.c.h.b16 %v299
    %v1576 = vunpack.c.l.b16 %v300
    %v1577 = vunpack.c.h.b16 %v300
    %v1578 = vunpack.c.l.b16 %v301
    %v1579 = vunpack.c.h.b16 %v301
    %v1580 = vunpack.c.l.b16 %v302
    %v1581 = vunpack.c.h.b16 %v302
    %v1582 = vunpack.c.l.b16 %v303
    %v1583 = vunpack.c.h.b16 %v303
    %v1584 = vunpack.c.l.b16 %v304
    %v1585 = vunpack.c.h.b16 %v304
    %v1586 = vunpack.c.l.b16 %v305
    %v1587 = vunpack.c.h.b16 %v305
    %v1588 = vunpack.c.l.b16 %v306
    %v1589 = vunpack.c.h.b16 %v306
    %v1590 = vunpack.c.l.b16 %v307
    %v1591 = vunpack.c.h.b16 %v307
    %v1592 = vunpack.c.l.b16 %v308
    %v1593 = vunpack.c.h.b16 %v308
    %v1594 = vunpack.c.l.b16 %v309
    %v1595 = vunpack.c.h.b16 %v309
    %v1596 = vunpack.c.l.b16 %v310
    %v1597 = vunpack.c.h.b16 %v310
    %v1598 = vunpack.c.l.b16 %v311
    %v1599 = vunpack.c.h.b16 %v311
    %v1600 = vunpack.c.l.b16 %v312
    %v1601 = vunpack.c.h.b16 %v312
    %v1602 = vunpack.c.l.b16 %v313
    %v1603 = vunpack.c.h.b16 %v313
    %v1604 = vunpack.c.l.b16 %v314
    %v1605 = vunpack.c.h.b16 %v314
    %v1606 = vunpack.c.l.b16 %v315
    %v1607 = vunpack.c.h.b16 %v315
    %v1608 = vunpack.c.l.b16 %v316
    %v1609 = vunpack.c.h.b16 %v316
    %v1610 = vunpack.c.l.b16 %v317
    %v1611 = vunpack.c.h.b16 %v317
    %v1612 = vunpack.c.l.b16 %v318
    %v1613 = vunpack.c.h.b16 %v318
    %v1614 = vunpack.c.l.b16 %v319
    %v1615 = vunpack.c.h.b16 %v319
    %v1616 = vunpack.c.l.b16 %v320
    %v1617 = vunpack.c.h.b16 %v320
    %v1618 = vunpack.c.l.b16 %v321
    %v1619 = vunpack.c.h.b16 %v321
    %v1620 = vunpack.c.l.b16 %v322
    %v1621 = vunpack.c.h.b16 %v322
    %v1622 = vunpack.c.l.b16 %v323
    %v1623 = vunpack.c.h.b16 %v323
    %v1624 = vunpack.c.l.b16 %v324
    %v1625 = vunpack.c.h.b16 %v324
    %v1626 = vunpack.c.l.b16 %v325
    %v1627 = vunpack.c.h.b16 %v325
    %v1628 = vunpack.c.l.b16 %v326
    %v1629 = vunpack.c.h.b16 %v326
    %v1630 = vunpack.c.l.b16 %v327
    %v1631 = vunpack.c.h.b16 %v327
    %v1632 = vunpack.c.l.b16 %v328
    %v1633 = vunpack.c.h.b16 %v328
    %v1634 = vunpack.c.l.b16 %v329
    %v1635 = vunpack.c.h.b16 %v329
    %v1636 = vunpack.c.l.b16 %v330
    %v1637 = vunpack.c.h.b16 %v330
    %v1638 = vunpack.c.l.b16 %v331
    %v1639 = vunpack.c.h.b16 %v331
    %v1640 = vunpack.c.l.b16 %v332
    %v1641 = vunpack.c.h.b16 %v332
    %v1642 = vunpack.c.l.b16 %v333
    %v1643 = vunpack.c.h.b16 %v333
    %v1644 = vunpack.c.l.b16 %v334
    %v1645 = vunpack.c.h.b16 %v334
    %v1646 = vunpack.c.l.b16 %v335
    %v1647 = vunpack.c.h.b16 %v335
    %v1648 = vunpack.c.l.b16 %v336
    %v1649 = vunpack.c.h.b16 %v336
    %v1650 = vunpack.c.l.b16 %v337
    %v1651 = vunpack.c.h.b16 %v337
    %v1652 = vunpack.c.l.b16 %v338
    %v1653 = vunpack.c.h.b16 %v338
    %v1654 = vunpack.c.l.b16 %v339
    %v1655 = vunpack.c.h.b16 %v339
    %v1656 = vunpack.c.l.b16 %v340
    %v1657 = vunpack.c.h.b16 %v340
    %v1658 = vunpack.c.l.b16 %v341
    %v1659 = vunpack.c.h.b16 %v341
    %v1660 = vunpack.c.l.b16 %v342
    %v1661 = vunpack.c.h.b16 %v342
    %v1662 = vunpack.c.l.b16 %v343
    %v1663 = vunpack.c.h.b16 %v343
    %v1664 = vunpack.c.l.b16 %v344
    %v1665 = vunpack.c.h.b16 %v344
    %v1666 = vunpack.c.l.b16 %v345
    %v1667 = vunpack.c.h.b16 %v345
    %v1668 = vunpack.c.l.b16 %v346
    %v1669 = vunpack.c.h.b16 %v346
    %v1670 = vunpack.c.l.b16 %v347
    %v1671 = vunpack.c.h.b16 %v347
    %v1672 = vunpack.c.l.b16 %v348
    %v1673 = vunpack.c.h.b16 %v348
    %v1674 = vunpack.c.l.b16 %v349
    %v1675 = vunpack.c.h.b16 %v349
    %v1676 = vunpack.c.l.b16 %v350
    %v1677 = vunpack.c.h.b16 %v350
    %v1678 = vunpack.c.l.b16 %v351
    %v1679 = vunpack.c.h.b16 %v351
    %v1680 = vunpack.c.l.b16 %v352
    %v1681 = vunpack.c.h.b16 %v352
    %v1682 = vunpack.c.l.b16 %v353
    %v1683 = vunpack.c.h.b16 %v353
    %v1684 = vunpack.c.l.b16 %v354
    %v1685 = vunpack.c.h.b16 %v354
    %v1686 = vunpack.c.l.b16 %v355
    %v1687 = vunpack.c.h.b16 %v355
    %v1688 = vunpack.c.l.b16 %v356
    %v1689 = vunpack.c.h.b16 %v356
    %v1690 = vunpack.c.l.b16 %v357
    %v1691 = vunpack.c.h.b16 %v357
    %v1692 = vunpack.c.l.b16 %v358
    %v1693 = vunpack.c.h.b16 %v358
    %v1694 = vunpack.c.l.b16 %v359
    %v1695 = vunpack.c.h.b16 %v359
    %v1696 = vunpack.c.l.b16 %v360
    %v1697 = vunpack.c.h.b16 %v360
    %v1698 = vunpack.c.l.b16 %v361
    %v1699 = vunpack.c.h.b16 %v361
    %v1700 = vunpack.c.l.b16 %v362
    %v1701 = vunpack.c.h.b16 %v362
    %v1702 = vunpack.c.l.b16 %v363
    %v1703 = vunpack.c.h.b16 %v363
    %v1704 = vunpack.c.l.b16 %v364
    %v1705 = vunpack.c.h.b16 %v364
    %v1706 = vunpack.c.l.b16 %v365
    %v1707 = vunpack.c.h.b16 %v365
    %v1708 = vunpack.c.l.b16 %v366
    %v1709 = vunpack.c.h.b16 %v366
    %v1710 = vunpack.c.l.b16 %v367
    %v1711 = vunpack.c.h.b16 %v367
    %v1712 = vunpack.c.l.b16 %v368
    %v1713 = vunpack.c.h.b16 %v368
    %v1714 = vunpack.c.l.b16 %v369
    %v1715 = vunpack.c.h.b16 %v369
    %v1716 = vunpack.c.l.b16 %v370
    %v1717 = vunpack.c.h.b16 %v370
    %v1718 = vunpack.c.l.b16 %v371
    %v1719 = vunpack.c.h.b16 %v371
    %v1720 = vunpack.c.l.b16 %v372
    %v1721 = vunpack.c.h.b16 %v372
    %v1722 = vunpack.c.l.b16 %v373
    %v1723 = vunpack.c.h.b16 %v373
    %v1724 = vunpack.c.l.b16 %v374
    %v1725 = vunpack.c.h.b16 %v374
    %v1726 = vunpack.c.l.b16 %v375
    %v1727 = vunpack.c.h.b16 %v375
    %v1728 = vunpack.c.l.b16 %v376
    %v1729 = vunpack.c.h.b16 %v376
    %v1730 = vunpack.c.l.b16 %v377
    %v1731 = vunpack.c.h.b16 %v377
    %v1732 = vunpack.c.l.b16 %v378
    %v1733 = vunpack.c.h.b16 %v378
    %v1734 = vunpack.c.l.b16 %v379
    %v1735 = vunpack.c.h.b16 %v379
    %v1736 = vunpack.c.l.b16 %v380
    %v1737 = vunpack.c.h.b16 %v380
    %v1738 = vunpack.c.l.b16 %v381
    %v1739 = vunpack.c.h.b16 %v381
    %v1740 = vunpack.c.l.b16 %v382
    %v1741 = vunpack.c.h.b16 %v382
    %v1742 = vunpack.c.l.b16 %v383
    %v1743 = vunpack.c.h.b16 %v383
    %v1744 = vunpack.c.l.b16 %v384
    %v1745 = vunpack.c.h.b16 %v384
    %v1746 = vunpack.c.l.b16 %v385
    %v1747 = vunpack.c.h.b16 %v385
    %v1748 = vunpack.c.l.b16 %v386
    %v1749 = vunpack.c.h.b16 %v386
    %v1750 = vunpack.c.l.b16 %v387
    %v1751 = vunpack.c.h.b16 %v387
    %v1752 = vunpack.c.l.b16 %v388
    %v1753 = vunpack.c.h.b16 %v388
    %v1754 = vunpack.c.l.b16 %v389
    %v1755 = vunpack.c.h.b16 %v389
    %v1756 = vunpack.c.l.b16 %v390
    %v1757 = vunpack.c.h.b16 %v390
    %v1758 = vunpack.c.l.b16 %v391
    %v1759 = vunpack.c.h.b16 %v391
    %v1760 = vunpack.c.l.b16 %v392
    %v1761 = vunpack.c.h.b16 %v392
    %v1762 = vunpack.c.l.b16 %v393
    %v1763 = vunpack.c.h.b16 %v393
    %v1764 = vunpack.c.l.b16 %v394
    %v1765 = vunpack.c.h.b16 %v394
    %v1766 = vunpack.c.l.b16 %v395
    %v1767 = vunpack.c.h.b16 %v395
    %v1768 = vunpack.c.l.b16 %v396
    %v1769 = vunpack.c.h.b16 %v396
    %v1770 = vunpack.c.l.b16 %v397
    %v1771 = vunpack.c.h.b16 %v397
    %v1772 = vunpack.c.l.b16 %v398
    %v1773 = vunpack.c.h.b16 %v398
    %v1774 = vunpack.c.l.b16 %v399
    %v1775 = vunpack.c.h.b16 %v399
    %v1776 = vunpack.c.l.b16 %v400
    %v1777 = vunpack.c.h.b16 %v400
    %v1778 = vunpack.c.l.b16 %v401
    %v1779 = vunpack.c.h.b16 %v401
    %v1780 = vunpack.c.l.b16 %v402
    %v1781 = vunpack.c.h.b16 %v402
    %v1782 = vunpack.c.l.b16 %v403
    %v1783 = vunpack.c.h.b16 %v403
    %v1784 = vunpack.c.l.b16 %v404
    %v1785 = vunpack.c.h.b16 %v404
    %v1786 = vunpack.c.l.b16 %v405
    %v1787 = vunpack.c.h.b16 %v405
    %v1788 = vunpack.c.l.b16 %v406
    %v1789 = vunpack.c.h.b16 %v406
    %v1790 = vunpack.c.l.b16 %v407
    %v1791 = vunpack.c.h.b16 %v407
    %v1792 = vunpack.c.l.b16 %v408
    %v1793 = vunpack.c.h.b16 %v408
    %v1794 = vunpack.c.l.b16 %v409
    %v1795 = vunpack.c.h.b16 %v409
    %v1796 = vunpack.c.l.b16 %v410
    %v1797 = vunpack.c.h.b16 %v410
    %v1798 = vunpack.c.l.b16 %v411
    %v1799 = vunpack.c.h.b16 %v411
    %v1800 = vunpack.c.l.b16 %v412
    %v1801 = vunpack.c.h.b16 %v412
    %v1802 = vunpack.c.l.b16 %v413
    %v1803 = vunpack.c.h.b16 %v413
    %v1804 = vunpack.c.l.b16 %v414
    %v1805 = vunpack.c.h.b16 %v414
    %v1806 = vunpack.c.l.b16 %v415
    %v1807 = vunpack.c.h.b16 %v415
    %v1808 = vunpack.c.l.b16 %v416
    %v1809 = vunpack.c.h.b16 %v416
    %v1810 = vunpack.c.l.b16 %v417
    %v1811 = vunpack.c.h.b16 %v417
    %v1812 = vunpack.c.l.b16 %v418
    %v1813 = vunpack.c.h.b16 %v418
    %v1814 = vunpack.c.l.b16 %v419
    %v1815 = vunpack.c.h.b16 %v419
    %v1816 = vunpack.c.l.b16 %v420
    %v1817 = vunpack.c.h.b16 %v420
    %v1818 = vunpack.c.l.b16 %v421
    %v1819 = vunpack.c.h.b16 %v421
    %v1820 = vunpack.c.l.b16 %v422
    %v1821 = vunpack.c.h.b16 %v422
    %v1822 = vunpack.c.l.b16 %v423
    %v1823 = vunpack.c.h.b16 %v423
    %v1824 = vunpack.c.l.b16 %v424
    %v1825 = vunpack.c.h.b16 %v424
    %v1826 = vunpack.c.l.b16 %v425
    %v1827 = vunpack.c.h.b16 %v425
    %v1828 = vunpack.c.l.b16 %v426
    %v1829 = vunpack.c.h.b16 %v426
    %v1830 = vunpack.c.l.b16 %v427
    %v1831 = vunpack.c.h.b16 %v427
    %v1832 = vunpack.c.l.b16 %v428
    %v1833 = vunpack.c.h.b16 %v428
    %v1834 = vunpack.c.l.b16 %v429
    %v1835 = vunpack.c.h.b16 %v429
    %v1836 = vunpack.c.l.b16 %v430
    %v1837 = vunpack.c.h.b16 %v430
    %v1838 = vunpack.c.l.b16 %v431
    %v1839 = vunpack.c.h.b16 %v431
    %v1840 = vunpack.c.l.b16 %v432
    %v1841 = vunpack.c.h.b16 %v432
    %v1842 = vunpack.c.l.b16 %v433
    %v1843 = vunpack.c.h.b16 %v433
    %v1844 = vunpack.c.l.b16 %v434
    %v1845 = vunpack.c.h.b16 %v434
    %v1846 = vunpack.c.l.b16 %v435
    %v1847 = vunpack.c.h.b16 %v435
    %v1848 = vunpack.c.l.b16 %v436
    %v1849 = vunpack.c.h.b16 %v436
    %v1850 = vunpack.c.l.b16 %v437
    %v1851 = vunpack.c.h.b16 %v437
    %v1852 = vunpack.c.l.b16 %v438
    %v1853 = vunpack.c.h.b16 %v438
    %v1854 = vunpack.c.l.b16 %v439
    %v1855 = vunpack.c.h.b16 %v439
    %v1856 = vunpack.c.l.b16 %v440
    %v1857 = vunpack.c.h.b16 %v440
    %v1858 = vunpack.c.l.b16 %v441
    %v1859 = vunpack.c.h.b16 %v441
    %v1860 = vunpack.c.l.b16 %v442
    %v1861 = vunpack.c.h.b16 %v442
    %v1862 = vunpack.c.l.b16 %v443
    %v1863 = vunpack.c.h.b16 %v443
    %v1864 = vunpack.c.l.b16 %v444
    %v1865 = vunpack.c.h.b16 %v444
    %v1866 = vunpack.c.l.b16 %v445
    %v1867 = vunpack.c.h.b16 %v445
    %v1868 = vunpack.c.l.b16 %v446
    %v1869 = vunpack.c.h.b16 %v446
    %v1870 = vunpack.c.l.b16 %v447
    %v1871 = vunpack.c.h.b16 %v447
    %v1872 = vunpack.c.l.b16 %v448
    %v1873 = vunpack.c.h.b16 %v448
    %v1874 = vunpack.c.l.b16 %v449
    %v1875 = vunpack.c.h.b16 %v449
    %v1876 = vunpack.c.l.b16 %v450
    %v1877 = vunpack.c.h.b16 %v450
    %v1878 = vunpack.c.l.b16 %v451
    %v1879 = vunpack.c.h.b16 %v451
    %v1880 = vunpack.c.l.b16 %v452
    %v1881 = vunpack.c.h.b16 %v452
    %v1882 = vunpack.c.l.b16 %v453
    %v1883 = vunpack.c.h.b16 %v453
    %v1884 = vunpack.c.l.b16 %v454
    %v1885 = vunpack.c.h.b16 %v454
    %v1886 = vunpack.c.l.b16 %v455
    %v1887 = vunpack.c.h.b16 %v455
    %v1888 = vunpack.c.l.b16 %v456
    %v1889 = vunpack.c.h.b16 %v456
    %v1890 = vunpack.c.l.b16 %v457
    %v1891 = vunpack.c.h.b16 %v457
    %v1892 = vunpack.c.l.b16 %v458
    %v1893 = vunpack.c.h.b16 %v458
    %v1894 = vunpack.c.l.b16 %v459
    %v1895 = vunpack.c.h.b16 %v459
    %v1896 = vunpack.c.l.b16 %v460
    %v1897 = vunpack.c.h.b16 %v460
    %v1898 = vunpack.c.l.b16 %v461
    %v1899 = vunpack.c.h.b16 %v461
    %v1900 = vunpack.c.l.b16 %v462
    %v1901 = vunpack.c.h.b16 %v462
    %v1902 = vunpack.c.l.b16 %v463
    %v1903 = vunpack.c.h.b16 %v463
    %v1904 = vunpack.c.l.b16 %v464
    %v1905 = vunpack.c.h.b16 %v464
    %v1906 = vunpack.c.l.b16 %v465
    %v1907 = vunpack.c.h.b16 %v465
    %v1908 = vunpack.c.l.b16 %v466
    %v1909 = vunpack.c.h.b16 %v466
    %v1910 = vunpack.c.l.b16 %v467
    %v1911 = vunpack.c.h.b16 %v467
    %v1912 = vunpack.c.l.b16 %v468
    %v1913 = vunpack.c.h.b16 %v468
    %v1914 = vunpack.c.l.b16 %v469
    %v1915 = vunpack.c.h.b16 %v469
    %v1916 = vunpack.c.l.b16 %v470
    %v1917 = vunpack.c.h.b16 %v470
    %v1918 = vunpack.c.l.b16 %v471
    %v1919 = vunpack.c.h.b16 %v471
    %v1920 = vunpack.c.l.b16 %v472
    %v1921 = vunpack.c.h.b16 %v472
    %v1922 = vunpack.c.l.b16 %v473
    %v1923 = vunpack.c.h.b16 %v473
    %v1924 = vunpack.c.l.b16 %v474
    %v1925 = vunpack.c.h.b16 %v474
    %v1926 = vunpack.c.l.b16 %v475
    %v1927 = vunpack.c.h.b16 %v475
    %v1928 = vunpack.c.l.b16 %v476
    %v1929 = vunpack.c.h.b16 %v476
    %v1930 = vunpack.c.l.b16 %v477
    %v1931 = vunpack.c.h.b16 %v477
    %v1932 = vunpack.c.l.b16 %v478
    %v1933 = vunpack.c.h.b16 %v478
    %v1934 = vunpack.c.l.b16 %v479
    %v1935 = vunpack.c.h.b16 %v479
    %v1936 = vunpack.c.l.b16 %v480
    %v1937 = vunpack.c.h.b16 %v480
    %v1938 = vunpack.c.l.b16 %v481
    %v1939 = vunpack.c.h.b16 %v481
    %v1940 = vunpack.c.l.b16 %v482
    %v1941 = vunpack.c.h.b16 %v482
    %v1942 = vunpack.c.l.b16 %v483
    %v1943 = vunpack.c.h.b16 %v483
    %v1944 = vunpack.c.l.b16 %v484
    %v1945 = vunpack.c.h.b16 %v484
    %v1946 = vunpack.c.l.b16 %v485
    %v1947 = vunpack.c.h.b16 %v485
    %v1948 = vunpack.c.l.b16 %v486
    %v1949 = vunpack.c.h.b16 %v486
    %v1950 = vunpack.c.l.b16 %v487
    %v1951 = vunpack.c.h.b16 %v487
    %v1952 = vunpack.c.l.b16 %v488
    %v1953 = vunpack.c.h.b16 %v488
    %v1954 = vunpack.c.l.b16 %v489
    %v1955 = vunpack.c.h.b16 %v489
    %v1956 = vunpack.c.l.b16 %v490
    %v1957 = vunpack.c.h.b16 %v490
    %v1958 = vunpack.c.l.b16 %v491
    %v1959 = vunpack.c.h.b16 %v491
    %v1960 = vunpack.c.l.b16 %v492
    %v1961 = vunpack.c.h.b16 %v492
    %v1962 = vunpack.c.l.b16 %v493
    %v1963 = vunpack.c.h.b16 %v493
    %v1964 = vunpack.c.l.b16 %v494
    %v1965 = vunpack.c.h.b16 %v494
    %v1966 = vunpack.c.l.b16 %v495
    %v1967 = vunpack.c.h.b16 %v495
    %v1968 = vunpack.c.l.b16 %v496
    %v1969 = vunpack.c.h.b16 %v496
    %v1970 = vunpack.c.l.b16 %v497
    %v1971 = vunpack.c.h.b16 %v497
    %v1972 = vunpack.c.l.b16 %v498
    %v1973 = vunpack.c.h.b16 %v498
    %v1974 = vunpack.c.l.b16 %v499
    %v1975 = vunpack.c.h.b16 %v499
    %v1976 = vunpack.c.l.b16 %v500
    %v1977 = vunpack.c.h.b16 %v500
    %v1978 = vunpack.c.l.b16 %v501
    %v1979 = vunpack.c.h.b16 %v501
    %v1980 = vunpack.c.l.b16 %v502
    %v1981 = vunpack.c.h.b16 %v502
    %v1982 = vunpack.c.l.b16 %v503
    %v1983 = vunpack.c.h.b16 %v503
    %v1984 = vunpack.c.l.b16 %v504
    %v1985 = vunpack.c.h.b16 %v504
    %v1986 = vunpack.c.l.b16 %v505
    %v1987 = vunpack.c.h.b16 %v505
    %v1988 = vunpack.c.l.b16 %v506
    %v1989 = vunpack.c.h.b16 %v506
    %v1990 = vunpack.c.l.b16 %v507
    %v1991 = vunpack.c.h.b16 %v507
    %v1992 = vunpack.c.l.b16 %v508
    %v1993 = vunpack.c.h.b16 %v508
    %v1994 = vunpack.c.l.b16 %v509
    %v1995 = vunpack.c.h.b16 %v509
    %v1996 = vunpack.c.l.b16 %v510
    %v1997 = vunpack.c.h.b16 %v510
    %v1998 = vunpack.c.l.b16 %v511
    %v1999 = vunpack.c.h.b16 %v511
    %v2000 = vunpack.c.l.b16 %v512
    %v2001 = vunpack.c.h.b16 %v512
    %v2002 = vunpack.c.l.b16 %v513
    %v2003 = vunpack.c.h.b16 %v513
    %v2004 = vunpack.c.l.b16 %v514
    %v2005 = vunpack.c.h.b16 %v514
    %v2006 = vunpack.c.l.b16 %v515
    %v2007 = vunpack.c.h.b16 %v515
    %v2008 = vunpack.c.l.b16 %v516
    %v2009 = vunpack.c.h.b16 %v516
    %v2010 = vunpack.c.l.b16 %v517
    %v2011 = vunpack.c.h.b16 %v517
    %v2012 = vunpack.c.l.b16 %v518
    %v2013 = vunpack.c.h.b16 %v518
    %v2014 = vunpack.c.l.b16 %v519
    %v2015 = vunpack.c.h.b16 %v519
    %v2016 = vunpack.c.l.b16 %v520
    %v2017 = vunpack.c.h.b16 %v520
    %v2018 = vunpack.c.l.b16 %v521
    %v2019 = vunpack.c.h.b16 %v521
    %v2020 = vunpack.c.l.b16 %v522
    %v2021 = vunpack.c.h.b16 %v522
    %v2022 = vunpack.c.l.b16 %v523
    %v2023 = vunpack.c.h.b16 %v523
    %v2024 = vunpack.c.l.b16 %v524
    %v2025 = vunpack.c.h.b16 %v524
    %v2026 = vunpack.c.l.b16 %v525
    %v2027 = vunpack.c.h.b16 %v525
    %v2028 = vunpack.c.l.b16 %v526
    %v2029 = vunpack.c.h.b16 %v526
    %v2030 = vunpack.c.l.b16 %v527
    %v2031 = vunpack.c.h.b16 %v527
    %v2032 = vunpack.c.l.b16 %v528
    %v2033 = vunpack.c.h.b16 %v528
    %v2034 = vunpack.c.l.b16 %v529
    %v2035 = vunpack.c.h.b16 %v529
    %v2036 = vunpack.c.l.b16 %v530
    %v2037 = vunpack.c.h.b16 %v530
    %v2038 = vunpack.c.l.b16 %v531
    %v2039 = vunpack.c.h.b16 %v531
    %v2040 = vunpack.c.l.b16 %v532
    %v2041 = vunpack.c.h.b16 %v532
    %v2042 = vunpack.c.l.b16 %v533
    %v2043 = vunpack.c.h.b16 %v533
    %v2044 = vunpack.c.l.b16 %v534
    %v2045 = vunpack.c.h.b16 %v534
    %v2046 = vunpack.c.l.b16 %v535
    %v2047 = vunpack.c.h.b16 %v535
    %v2048 = vunpack.c.l.b16 %v536
    %v2049 = vunpack.c.h.b16 %v536
    %v2050 = vunpack.c.l.b16 %v537
    %v2051 = vunpack.c.h.b16 %v537
    %v2052 = vunpack.c.l.b16 %v538
    %v2053 = vunpack.c.h.b16 %v538
    %v2054 = vunpack.c.l.b16 %v539
    %v2055 = vunpack.c.h.b16 %v539
    %v2056 = vunpack.c.l.b16 %v540
    %v2057 = vunpack.c.h.b16 %v540
    %v2058 = vunpack.c.l.b16 %v541
    %v2059 = vunpack.c.h.b16 %v541
    %v2060 = vunpack.c.l.b16 %v542
    %v2061 = vunpack.c.h.b16 %v542
    %v2062 = vunpack.c.l.b16 %v543
    %v2063 = vunpack.c.h.b16 %v543
    %v2064 = vunpack.c.l.b16 %v544
    %v2065 = vunpack.c.h.b16 %v544
    %v2066 = vunpack.c.l.b16 %v545
    %v2067 = vunpack.c.h.b16 %v545
    %v2068 = vunpack.c.l.b16 %v546
    %v2069 = vunpack.c.h.b16 %v546
    %v2070 = vunpack.c.l.b16 %v547
    %v2071 = vunpack.c.h.b16 %v547
    %v2072 = vunpack.c.l.b16 %v548
    %v2073 = vunpack.c.h.b16 %v548
    %v2074 = vunpack.c.l.b16 %v549
    %v2075 = vunpack.c.h.b16 %v549
    %v2076 = vunpack.c.l.b16 %v550
    %v2077 = vunpack.c.h.b16 %v550
    %v2078 = vunpack.c.l.b16 %v551
    %v2079 = vunpack.c.h.b16 %v551
    %v2080 = vunpack.c.l.b16 %v552
    %v2081 = vunpack.c.h.b16 %v552
    %v2082 = vunpack.c.l.b16 %v553
    %v2083 = vunpack.c.h.b16 %v553
    %v2084 = vunpack.c.l.b16 %v554
    %v2085 = vunpack.c.h.b16 %v554
    %v2086 = vunpack.c.l.b16 %v555
    %v2087 = vunpack.c.h.b16 %v555
    %v2088 = vunpack.c.l.b16 %v556
    %v2089 = vunpack.c.h.b16 %v556
    %v2090 = vunpack.c.l.b16 %v557
    %v2091 = vunpack.c.h.b16 %v557
    %v2092 = vunpack.c.l.b16 %v558
    %v2093 = vunpack.c.h.b16 %v558
    %v2094 = vunpack.c.l.b16 %v559
    %v2095 = vunpack.c.h.b16 %v559
    %v2096 = vunpack.c.l.b16 %v560
    %v2097 = vunpack.c.h.b16 %v560
    %v2098 = vunpack.c.l.b16 %v561
    %v2099 = vunpack.c.h.b16 %v561
    %v2100 = vunpack.c.l.b16 %v562
    %v2101 = vunpack.c.h.b16 %v562
    %v2102 = vunpack.c.l.b16 %v563
    %v2103 = vunpack.c.h.b16 %v563
    %v2104 = vunpack.c.l.b16 %v564
    %v2105 = vunpack.c.h.b16 %v564
    %v2106 = vunpack.c.l.b16 %v565
    %v2107 = vunpack.c.h.b16 %v565
    %v2108 = vunpack.c.l.b16 %v566
    %v2109 = vunpack.c.h.b16 %v566
    %v2110 = vunpack.c.l.b16 %v567
    %v2111 = vunpack.c.h.b16 %v567
    %v2112 = vunpack.c.l.b16 %v568
    %v2113 = vunpack.c.h.b16 %v568
    %v2114 = vunpack.c.l.b16 %v569
    %v2115 = vunpack.c.h.b16 %v569
    %v2116 = vunpack.c.l.b16 %v570
    %v2117 = vunpack.c.h.b16 %v570
    %v2118 = vunpack.c.l.b16 %v571
    %v2119 = vunpack.c.h.b16 %v571
    %v2120 = vunpack.c.l.b16 %v572
    %v2121 = vunpack.c.h.b16 %v572
    %v2122 = vunpack.c.l.b16 %v573
    %v2123 = vunpack.c.h.b16 %v573
    %v2124 = vunpack.c.l.b16 %v574
    %v2125 = vunpack.c.h.b16 %v574
    %v2126 = vunpack.c.l.b16 %v575
    %v2127 = vunpack.c.h.b16 %v575
    %v2128 = vunpack.c.l.b16 %v576
    %v2129 = vunpack.c.h.b16 %v576
    %v2130 = vunpack.c.l.b16 %v577
    %v2131 = vunpack.c.h.b16 %v577
    %v2132 = vunpack.c.l.b16 %v578
    %v2133 = vunpack.c.h.b16 %v578
    %v2134 = vunpack.c.l.b16 %v579
    %v2135 = vunpack.c.h.b16 %v579
    %v2136 = vunpack.c.l.b16 %v580
    %v2137 = vunpack.c.h.b16 %v580
    %v2138 = vunpack.c.l.b16 %v581
    %v2139 = vunpack.c.h.b16 %v581
    %v2140 = vunpack.c.l.b16 %v582
    %v2141 = vunpack.c.h.b16 %v582
    %v2142 = vunpack.c.l.b16 %v583
    %v2143 = vunpack.c.h.b16 %v583
    %v2144 = vunpack.c.l.b16 %v584
    %v2145 = vunpack.c.h.b16 %v584
    %v2146 = vunpack.c.l.b16 %v585
    %v2147 = vunpack.c.h.b16 %v585
    %v2148 = vunpack.c.l.b16 %v586
    %v2149 = vunpack.c.h.b16 %v586
    %v2150 = vunpack.c.l.b16 %v587
    %v2151 = vunpack.c.h.b16 %v587
    %v2152 = vunpack.c.l.b16 %v588
    %v2153 = vunpack.c.h.b16 %v588
    %v2154 = vunpack.c.l.b16 %v589
    %v2155 = vunpack.c.h.b16 %v589
    %v2156 = vunpack.c.l.b16 %v590
    %v2157 = vunpack.c.h.b16 %v590
    %v2158 = vunpack.c.l.b16 %v591
    %v2159 = vunpack.c.h.b16 %v591
    %v2160 = vunpack.c.l.b16 %v592
    %v2161 = vunpack.c.h.b16 %v592
    %v2162 = vunpack.c.l.b16 %v593
    %v2163 = vunpack.c.h.b16 %v593
    %v2164 = vunpack.c.l.b16 %v594
    %v2165 = vunpack.c.h.b16 %v594
    %v2166 = vunpack.c.l.b16 %v595
    %v2167 = vunpack.c.h.b16 %v595
    %v2168 = vunpack.c.l.b16 %v596
    %v2169 = vunpack.c.h.b16 %v596
    %v2170 = vunpack.c.l.b16 %v597
    %v2171 = vunpack.c.h.b16 %v597
    %v2172 = vunpack.c.l.b16 %v598
    %v2173 = vunpack.c.h.b16 %v598
    %v2174 = vunpack.c.l.b16 %v599
    %v2175 = vunpack.c.h.b16 %v599
    %v2176 = vunpack.c.l.b16 %v600
    %v2177 = vunpack.c.h.b16 %v600
    %v2178 = vunpack.c.l.b16 %v601
    %v2179 = vunpack.c.h.b16 %v601
    %v2180 = vunpack.c.l.b16 %v602
    %v2181 = vunpack.c.h.b16 %v602
    %v2182 = vunpack.c.l.b16 %v603
    %v2183 = vunpack.c.h.b16 %v603
    %v2184 = vunpack.c.l.b16 %v604
    %v2185 = vunpack.c.h.b16 %v604
    %v2186 = vunpack.c.l.b16 %v605
    %v2187 = vunpack.c.h.b16 %v605
    %v2188 = vunpack.c.l.b16 %v606
    %v2189 = vunpack.c.h.b16 %v606
    %v2190 = vunpack.c.l.b16 %v607
    %v2191 = vunpack.c.h.b16 %v607
    %v2192 = vunpack.c.l.b16 %v608
    %v2193 = vunpack.c.h.b16 %v608
    %v2194 = vunpack.c.l.b16 %v609
    %v2195 = vunpack.c.h.b16 %v609
    %v2196 = vunpack.c.l.b16 %v610
    %v2197 = vunpack.c.h.b16 %v610
    %v2198 = vunpack.c.l.b16 %v611
    %v2199 = vunpack.c.h.b16 %v611
    %v2200 = vunpack.c.l.b16 %v612
    %v2201 = vunpack.c.h.b16 %v612
    %v2202 = vunpack.c.l.b16 %v613
    %v2203 = vunpack.c.h.b16 %v613
    %v2204 = vunpack.c.l.b16 %v614
    %v2205 = vunpack.c.h.b16 %v614
    %v2206 = vunpack.c.l.b16 %v615
    %v2207 = vunpack.c.h.b16 %v615
    %v2208 = vunpack.c.l.b16 %v616
    %v2209 = vunpack.c.h.b16 %v616
    %v2210 = vunpack.c.l.b16 %v617
    %v2211 = vunpack.c.h.b16 %v617
    %v2212 = vunpack.c.l.b16 %v618
    %v2213 = vunpack.c.h.b16 %v618
    %v2214 = vunpack.c.l.b16 %v619
    %v2215 = vunpack.c.h.b16 %v619
    %v2216 = vunpack.c.l.b16 %v620
    %v2217 = vunpack.c.h.b16 %v620
    %v2218 = vunpack.c.l.b16 %v621
    %v2219 = vunpack.c.h.b16 %v621
    %v2220 = vunpack.c.l.b16 %v622
    %v2221 = vunpack.c.h.b16 %v622
    %v2222 = vunpack.c.l.b16 %v623
    %v2223 = vunpack.c.h.b16 %v623
    %v2224 = vunpack.c.l.b16 %v624
    %v2225 = vunpack.c.h.b16 %v624
    %v2226 = vunpack.c.l.b16 %v625
    %v2227 = vunpack.c.h.b16 %v625
    %v2228 = vunpack.c.l.b16 %v626
    %v2229 = vunpack.c.h.b16 %v626
    %v2230 = vunpack.c.l.b16 %v627
    %v2231 = vunpack.c.h.b16 %v627
    %v2232 = vunpack.c.l.b16 %v628
    %v2233 = vunpack.c.h.b16 %v628
    %v2234 = vunpack.c.l.b16 %v629
    %v2235 = vunpack.c.h.b16 %v629
    %v2236 = vunpack.c.l.b16 %v630
    %v2237 = vunpack.c.h.b16 %v630
    %v2238 = vunpack.c.l.b16 %v631
    %v2239 = vunpack.c.h.b16 %v631
    %v2240 = vunpack.c.l.b16 %v632
    %v2241 = vunpack.c.h.b16 %v632
    %v2242 = vunpack.c.l.b16 %v633
    %v2243 = vunpack.c.h.b16 %v633
    %v2244 = vunpack.c.l.b16 %v634
    %v2245 = vunpack.c.h.b16 %v634
    %v2246 = vunpack.c.l.b16 %v635
    %v2247 = vunpack.c.h.b16 %v635
    %v2248 = vunpack.c.l.b16 %v636
    %v2249 = vunpack.c.h.b16 %v636
    %v2250 = vunpack.c.l.b16 %v637
    %v2251 = vunpack.c.h.b16 %v637
    %v2252 = vunpack.c.l.b16 %v638
    %v2253 = vunpack.c.h.b16 %v638
    %v2254 = vunpack.c.l.b16 %v639
    %v2255 = vunpack.c.h.b16 %v639
    %v2256 = vunpack.c.l.b16 %v640
    %v2257 = vunpack.c.h.b16 %v640
    %v2258 = vunpack.c.l.b16 %v641
    %v2259 = vunpack.c.h.b16 %v641
    %v2260 = vunpack.c.l.b16 %v642
    %v2261 = vunpack.c.h.b16 %v642
    %v2262 = vunpack.c.l.b16 %v643
    %v2263 = vunpack.c.h.b16 %v643
    %v2264 = vunpack.c.l.b16 %v644
    %v2265 = vunpack.c.h.b16 %v644
    %v2266 = vunpack.c.l.b16 %v645
    %v2267 = vunpack.c.h.b16 %v645
    %v2268 = vunpack.c.l.b16 %v646
    %v2269 = vunpack.c.h.b16 %v646
    %v2270 = vunpack.c.l.b16 %v647
    %v2271 = vunpack.c.h.b16 %v647
    %v2272 = vunpack.c.l.b16 %v648
    %v2273 = vunpack.c.h.b16 %v648
    %v2274 = vunpack.c.l.b16 %v649
    %v2275 = vunpack.c.h.b16 %v649
    %v2276 = vunpack.c.l.b16 %v650
    %v2277 = vunpack.c.h.b16 %v650
    %v2278 = vunpack.c.l.b16 %v651
    %v2279 = vunpack.c.h.b16 %v651
    %v2280 = vunpack.c.l.b16 %v652
    %v2281 = vunpack.c.h.b16 %v652
    %v2282 = vunpack.c.l.b16 %v653
    %v2283 = vunpack.c.h.b16 %v653
    %v2284 = vunpack.c.l.b16 %v654
    %v2285 = vunpack.c.h.b16 %v654
    %v2286 = vunpack.c.l.b16 %v655
    %v2287 = vunpack.c.h.b16 %v655
    %v2288 = vunpack.c.l.b16 %v656
    %v2289 = vunpack.c.h.b16 %v656
    %v2290 = vunpack.c.l.b16 %v657
    %v2291 = vunpack.c.h.b16 %v657
    %v2292 = vunpack.c.l.b16 %v658
    %v2293 = vunpack.c.h.b16 %v658
    %v2294 = vunpack.c.l.b16 %v659
    %v2295 = vunpack.c.h.b16 %v659
    %v2296 = vunpack.c.l.b16 %v660
    %v2297 = vunpack.c.h.b16 %v660
    %v2298 = vunpack.c.l.b16 %v661
    %v2299 = vunpack.c.h.b16 %v661
    %v2300 = vunpack.c.l.b16 %v662
    %v2301 = vunpack.c.h.b16 %v662
    %v2302 = vunpack.c.l.b16 %v663
    %v2303 = vunpack.c.h.b16 %v663
    %v2304 = vunpack.c.l.b16 %v664
    %v2305 = vunpack.c.h.b16 %v664
    %v2306 = vunpack.c.l.b16 %v665
    %v2307 = vunpack.c.h.b16 %v665
    %v2308 = vunpack.c.l.b16 %v666
    %v2309 = vunpack.c.h.b16 %v666
    %v2310 = vunpack.c.l.b16 %v667
    %v2311 = vunpack.c.h.b16 %v667
    %v2312 = vunpack.c.l.b16 %v668
    %v2313 = vunpack.c.h.b16 %v668
    %v2314 = vunpack.c.l.b16 %v669
    %v2315 = vunpack.c.h.b16 %v669
    %v2316 = vunpack.c.l.b16 %v670
    %v2317 = vunpack.c.h.b16 %v670
    %v2318 = vunpack.c.l.b16 %v671
    %v2319 = vunpack.c.h.b16 %v671
    %v2320 = vunpack.c.l.b16 %v672
    %v2321 = vunpack.c.h.b16 %v672
    %v2322 = vunpack.c.l.b16 %v673
    %v2323 = vunpack.c.h.b16 %v673
    %v2324 = vunpack.c.l.b16 %v674
    %v2325 = vunpack.c.h.b16 %v674
    %v2326 = vunpack.c.l.b16 %v675
    %v2327 = vunpack.c.h.b16 %v675
    %v2328 = vunpack.c.l.b16 %v676
    %v2329 = vunpack.c.h.b16 %v676
    %v2330 = vunpack.c.l.b16 %v677
    %v2331 = vunpack.c.h.b16 %v677
    %v2332 = vpack.c.b16 %v1310, %v1308
    %v2333 = vpack.c.b16 %v1311, %v1309
    %v2334 = vpack.c.b16 %v1314, %v1312
    %v2335 = vpack.c.b16 %v1315, %v1313
    %v2336 = vpack.c.b16 %v1318, %v1316
    %v2337 = vpack.c.b16 %v1319, %v1317
    %v2338 = vpack.c.b16 %v1322, %v1320
    %v2339 = vpack.c.b16 %v1323, %v1321
    %v2340 = vpack.c.b16 %v1326, %v1324
    %v2341 = vpack.c.b16 %v1327, %v1325
    %v2342 = vpack.c.b16 %v1330, %v1328
    %v2343 = vpack.c.b16 %v1331, %v1329
    %v2344 = vpack.c.b16 %v1334, %v1332
    %v2345 = vpack.c.b16 %v1335, %v1333
    %v2346 = vpack.c.b16 %v1338, %v1336
    %v2347 = vpack.c.b16 %v1339, %v1337
    %v2348 = vpack.c.b16 %v1342, %v1340
    %v2349 = vpack.c.b16 %v1343, %v1341
    %v2350 = vpack.c.b16 %v1346, %v1344
    %v2351 = vpack.c.b16 %v1347, %v1345
    %v2352 = vpack.c.b16 %v1350, %v1348
    %v2353 = vpack.c.b16 %v1351, %v1349
    %v2354 = vpack.c.b16 %v1354, %v1352
    %v2355 = vpack.c.b16 %v1355, %v1353
    %v2356 = vpack.c.b16 %v1358, %v1356
    %v2357 = vpack.c.b16 %v1359, %v1357
    %v2358 = vpack.c.b16 %v1362, %v1360
    %v2359 = vpack.c.b16 %v1363, %v1361
    %v2360 = vpack.c.b16 %v1366, %v1364
    %v2361 = vpack.c.b16 %v1367, %v1365
    %v2362 = vpack.c.b16 %v1370, %v1368
    %v2363 = vpack.c.b16 %v1371, %v1369
    %v2364 = vpack.c.b16 %v1374, %v1372
    %v2365 = vpack.c.b16 %v1375, %v1373
    %v2366 = vpack.c.b16 %v1378, %v1376
    %v2367 = vpack.c.b16 %v1379, %v1377
    %v2368 = vpack.c.b16 %v1382, %v1380
    %v2369 = vpack.c.b16 %v1383, %v1381
    %v2370 = vpack.c.b16 %v1386, %v1384
    %v2371 = vpack.c.b16 %v1387, %v1385
    %v2372 = vpack.c.b16 %v1390, %v1388
    %v2373 = vpack.c.b16 %v1391, %v1389
    %v2374 = vpack.c.b16 %v1394, %v1392
    %v2375 = vpack.c.b16 %v1395, %v1393
    %v2376 = vpack.c.b16 %v1398, %v1396
    %v2377 = vpack.c.b16 %v1399, %v1397
    %v2378 = vpack.c.b16 %v1402, %v1400
    %v2379 = vpack.c.b16 %v1403, %v1401
    %v2380 = vpack.c.b16 %v1406, %v1404
    %v2381 = vpack.c.b16 %v1407, %v1405
    %v2382 = vpack.c.b16 %v1410, %v1408
    %v2383 = vpack.c.b16 %v1411, %v1409
    %v2384 = vpack.c.b16 %v1414, %v1412
    %v2385 = vpack.c.b16 %v1415, %v1413
    %v2386 = vpack.c.b16 %v1418, %v1416
    %v2387 = vpack.c.b16 %v1419, %v1417
    %v2388 = vpack.c.b16 %v1422, %v1420
    %v2389 = vpack.c.b16 %v1423, %v1421
    %v2390 = vpack.c.b16 %v1426, %v1424
    %v2391 = vpack.c.b16 %v1427, %v1425
    %v2392 = vpack.c.b16 %v1430, %v1428
    %v2393 = vpack.c.b16 %v1431, %v1429
    %v2394 = vpack.c.b16 %v1434, %v1432
    %v2395 = vpack.c.b16 %v1435, %v1433
    %v2396 = vpack.c.b16 %v1438, %v1436
    %v2397 = vpack.c.b16 %v1439, %v1437
    %v2398 = vpack.c.b16 %v1442, %v1440
    %v2399 = vpack.c.b16 %v1443, %v1441
    %v2400 = vpack.c.b16 %v1446, %v1444
    %v2401 = vpack.c.b16 %v1447, %v1445
    %v2402 = vpack.c.b16 %v1450, %v1448
    %v2403 = vpack.c.b16 %v1451, %v1449
    %v2404 = vpack.c.b16 %v1454, %v1452
    %v2405 = vpack.c.b16 %v1455, %v1453
    %v2406 = vpack.c.b16 %v1458, %v1456
    %v2407 = vpack.c.b16 %v1459, %v1457
    %v2408 = vpack.c.b16 %v1462, %v1460
    %v2409 = vpack.c.b16 %v1463, %v1461
    %v2410 = vpack.c.b16 %v1466, %v1464
    %v2411 = vpack.c.b16 %v1467, %v1465
    %v2412 = vpack.c.b16 %v1470, %v1468
    %v2413 = vpack.c.b16 %v1471, %v1469
    %v2414 = vpack.c.b16 %v1474, %v1472
    %v2415 = vpack.c.b16 %v1475, %v1473
    %v2416 = vpack.c.b16 %v1478, %v1476
    %v2417 = vpack.c.b16 %v1479, %v1477
    %v2418 = vpack.c.b16 %v1482, %v1480
    %v2419 = vpack.c.b16 %v1483, %v1481
    %v2420 = vpack.c.b16 %v1486, %v1484
    %v2421 = vpack.c.b16 %v1487, %v1485
    %v2422 = vpack.c.b16 %v1490, %v1488
    %v2423 = vpack.c.b16 %v1491, %v1489
    %v2424 = vpack.c.b16 %v1494, %v1492
    %v2425 = vpack.c.b16 %v1495, %v1493
    %v2426 = vpack.c.b16 %v1498, %v1496
    %v2427 = vpack.c.b16 %v1499, %v1497
    %v2428 = vpack.c.b16 %v1502, %v1500
    %v2429 = vpack.c.b16 %v1503, %v1501
    %v2430 = vpack.c.b16 %v1506, %v1504
    %v2431 = vpack.c.b16 %v1507, %v1505
    %v2432 = vpack.c.b16 %v1510, %v1508
    %v2433 = vpack.c.b16 %v1511, %v1509
    %v2434 = vpack.c.b16 %v1514, %v1512
    %v2435 = vpack.c.b16 %v1515, %v1513
    %v2436 = vpack.c.b16 %v1518, %v1516
    %v2437 = vpack.c.b16 %v1519, %v1517
    %v2438 = vpack.c.b16 %v1522, %v1520
    %v2439 = vpack.c.b16 %v1523, %v1521
    %v2440 = vpack.c.b16 %v1526, %v1524
    %v2441 = vpack.c.b16 %v1527, %v1525
    %v2442 = vpack.c.b16 %v1530, %v1528
    %v2443 = vpack.c.b16 %v1531, %v1529
    %v2444 = vpack.c.b16 %v1534, %v1532
    %v2445 = vpack.c.b16 %v1535, %v1533
    %v2446 = vpack.c.b16 %v1538, %v1536
    %v2447 = vpack.c.b16 %v1539, %v1537
    %v2448 = vpack.c.b16 %v1542, %v1540
    %v2449 = vpack.c.b16 %v1543, %v1541
    %v2450 = vpack.c.b16 %v1546, %v1544
    %v2451 = vpack.c.b16 %v1547, %v1545
    %v2452 = vpack.c.b16 %v1550, %v1548
    %v2453 = vpack.c.b16 %v1551, %v1549
    %v2454 = vpack.c.b16 %v1554, %v1552
    %v2455 = vpack.c.b16 %v1555, %v1553
    %v2456 = vpack.c.b16 %v1558, %v1556
    %v2457 = vpack.c.b16 %v1559, %v1557
    %v2458 = vpack.c.b16 %v1562, %v1560
    %v2459 = vpack.c.b16 %v1563, %v1561
    %v2460 = vpack.c.b16 %v1566, %v1564
    %v2461 = vpack.c.b16 %v1567, %v1565
    %v2462 = vpack.c.b16 %v1570, %v1568
    %v2463 = vpack.c.b16 %v1571, %v1569
    %v2464 = vpack.c.b16 %v1574, %v1572
    %v2465 = vpack.c.b16 %v1575, %v1573
    %v2466 = vpack.c.b16 %v1578, %v1576
    %v2467 = vpack.c.b16 %v1579, %v1577
    %v2468 = vpack.c.b16 %v1582, %v1580
    %v2469 = vpack.c.b16 %v1583, %v1581
    %v2470 = vpack.c.b16 %v1586, %v1584
    %v2471 = vpack.c.b16 %v1587, %v1585
    %v2472 = vpack.c.b16 %v1590, %v1588
    %v2473 = vpack.c.b16 %v1591, %v1589
    %v2474 = vpack.c.b16 %v1594, %v1592
    %v2475 = vpack.c.b16 %v1595, %v1593
    %v2476 = vpack.c.b16 %v1598, %v1596
    %v2477 = vpack.c.b16 %v1599, %v1597
    %v2478 = vpack.c.b16 %v1602, %v1600
    %v2479 = vpack.c.b16 %v1603, %v1601
    %v2480 = vpack.c.b16 %v1606, %v1604
    %v2481 = vpack.c.b16 %v1607, %v1605
    %v2482 = vpack.c.b16 %v1610, %v1608
    %v2483 = vpack.c.b16 %v1611, %v1609
    %v2484 = vpack.c.b16 %v1614, %v1612
    %v2485 = vpack.c.b16 %v1615, %v1613
    %v2486 = vpack.c.b16 %v1618, %v1616
    %v2487 = vpack.c.b16 %v1619, %v1617
    %v2488 = vpack.c.b16 %v1622, %v1620
    %v2489 = vpack.c.b16 %v1623, %v1621
    %v2490 = vpack.c.b16 %v1626, %v1624
    %v2491 = vpack.c.b16 %v1627, %v1625
    %v2492 = vpack.c.b16 %v1630, %v1628
    %v2493 = vpack.c.b16 %v1631, %v1629
    %v2494 = vpack.c.b16 %v1634, %v1632
    %v2495 = vpack.c.b16 %v1635, %v1633
    %v2496 = vpack.c.b16 %v1638, %v1636
    %v2497 = vpack.c.b16 %v1639, %v1637
    %v2498 = vpack.c.b16 %v1642, %v1640
    %v2499 = vpack.c.b16 %v1643, %v1641
    %v2500 = vpack.c.b16 %v1646, %v1644
    %v2501 = vpack.c.b16 %v1647, %v1645
    %v2502 = vpack.c.b16 %v1650, %v1648
    %v2503 = vpack.c.b16 %v1651, %v1649
    %v2504 = vpack.c.b16 %v1654, %v1652
    %v2505 = vpack.c.b16 %v1655, %v1653
    %v2506 = vpack.c.b16 %v1658, %v1656
    %v2507 = vpack.c.b16 %v1659, %v1657
    %v2508 = vpack.c.b16 %v1662, %v1660
    %v2509 = vpack.c.b16 %v1663, %v1661
    %v2510 = vpack.c.b16 %v1666, %v1664
    %v2511 = vpack.c.b16 %v1667, %v1665
    %v2512 = vpack.c.b16 %v1670, %v1668
    %v2513 = vpack.c.b16 %v1671, %v1669
    %v2514 = vpack.c.b16 %v1674, %v1672
    %v2515 = vpack.c.b16 %v1675, %v1673
    %v2516 = vpack.c.b16 %v1678, %v1676
    %v2517 = vpack.c.b16 %v1679, %v1677
    %v2518 = vpack.c.b16 %v1682, %v1680
    %v2519 = vpack.c.b16 %v1683, %v1681
    %v2520 = vpack.c.b16 %v1686, %v1684
    %v2521 = vpack.c.b16 %v1687, %v1685
    %v2522 = vpack.c.b16 %v1690, %v1688
    %v2523 = vpack.c.b16 %v1691, %v1689
    %v2524 = vpack.c.b16 %v1694, %v1692
    %v2525 = vpack.c.b16 %v1695, %v1693
    %v2526 = vpack.c.b16 %v1698, %v1696
    %v2527 = vpack.c.b16 %v1699, %v1697
    %v2528 = vpack.c.b16 %v1702, %v1700
    %v2529 = vpack.c.b16 %v1703, %v1701
    %v2530 = vpack.c.b16 %v1706, %v1704
    %v2531 = vpack.c.b16 %v1707, %v1705
    %v2532 = vpack.c.b16 %v1710, %v1708
    %v2533 = vpack.c.b16 %v1711, %v1709
    %v2534 = vpack.c.b16 %v1714, %v1712
    %v2535 = vpack.c.b16 %v1715, %v1713
    %v2536 = vpack.c.b16 %v1718, %v1716
    %v2537 = vpack.c.b16 %v1719, %v1717
    %v2538 = vpack.c.b16 %v1722, %v1720
    %v2539 = vpack.c.b16 %v1723, %v1721
    %v2540 = vpack.c.b16 %v1726, %v1724
    %v2541 = vpack.c.b16 %v1727, %v1725
    %v2542 = vpack.c.b16 %v1730, %v1728
    %v2543 = vpack.c.b16 %v1731, %v1729
    %v2544 = vpack.c.b16 %v1734, %v1732
    %v2545 = vpack.c.b16 %v1735, %v1733
    %v2546 = vpack.c.b16 %v1738, %v1736
    %v2547 = vpack.c.b16 %v1739, %v1737
    %v2548 = vpack.c.b16 %v1742, %v1740
    %v2549 = vpack.c.b16 %v1743, %v1741
    %v2550 = vpack.c.b16 %v1746, %v1744
    %v2551 = vpack.c.b16 %v1747, %v1745
    %v2552 = vpack.c.b16 %v1750, %v1748
    %v2553 = vpack.c.b16 %v1751, %v1749
    %v2554 = vpack.c.b16 %v1754, %v1752
    %v2555 = vpack.c.b16 %v1755, %v1753
    %v2556 = vpack.c.b16 %v1758, %v1756
    %v2557 = vpack.c.b16 %v1759, %v1757
    %v2558 = vpack.c.b16 %v1762, %v1760
    %v2559 = vpack.c.b16 %v1763, %v1761
    %v2560 = vpack.c.b16 %v1766, %v1764
    %v2561 = vpack.c.b16 %v1767, %v1765
    %v2562 = vpack.c.b16 %v1770, %v1768
    %v2563 = vpack.c.b16 %v1771, %v1769
    %v2564 = vpack.c.b16 %v1774, %v1772
    %v2565 = vpack.c.b16 %v1775, %v1773
    %v2566 = vpack.c.b16 %v1778, %v1776
    %v2567 = vpack.c.b16 %v1779, %v1777
    %v2568 = vpack.c.b16 %v1782, %v1780
    %v2569 = vpack.c.b16 %v1783, %v1781
    %v2570 = vpack.c.b16 %v1786, %v1784
    %v2571 = vpack.c.b16 %v1787, %v1785
    %v2572 = vpack.c.b16 %v1790, %v1788
    %v2573 = vpack.c.b16 %v1791, %v1789
    %v2574 = vpack.c.b16 %v1794, %v1792
    %v2575 = vpack.c.b16 %v1795, %v1793
    %v2576 = vpack.c.b16 %v1798, %v1796
    %v2577 = vpack.c.b16 %v1799, %v1797
    %v2578 = vpack.c.b16 %v1802, %v1800
    %v2579 = vpack.c.b16 %v1803, %v1801
    %v2580 = vpack.c.b16 %v1806, %v1804
    %v2581 = vpack.c.b16 %v1807, %v1805
    %v2582 = vpack.c.b16 %v1810, %v1808
    %v2583 = vpack.c.b16 %v1811, %v1809
    %v2584 = vpack.c.b16 %v1814, %v1812
    %v2585 = vpack.c.b16 %v1815, %v1813
    %v2586 = vpack.c.b16 %v1818, %v1816
    %v2587 = vpack.c.b16 %v1819, %v1817
    %v2588 = vpack.c.b16 %v1822, %v1820
    %v2589 = vpack.c.b16 %v1823, %v1821
    %v2590 = vpack.c.b16 %v1826, %v1824
    %v2591 = vpack.c.b16 %v1827, %v1825
    %v2592 = vpack.c.b16 %v1830, %v1828
    %v2593 = vpack.c.b16 %v1831, %v1829
    %v2594 = vpack.c.b16 %v1834, %v1832
    %v2595 = vpack.c.b16 %v1835, %v1833
    %v2596 = vpack.c.b16 %v1838, %v1836
    %v2597 = vpack.c.b16 %v1839, %v1837
    %v2598 = vpack.c.b16 %v1842, %v1840
    %v2599 = vpack.c.b16 %v1843, %v1841
    %v2600 = vpack.c.b16 %v1846, %v1844
    %v2601 = vpack.c.b16 %v1847, %v1845
    %v2602 = vpack.c.b16 %v1850, %v1848
    %v2603 = vpack.c.b16 %v1851, %v1849
    %v2604 = vpack.c.b16 %v1854, %v1852
    %v2605 = vpack.c.b16 %v1855, %v1853
    %v2606 = vpack.c.b16 %v1858, %v1856
    %v2607 = vpack.c.b16 %v1859, %v1857
    %v2608 = vpack.c.b16 %v1862, %v1860
    %v2609 = vpack.c.b16 %v1863, %v1861
    %v2610 = vpack.c.b16 %v1866, %v1864
    %v2611 = vpack.c.b16 %v1867, %v1865
    %v2612 = vpack.c.b16 %v1870, %v1868
    %v2613 = vpack.c.b16 %v1871, %v1869
    %v2614 = vpack.c.b16 %v1874, %v1872
    %v2615 = vpack.c.b16 %v1875, %v1873
    %v2616 = vpack.c.b16 %v1878, %v1876
    %v2617 = vpack.c.b16 %v1879, %v1877
    %v2618 = vpack.c.b16 %v1882, %v1880
    %v2619 = vpack.c.b16 %v1883, %v1881
    %v2620 = vpack.c.b16 %v1886, %v1884
    %v2621 = vpack.c.b16 %v1887, %v1885
    %v2622 = vpack.c.b16 %v1890, %v1888
    %v2623 = vpack.c.b16 %v1891, %v1889
    %v2624 = vpack.c.b16 %v1894, %v1892
    %v2625 = vpack.c.b16 %v1895, %v1893
    %v2626 = vpack.c.b16 %v1898, %v1896
    %v2627 = vpack.c.b16 %v1899, %v1897
    %v2628 = vpack.c.b16 %v1902, %v1900
    %v2629 = vpack.c.b16 %v1903, %v1901
    %v2630 = vpack.c.b16 %v1906, %v1904
    %v2631 = vpack.c.b16 %v1907, %v1905
    %v2632 = vpack.c.b16 %v1910, %v1908
    %v2633 = vpack.c.b16 %v1911, %v1909
    %v2634 = vpack.c.b16 %v1914, %v1912
    %v2635 = vpack.c.b16 %v1915, %v1913
    %v2636 = vpack.c.b16 %v1918, %v1916
    %v2637 = vpack.c.b16 %v1919, %v1917
    %v2638 = vpack.c.b16 %v1922, %v1920
    %v2639 = vpack.c.b16 %v1923, %v1921
    %v2640 = vpack.c.b16 %v1926, %v1924
    %v2641 = vpack.c.b16 %v1927, %v1925
    %v2642 = vpack.c.b16 %v1930, %v1928
    %v2643 = vpack.c.b16 %v1931, %v1929
    %v2644 = vpack.c.b16 %v1934, %v1932
    %v2645 = vpack.c.b16 %v1935, %v1933
    %v2646 = vpack.c.b16 %v1938, %v1936
    %v2647 = vpack.c.b16 %v1939, %v1937
    %v2648 = vpack.c.b16 %v1942, %v1940
    %v2649 = vpack.c.b16 %v1943, %v1941
    %v2650 = vpack.c.b16 %v1946, %v1944
    %v2651 = vpack.c.b16 %v1947, %v1945
    %v2652 = vpack.c.b16 %v1950, %v1948
    %v2653 = vpack.c.b16 %v1951, %v1949
    %v2654 = vpack.c.b16 %v1954, %v1952
    %v2655 = vpack.c.b16 %v1955, %v1953
    %v2656 = vpack.c.b16 %v1958, %v1956
    %v2657 = vpack.c.b16 %v1959, %v1957
    %v2658 = vpack.c.b16 %v1962, %v1960
    %v2659 = vpack.c.b16 %v1963, %v1961
    %v2660 = vpack.c.b16 %v1966, %v1964
    %v2661 = vpack.c.b16 %v1967, %v1965
    %v2662 = vpack.c.b16 %v1970, %v1968
    %v2663 = vpack.c.b16 %v1971, %v1969
    %v2664 = vpack.c.b16 %v1974, %v1972
    %v2665 = vpack.c.b16 %v1975, %v1973
    %v2666 = vpack.c.b16 %v1978, %v1976
    %v2667 = vpack.c.b16 %v1979, %v1977
    %v2668 = vpack.c.b16 %v1982, %v1980
    %v2669 = vpack.c.b16 %v1983, %v1981
    %v2670 = vpack.c.b16 %v1986, %v1984
    %v2671 = vpack.c.b16 %v1987, %v1985
    %v2672 = vpack.c.b16 %v1990, %v1988
    %v2673 = vpack.c.b16 %v1991, %v1989
    %v2674 = vpack.c.b16 %v1994, %v1992
    %v2675 = vpack.c.b16 %v1995, %v1993
    %v2676 = vpack.c.b16 %v1998, %v1996
    %v2677 = vpack.c.b16 %v1999, %v1997
    %v2678 = vpack.c.b16 %v2002, %v2000
    %v2679 = vpack.c.b16 %v2003, %v2001
    %v2680 = vpack.c.b16 %v2006, %v2004
    %v2681 = vpack.c.b16 %v2007, %v2005
    %v2682 = vpack.c.b16 %v2010, %v2008
    %v2683 = vpack.c.b16 %v2011, %v2009
    %v2684 = vpack.c.b16 %v2014, %v2012
    %v2685 = vpack.c.b16 %v2015, %v2013
    %v2686 = vpack.c.b16 %v2018, %v2016
    %v2687 = vpack.c.b16 %v2019, %v2017
    %v2688 = vpack.c.b16 %v2022, %v2020
    %v2689 = vpack.c.b16 %v2023, %v2021
    %v2690 = vpack.c.b16 %v2026, %v2024
    %v2691 = vpack.c.b16 %v2027, %v2025
    %v2692 = vpack.c.b16 %v2030, %v2028
    %v2693 = vpack.c.b16 %v2031, %v2029
    %v2694 = vpack.c.b16 %v2034, %v2032
    %v2695 = vpack.c.b16 %v2035, %v2033
    %v2696 = vpack.c.b16 %v2038, %v2036
    %v2697 = vpack.c.b16 %v2039, %v2037
    %v2698 = vpack.c.b16 %v2042, %v2040
    %v2699 = vpack.c.b16 %v2043, %v2041
    %v2700 = vpack.c.b16 %v2046, %v2044
    %v2701 = vpack.c.b16 %v2047, %v2045
    %v2702 = vpack.c.b16 %v2050, %v2048
    %v2703 = vpack.c.b16 %v2051, %v2049
    %v2704 = vpack.c.b16 %v2054, %v2052
    %v2705 = vpack.c.b16 %v2055, %v2053
    %v2706 = vpack.c.b16 %v2058, %v2056
    %v2707 = vpack.c.b16 %v2059, %v2057
    %v2708 = vpack.c.b16 %v2062, %v2060
    %v2709 = vpack.c.b16 %v2063, %v2061
    %v2710 = vpack.c.b16 %v2066, %v2064
    %v2711 = vpack.c.b16 %v2067, %v2065
    %v2712 = vpack.c.b16 %v2070, %v2068
    %v2713 = vpack.c.b16 %v2071, %v2069
    %v2714 = vpack.c.b16 %v2074, %v2072
    %v2715 = vpack.c.b16 %v2075, %v2073
    %v2716 = vpack.c.b16 %v2078, %v2076
    %v2717 = vpack.c.b16 %v2079, %v2077
    %v2718 = vpack.c.b16 %v2082, %v2080
    %v2719 = vpack.c.b16 %v2083, %v2081
    %v2720 = vpack.c.b16 %v2086, %v2084
    %v2721 = vpack.c.b16 %v2087, %v2085
    %v2722 = vpack.c.b16 %v2090, %v2088
    %v2723 = vpack.c.b16 %v2091, %v2089
    %v2724 = vpack.c.b16 %v2094, %v2092
    %v2725 = vpack.c.b16 %v2095, %v2093
    %v2726 = vpack.c.b16 %v2098, %v2096
    %v2727 = vpack.c.b16 %v2099, %v2097
    %v2728 = vpack.c.b16 %v2102, %v2100
    %v2729 = vpack.c.b16 %v2103, %v2101
    %v2730 = vpack.c.b16 %v2106, %v2104
    %v2731 = vpack.c.b16 %v2107, %v2105
    %v2732 = vpack.c.b16 %v2110, %v2108
    %v2733 = vpack.c.b16 %v2111, %v2109
    %v2734 = vpack.c.b16 %v2114, %v2112
    %v2735 = vpack.c.b16 %v2115, %v2113
    %v2736 = vpack.c.b16 %v2118, %v2116
    %v2737 = vpack.c.b16 %v2119, %v2117
    %v2738 = vpack.c.b16 %v2122, %v2120
    %v2739 = vpack.c.b16 %v2123, %v2121
    %v2740 = vpack.c.b16 %v2126, %v2124
    %v2741 = vpack.c.b16 %v2127, %v2125
    %v2742 = vpack.c.b16 %v2130, %v2128
    %v2743 = vpack.c.b16 %v2131, %v2129
    %v2744 = vpack.c.b16 %v2134, %v2132
    %v2745 = vpack.c.b16 %v2135, %v2133
    %v2746 = vpack.c.b16 %v2138, %v2136
    %v2747 = vpack.c.b16 %v2139, %v2137
    %v2748 = vpack.c.b16 %v2142, %v2140
    %v2749 = vpack.c.b16 %v2143, %v2141
    %v2750 = vpack.c.b16 %v2146, %v2144
    %v2751 = vpack.c.b16 %v2147, %v2145
    %v2752 = vpack.c.b16 %v2150, %v2148
    %v2753 = vpack.c.b16 %v2151, %v2149
    %v2754 = vpack.c.b16 %v2154, %v2152
    %v2755 = vpack.c.b16 %v2155, %v2153
    %v2756 = vpack.c.b16 %v2158, %v2156
    %v2757 = vpack.c.b16 %v2159, %v2157
    %v2758 = vpack.c.b16 %v2162, %v2160
    %v2759 = vpack.c.b16 %v2163, %v2161
    %v2760 = vpack.c.b16 %v2166, %v2164
    %v2761 = vpack.c.b16 %v2167, %v2165
    %v2762 = vpack.c.b16 %v2170, %v2168
    %v2763 = vpack.c.b16 %v2171, %v2169
    %v2764 = vpack.c.b16 %v2174, %v2172
    %v2765 = vpack.c.b16 %v2175, %v2173
    %v2766 = vpack.c.b16 %v2178, %v2176
    %v2767 = vpack.c.b16 %v2179, %v2177
    %v2768 = vpack.c.b16 %v2182, %v2180
    %v2769 = vpack.c.b16 %v2183, %v2181
    %v2770 = vpack.c.b16 %v2186, %v2184
    %v2771 = vpack.c.b16 %v2187, %v2185
    %v2772 = vpack.c.b16 %v2190, %v2188
    %v2773 = vpack.c.b16 %v2191, %v2189
    %v2774 = vpack.c.b16 %v2194, %v2192
    %v2775 = vpack.c.b16 %v2195, %v2193
    %v2776 = vpack.c.b16 %v2198, %v2196
    %v2777 = vpack.c.b16 %v2199, %v2197
    %v2778 = vpack.c.b16 %v2202, %v2200
    %v2779 = vpack.c.b16 %v2203, %v2201
    %v2780 = vpack.c.b16 %v2206, %v2204
    %v2781 = vpack.c.b16 %v2207, %v2205
    %v2782 = vpack.c.b16 %v2210, %v2208
    %v2783 = vpack.c.b16 %v2211, %v2209
    %v2784 = vpack.c.b16 %v2214, %v2212
    %v2785 = vpack.c.b16 %v2215, %v2213
    %v2786 = vpack.c.b16 %v2218, %v2216
    %v2787 = vpack.c.b16 %v2219, %v2217
    %v2788 = vpack.c.b16 %v2222, %v2220
    %v2789 = vpack.c.b16 %v2223, %v2221
    %v2790 = vpack.c.b16 %v2226, %v2224
    %v2791 = vpack.c.b16 %v2227, %v2225
    %v2792 = vpack.c.b16 %v2230, %v2228
    %v2793 = vpack.c.b16 %v2231, %v2229
    %v2794 = vpack.c.b16 %v2234, %v2232
    %v2795 = vpack.c.b16 %v2235, %v2233
    %v2796 = vpack.c.b16 %v2238, %v2236
    %v2797 = vpack.c.b16 %v2239, %v2237
    %v2798 = vpack.c.b16 %v2242, %v2240
    %v2799 = vpack.c.b16 %v2243, %v2241
    %v2800 = vpack.c.b16 %v2246, %v2244
    %v2801 = vpack.c.b16 %v2247, %v2245
    %v2802 = vpack.c.b16 %v2250, %v2248
    %v2803 = vpack.c.b16 %v2251, %v2249
    %v2804 = vpack.c.b16 %v2254, %v2252
    %v2805 = vpack.c.b16 %v2255, %v2253
    %v2806 = vpack.c.b16 %v2258, %v2256
    %v2807 = vpack.c.b16 %v2259, %v2257
    %v2808 = vpack.c.b16 %v2262, %v2260
    %v2809 = vpack.c.b16 %v2263, %v2261
    %v2810 = vpack.c.b16 %v2266, %v2264
    %v2811 = vpack.c.b16 %v2267, %v2265
    %v2812 = vpack.c.b16 %v2270, %v2268
    %v2813 = vpack.c.b16 %v2271, %v2269
    %v2814 = vpack.c.b16 %v2274, %v2272
    %v2815 = vpack.c.b16 %v2275, %v2273
    %v2816 = vpack.c.b16 %v2278, %v2276
    %v2817 = vpack.c.b16 %v2279, %v2277
    %v2818 = vpack.c.b16 %v2282, %v2280
    %v2819 = vpack.c.b16 %v2283, %v2281
    %v2820 = vpack.c.b16 %v2286, %v2284
    %v2821 = vpack.c.b16 %v2287, %v2285
    %v2822 = vpack.c.b16 %v2290, %v2288
    %v2823 = vpack.c.b16 %v2291, %v2289
    %v2824 = vpack.c.b16 %v2294, %v2292
    %v2825 = vpack.c.b16 %v2295, %v2293
    %v2826 = vpack.c.b16 %v2298, %v2296
    %v2827 = vpack.c.b16 %v2299, %v2297
    %v2828 = vpack.c.b16 %v2302, %v2300
    %v2829 = vpack.c.b16 %v2303, %v2301
    %v2830 = vpack.c.b16 %v2306, %v2304
    %v2831 = vpack.c.b16 %v2307, %v2305
    %v2832 = vpack.c.b16 %v2310, %v2308
    %v2833 = vpack.c.b16 %v2311, %v2309
    %v2834 = vpack.c.b16 %v2314, %v2312
    %v2835 = vpack.c.b16 %v2315, %v2313
    %v2836 = vpack.c.b16 %v2318, %v2316
    %v2837 = vpack.c.b16 %v2319, %v2317
    %v2838 = vpack.c.b16 %v2322, %v2320
    %v2839 = vpack.c.b16 %v2323, %v2321
    %v2840 = vpack.c.b16 %v2326, %v2324
    %v2841 = vpack.c.b16 %v2327, %v2325
    %v2842 = vpack.c.b16 %v2330, %v2328
    %v2843 = vpack.c.b16 %v2331, %v2329
    %3356 = vmatpush.bf16.msra.mxu0 %v2346
    %3357 = vmatpush.bf16.msra.mxu0 %v2344
    %3358 = vmatpush.bf16.msra.mxu0 %v2342
    %3359 = vmatpush.bf16.msra.mxu0 %v2340
    %3360 = vmatpush.bf16.msra.mxu0 %v2338
    %3361 = vmatpush.bf16.msra.mxu0 %v2336
    %3362 = vmatpush.bf16.msra.mxu0 %v2334
    %3363 = vmatpush.bf16.msra.mxu0 %v2332
    %3364 = vmatmul.bf16.gmra.mxu0 %v732
    %v3365 = vpop.f32.mrf.mxu0
    %v3366 = vadd.f32 %v680, %v3365
    %v3367 = vpop.f32.mrf.mxu0
    %3368 = vdwg.mxu0
    %3369 = vmatpush.bf16.msra.mxu0 %v2362
    %3370 = vmatpush.bf16.msra.mxu0 %v2360
    %3371 = vmatpush.bf16.msra.mxu0 %v2358
    %3372 = vmatpush.bf16.msra.mxu0 %v2356
    %3373 = vmatpush.bf16.msra.mxu0 %v2354
    %3374 = vmatpush.bf16.msra.mxu0 %v2352
    %3375 = vmatpush.bf16.msra.mxu0 %v2350
    %3376 = vmatpush.bf16.msra.mxu0 %v2348
    %3377 = vmatmul.bf16.gmra.mxu0 %v733
    %v3378 = vpop.f32.mrf.mxu0
    %v3379 = vadd.f32 %v3366, %v3378
    %v3380 = vpop.f32.mrf.mxu0
    %3381 = vdwg.mxu0
    %3382 = vmatpush.bf16.msra.mxu0 %v2378
    %3383 = vmatpush.bf16.msra.mxu0 %v2376
    %3384 = vmatpush.bf16.msra.mxu0 %v2374
    %3385 = vmatpush.bf16.msra.mxu0 %v2372
    %3386 = vmatpush.bf16.msra.mxu0 %v2370
    %3387 = vmatpush.bf16.msra.mxu0 %v2368
    %3388 = vmatpush.bf16.msra.mxu0 %v2366
    %3389 = vmatpush.bf16.msra.mxu0 %v2364
    %3390 = vmatmul.bf16.gmra.mxu0 %v734
    %v3391 = vpop.f32.mrf.mxu0
    %v3392 = vadd.f32 %v3379, %v3391
    %v3393 = vpop.f32.mrf.mxu0
    %3394 = vdwg.mxu0
    %3395 = vmatpush.bf16.msra.mxu0 %v2394
    %3396 = vmatpush.bf16.msra.mxu0 %v2392
    %3397 = vmatpush.bf16.msra.mxu0 %v2390
    %3398 = vmatpush.bf16.msra.mxu0 %v2388
    %3399 = vmatpush.bf16.msra.mxu0 %v2386
    %3400 = vmatpush.bf16.msra.mxu0 %v2384
    %3401 = vmatpush.bf16.msra.mxu0 %v2382
    %3402 = vmatpush.bf16.msra.mxu0 %v2380
    %3403 = vmatmul.bf16.gmra.mxu0 %v735
    %v3404 = vpop.f32.mrf.mxu0
    %v3405 = vadd.f32 %v3392, %v3404
    %v3406 = vpop.f32.mrf.mxu0
    %3407 = vdwg.mxu0
    %3408 = vmatpush.bf16.msra.mxu0 %v2410
    %3409 = vmatpush.bf16.msra.mxu0 %v2408
    %3410 = vmatpush.bf16.msra.mxu0 %v2406
    %3411 = vmatpush.bf16.msra.mxu0 %v2404
    %3412 = vmatpush.bf16.msra.mxu0 %v2402
    %3413 = vmatpush.bf16.msra.mxu0 %v2400
    %3414 = vmatpush.bf16.msra.mxu0 %v2398
    %3415 = vmatpush.bf16.msra.mxu0 %v2396
    %3416 = vmatmul.bf16.gmra.mxu0 %v736
    %v3417 = vpop.f32.mrf.mxu0
    %v3418 = vadd.f32 %v3405, %v3417
    %v3419 = vpop.f32.mrf.mxu0
    %3420 = vdwg.mxu0
    %3421 = vmatpush.bf16.msra.mxu0 %v2426
    %3422 = vmatpush.bf16.msra.mxu0 %v2424
    %3423 = vmatpush.bf16.msra.mxu0 %v2422
    %3424 = vmatpush.bf16.msra.mxu0 %v2420
    %3425 = vmatpush.bf16.msra.mxu0 %v2418
    %3426 = vmatpush.bf16.msra.mxu0 %v2416
    %3427 = vmatpush.bf16.msra.mxu0 %v2414
    %3428 = vmatpush.bf16.msra.mxu0 %v2412
    %3429 = vmatmul.bf16.gmra.mxu0 %v737
    %v3430 = vpop.f32.mrf.mxu0
    %v3431 = vadd.f32 %v3418, %v3430
    %v3432 = vpop.f32.mrf.mxu0
    %3433 = vdwg.mxu0
    %3434 = vmatpush.bf16.msra.mxu0 %v2442
    %3435 = vmatpush.bf16.msra.mxu0 %v2440
    %3436 = vmatpush.bf16.msra.mxu0 %v2438
    %3437 = vmatpush.bf16.msra.mxu0 %v2436
    %3438 = vmatpush.bf16.msra.mxu0 %v2434
    %3439 = vmatpush.bf16.msra.mxu0 %v2432
    %3440 = vmatpush.bf16.msra.mxu0 %v2430
    %3441 = vmatpush.bf16.msra.mxu0 %v2428
    %3442 = vmatmul.bf16.gmra.mxu0 %v738
    %v3443 = vpop.f32.mrf.mxu0
    %v3444 = vadd.f32 %v3431, %v3443
    %v3445 = vpop.f32.mrf.mxu0
    %3446 = vdwg.mxu0
    %3447 = vmatpush.bf16.msra.mxu0 %v2458
    %3448 = vmatpush.bf16.msra.mxu0 %v2456
    %3449 = vmatpush.bf16.msra.mxu0 %v2454
    %3450 = vmatpush.bf16.msra.mxu0 %v2452
    %3451 = vmatpush.bf16.msra.mxu0 %v2450
    %3452 = vmatpush.bf16.msra.mxu0 %v2448
    %3453 = vmatpush.bf16.msra.mxu0 %v2446
    %3454 = vmatpush.bf16.msra.mxu0 %v2444
    %3455 = vmatmul.bf16.gmra.mxu0 %v739
    %v3456 = vpop.f32.mrf.mxu0
    %v3457 = vadd.f32 %v3444, %v3456
    %v3458 = vpop.f32.mrf.mxu0
    %3459 = vdwg.mxu0
    %3460 = vmatpush.bf16.msra.mxu0 %v2474
    %3461 = vmatpush.bf16.msra.mxu0 %v2472
    %3462 = vmatpush.bf16.msra.mxu0 %v2470
    %3463 = vmatpush.bf16.msra.mxu0 %v2468
    %3464 = vmatpush.bf16.msra.mxu0 %v2466
    %3465 = vmatpush.bf16.msra.mxu0 %v2464
    %3466 = vmatpush.bf16.msra.mxu0 %v2462
    %3467 = vmatpush.bf16.msra.mxu0 %v2460
    %3468 = vmatmul.bf16.gmra.mxu0 %v740
    %v3469 = vpop.f32.mrf.mxu0
    %v3470 = vadd.f32 %v3457, %v3469
    %v3471 = vpop.f32.mrf.mxu0
    %3472 = vdwg.mxu0
    %3473 = vmatpush.bf16.msra.mxu0 %v2490
    %3474 = vmatpush.bf16.msra.mxu0 %v2488
    %3475 = vmatpush.bf16.msra.mxu0 %v2486
    %3476 = vmatpush.bf16.msra.mxu0 %v2484
    %3477 = vmatpush.bf16.msra.mxu0 %v2482
    %3478 = vmatpush.bf16.msra.mxu0 %v2480
    %3479 = vmatpush.bf16.msra.mxu0 %v2478
    %3480 = vmatpush.bf16.msra.mxu0 %v2476
    %3481 = vmatmul.bf16.gmra.mxu0 %v741
    %v3482 = vpop.f32.mrf.mxu0
    %v3483 = vadd.f32 %v3470, %v3482
    %v3484 = vpop.f32.mrf.mxu0
    %3485 = vdwg.mxu0
    %3486 = vmatpush.bf16.msra.mxu0 %v2506
    %3487 = vmatpush.bf16.msra.mxu0 %v2504
    %3488 = vmatpush.bf16.msra.mxu0 %v2502
    %3489 = vmatpush.bf16.msra.mxu0 %v2500
    %3490 = vmatpush.bf16.msra.mxu0 %v2498
    %3491 = vmatpush.bf16.msra.mxu0 %v2496
    %3492 = vmatpush.bf16.msra.mxu0 %v2494
    %3493 = vmatpush.bf16.msra.mxu0 %v2492
    %3494 = vmatmul.bf16.gmra.mxu0 %v742
    %v3495 = vpop.f32.mrf.mxu0
    %v3496 = vadd.f32 %v3483, %v3495
    %v3497 = vpop.f32.mrf.mxu0
    %3498 = vdwg.mxu0
    %3499 = vmatpush.bf16.msra.mxu0 %v2522
    %3500 = vmatpush.bf16.msra.mxu0 %v2520
    %3501 = vmatpush.bf16.msra.mxu0 %v2518
    %3502 = vmatpush.bf16.msra.mxu0 %v2516
    %3503 = vmatpush.bf16.msra.mxu0 %v2514
    %3504 = vmatpush.bf16.msra.mxu0 %v2512
    %3505 = vmatpush.bf16.msra.mxu0 %v2510
    %3506 = vmatpush.bf16.msra.mxu0 %v2508
    %3507 = vmatmul.bf16.gmra.mxu0 %v743
    %v3508 = vpop.f32.mrf.mxu0
    %v3509 = vadd.f32 %v3496, %v3508
    %v3510 = vpop.f32.mrf.mxu0
    %3511 = vdwg.mxu0
    %3512 = vmatpush.bf16.msra.mxu0 %v2538
    %3513 = vmatpush.bf16.msra.mxu0 %v2536
    %3514 = vmatpush.bf16.msra.mxu0 %v2534
    %3515 = vmatpush.bf16.msra.mxu0 %v2532
    %3516 = vmatpush.bf16.msra.mxu0 %v2530
    %3517 = vmatpush.bf16.msra.mxu0 %v2528
    %3518 = vmatpush.bf16.msra.mxu0 %v2526
    %3519 = vmatpush.bf16.msra.mxu0 %v2524
    %3520 = vmatmul.bf16.gmra.mxu0 %v744
    %v3521 = vpop.f32.mrf.mxu0
    %v3522 = vadd.f32 %v3509, %v3521
    %v3523 = vpop.f32.mrf.mxu0
    %3524 = vdwg.mxu0
    %3525 = vmatpush.bf16.msra.mxu0 %v2554
    %3526 = vmatpush.bf16.msra.mxu0 %v2552
    %3527 = vmatpush.bf16.msra.mxu0 %v2550
    %3528 = vmatpush.bf16.msra.mxu0 %v2548
    %3529 = vmatpush.bf16.msra.mxu0 %v2546
    %3530 = vmatpush.bf16.msra.mxu0 %v2544
    %3531 = vmatpush.bf16.msra.mxu0 %v2542
    %3532 = vmatpush.bf16.msra.mxu0 %v2540
    %3533 = vmatmul.bf16.gmra.mxu0 %v745
    %v3534 = vpop.f32.mrf.mxu0
    %v3535 = vadd.f32 %v3522, %v3534
    %v3536 = vpop.f32.mrf.mxu0
    %3537 = vdwg.mxu0
    %3538 = vmatpush.bf16.msra.mxu0 %v2570
    %3539 = vmatpush.bf16.msra.mxu0 %v2568
    %3540 = vmatpush.bf16.msra.mxu0 %v2566
    %3541 = vmatpush.bf16.msra.mxu0 %v2564
    %3542 = vmatpush.bf16.msra.mxu0 %v2562
    %3543 = vmatpush.bf16.msra.mxu0 %v2560
    %3544 = vmatpush.bf16.msra.mxu0 %v2558
    %3545 = vmatpush.bf16.msra.mxu0 %v2556
    %3546 = vmatmul.bf16.gmra.mxu0 %v746
    %v3547 = vpop.f32.mrf.mxu0
    %v3548 = vadd.f32 %v3535, %v3547
    %v3549 = vpop.f32.mrf.mxu0
    %3550 = vdwg.mxu0
    %3551 = vmatpush.bf16.msra.mxu0 %v2586
    %3552 = vmatpush.bf16.msra.mxu0 %v2584
    %3553 = vmatpush.bf16.msra.mxu0 %v2582
    %3554 = vmatpush.bf16.msra.mxu0 %v2580
    %3555 = vmatpush.bf16.msra.mxu0 %v2578
    %3556 = vmatpush.bf16.msra.mxu0 %v2576
    %3557 = vmatpush.bf16.msra.mxu0 %v2574
    %3558 = vmatpush.bf16.msra.mxu0 %v2572
    %3559 = vmatmul.bf16.gmra.mxu0 %v747
    %v3560 = vpop.f32.mrf.mxu0
    %v3561 = vadd.f32 %v3548, %v3560
    %v3562 = vpop.f32.mrf.mxu0
    %3563 = vdwg.mxu0
    %3564 = vmatpush.bf16.msra.mxu0 %v2602
    %3565 = vmatpush.bf16.msra.mxu0 %v2600
    %3566 = vmatpush.bf16.msra.mxu0 %v2598
    %3567 = vmatpush.bf16.msra.mxu0 %v2596
    %3568 = vmatpush.bf16.msra.mxu0 %v2594
    %3569 = vmatpush.bf16.msra.mxu0 %v2592
    %3570 = vmatpush.bf16.msra.mxu0 %v2590
    %3571 = vmatpush.bf16.msra.mxu0 %v2588
    %3572 = vmatmul.bf16.gmra.mxu0 %v748
    %v3573 = vpop.f32.mrf.mxu0
    %v3574 = vadd.f32 %v3561, %v3573
    %v3575 = vpop.f32.mrf.mxu0
    %3576 = vdwg.mxu0
    %3577 = vmatpush.bf16.msra.mxu0 %v2618
    %3578 = vmatpush.bf16.msra.mxu0 %v2616
    %3579 = vmatpush.bf16.msra.mxu0 %v2614
    %3580 = vmatpush.bf16.msra.mxu0 %v2612
    %3581 = vmatpush.bf16.msra.mxu0 %v2610
    %3582 = vmatpush.bf16.msra.mxu0 %v2608
    %3583 = vmatpush.bf16.msra.mxu0 %v2606
    %3584 = vmatpush.bf16.msra.mxu0 %v2604
    %3585 = vmatmul.bf16.gmra.mxu0 %v749
    %v3586 = vpop.f32.mrf.mxu0
    %v3587 = vadd.f32 %v3574, %v3586
    %v3588 = vpop.f32.mrf.mxu0
    %3589 = vdwg.mxu0
    %3590 = vmatpush.bf16.msra.mxu0 %v2634
    %3591 = vmatpush.bf16.msra.mxu0 %v2632
    %3592 = vmatpush.bf16.msra.mxu0 %v2630
    %3593 = vmatpush.bf16.msra.mxu0 %v2628
    %3594 = vmatpush.bf16.msra.mxu0 %v2626
    %3595 = vmatpush.bf16.msra.mxu0 %v2624
    %3596 = vmatpush.bf16.msra.mxu0 %v2622
    %3597 = vmatpush.bf16.msra.mxu0 %v2620
    %3598 = vmatmul.bf16.gmra.mxu0 %v750
    %v3599 = vpop.f32.mrf.mxu0
    %v3600 = vadd.f32 %v3587, %v3599
    %v3601 = vpop.f32.mrf.mxu0
    %3602 = vdwg.mxu0
    %3603 = vmatpush.bf16.msra.mxu0 %v2650
    %3604 = vmatpush.bf16.msra.mxu0 %v2648
    %3605 = vmatpush.bf16.msra.mxu0 %v2646
    %3606 = vmatpush.bf16.msra.mxu0 %v2644
    %3607 = vmatpush.bf16.msra.mxu0 %v2642
    %3608 = vmatpush.bf16.msra.mxu0 %v2640
    %3609 = vmatpush.bf16.msra.mxu0 %v2638
    %3610 = vmatpush.bf16.msra.mxu0 %v2636
    %3611 = vmatmul.bf16.gmra.mxu0 %v751
    %v3612 = vpop.f32.mrf.mxu0
    %v3613 = vadd.f32 %v3600, %v3612
    %v3614 = vpop.f32.mrf.mxu0
    %3615 = vdwg.mxu0
    %3616 = vmatpush.bf16.msra.mxu0 %v2666
    %3617 = vmatpush.bf16.msra.mxu0 %v2664
    %3618 = vmatpush.bf16.msra.mxu0 %v2662
    %3619 = vmatpush.bf16.msra.mxu0 %v2660
    %3620 = vmatpush.bf16.msra.mxu0 %v2658
    %3621 = vmatpush.bf16.msra.mxu0 %v2656
    %3622 = vmatpush.bf16.msra.mxu0 %v2654
    %3623 = vmatpush.bf16.msra.mxu0 %v2652
    %3624 = vmatmul.bf16.gmra.mxu0 %v752
    %v3625 = vpop.f32.mrf.mxu0
    %v3626 = vadd.f32 %v3613, %v3625
    %v3627 = vpop.f32.mrf.mxu0
    %3628 = vdwg.mxu0
    %3629 = vmatpush.bf16.msra.mxu0 %v2682
    %3630 = vmatpush.bf16.msra.mxu0 %v2680
    %3631 = vmatpush.bf16.msra.mxu0 %v2678
    %3632 = vmatpush.bf16.msra.mxu0 %v2676
    %3633 = vmatpush.bf16.msra.mxu0 %v2674
    %3634 = vmatpush.bf16.msra.mxu0 %v2672
    %3635 = vmatpush.bf16.msra.mxu0 %v2670
    %3636 = vmatpush.bf16.msra.mxu0 %v2668
    %3637 = vmatmul.bf16.gmra.mxu0 %v753
    %v3638 = vpop.f32.mrf.mxu0
    %v3639 = vadd.f32 %v3626, %v3638
    %v3640 = vpop.f32.mrf.mxu0
    %3641 = vdwg.mxu0
    %3642 = vmatpush.bf16.msra.mxu0 %v2698
    %3643 = vmatpush.bf16.msra.mxu0 %v2696
    %3644 = vmatpush.bf16.msra.mxu0 %v2694
    %3645 = vmatpush.bf16.msra.mxu0 %v2692
    %3646 = vmatpush.bf16.msra.mxu0 %v2690
    %3647 = vmatpush.bf16.msra.mxu0 %v2688
    %3648 = vmatpush.bf16.msra.mxu0 %v2686
    %3649 = vmatpush.bf16.msra.mxu0 %v2684
    %3650 = vmatmul.bf16.gmra.mxu0 %v754
    %v3651 = vpop.f32.mrf.mxu0
    %v3652 = vadd.f32 %v3639, %v3651
    %v3653 = vpop.f32.mrf.mxu0
    %3654 = vdwg.mxu0
    %3655 = vmatpush.bf16.msra.mxu0 %v2714
    %3656 = vmatpush.bf16.msra.mxu0 %v2712
    %3657 = vmatpush.bf16.msra.mxu0 %v2710
    %3658 = vmatpush.bf16.msra.mxu0 %v2708
    %3659 = vmatpush.bf16.msra.mxu0 %v2706
    %3660 = vmatpush.bf16.msra.mxu0 %v2704
    %3661 = vmatpush.bf16.msra.mxu0 %v2702
    %3662 = vmatpush.bf16.msra.mxu0 %v2700
    %3663 = vmatmul.bf16.gmra.mxu0 %v755
    %v3664 = vpop.f32.mrf.mxu0
    %v3665 = vadd.f32 %v3652, %v3664
    %v3666 = vpop.f32.mrf.mxu0
    %3667 = vdwg.mxu0
    %3668 = vmatpush.bf16.msra.mxu0 %v2730
    %3669 = vmatpush.bf16.msra.mxu0 %v2728
    %3670 = vmatpush.bf16.msra.mxu0 %v2726
    %3671 = vmatpush.bf16.msra.mxu0 %v2724
    %3672 = vmatpush.bf16.msra.mxu0 %v2722
    %3673 = vmatpush.bf16.msra.mxu0 %v2720
    %3674 = vmatpush.bf16.msra.mxu0 %v2718
    %3675 = vmatpush.bf16.msra.mxu0 %v2716
    %3676 = vmatmul.bf16.gmra.mxu0 %v756
    %v3677 = vpop.f32.mrf.mxu0
    %v3678 = vadd.f32 %v3665, %v3677
    %v3679 = vpop.f32.mrf.mxu0
    %3680 = vdwg.mxu0
    %3681 = vmatpush.bf16.msra.mxu0 %v2746
    %3682 = vmatpush.bf16.msra.mxu0 %v2744
    %3683 = vmatpush.bf16.msra.mxu0 %v2742
    %3684 = vmatpush.bf16.msra.mxu0 %v2740
    %3685 = vmatpush.bf16.msra.mxu0 %v2738
    %3686 = vmatpush.bf16.msra.mxu0 %v2736
    %3687 = vmatpush.bf16.msra.mxu0 %v2734
    %3688 = vmatpush.bf16.msra.mxu0 %v2732
    %3689 = vmatmul.bf16.gmra.mxu0 %v757
    %v3690 = vpop.f32.mrf.mxu0
    %v3691 = vadd.f32 %v3678, %v3690
    %v3692 = vpop.f32.mrf.mxu0
    %3693 = vdwg.mxu0
    %3694 = vmatpush.bf16.msra.mxu0 %v2762
    %3695 = vmatpush.bf16.msra.mxu0 %v2760
    %3696 = vmatpush.bf16.msra.mxu0 %v2758
    %3697 = vmatpush.bf16.msra.mxu0 %v2756
    %3698 = vmatpush.bf16.msra.mxu0 %v2754
    %3699 = vmatpush.bf16.msra.mxu0 %v2752
    %3700 = vmatpush.bf16.msra.mxu0 %v2750
    %3701 = vmatpush.bf16.msra.mxu0 %v2748
    %3702 = vmatmul.bf16.gmra.mxu0 %v758
    %v3703 = vpop.f32.mrf.mxu0
    %v3704 = vadd.f32 %v3691, %v3703
    %v3705 = vpop.f32.mrf.mxu0
    %3706 = vdwg.mxu0
    %3707 = vmatpush.bf16.msra.mxu0 %v2778
    %3708 = vmatpush.bf16.msra.mxu0 %v2776
    %3709 = vmatpush.bf16.msra.mxu0 %v2774
    %3710 = vmatpush.bf16.msra.mxu0 %v2772
    %3711 = vmatpush.bf16.msra.mxu0 %v2770
    %3712 = vmatpush.bf16.msra.mxu0 %v2768
    %3713 = vmatpush.bf16.msra.mxu0 %v2766
    %3714 = vmatpush.bf16.msra.mxu0 %v2764
    %3715 = vmatmul.bf16.gmra.mxu0 %v759
    %v3716 = vpop.f32.mrf.mxu0
    %v3717 = vadd.f32 %v3704, %v3716
    %v3718 = vpop.f32.mrf.mxu0
    %3719 = vdwg.mxu0
    %3720 = vmatpush.bf16.msra.mxu0 %v2794
    %3721 = vmatpush.bf16.msra.mxu0 %v2792
    %3722 = vmatpush.bf16.msra.mxu0 %v2790
    %3723 = vmatpush.bf16.msra.mxu0 %v2788
    %3724 = vmatpush.bf16.msra.mxu0 %v2786
    %3725 = vmatpush.bf16.msra.mxu0 %v2784
    %3726 = vmatpush.bf16.msra.mxu0 %v2782
    %3727 = vmatpush.bf16.msra.mxu0 %v2780
    %3728 = vmatmul.bf16.gmra.mxu0 %v760
    %v3729 = vpop.f32.mrf.mxu0
    %v3730 = vadd.f32 %v3717, %v3729
    %v3731 = vpop.f32.mrf.mxu0
    %3732 = vdwg.mxu0
    %3733 = vmatpush.bf16.msra.mxu0 %v2810
    %3734 = vmatpush.bf16.msra.mxu0 %v2808
    %3735 = vmatpush.bf16.msra.mxu0 %v2806
    %3736 = vmatpush.bf16.msra.mxu0 %v2804
    %3737 = vmatpush.bf16.msra.mxu0 %v2802
    %3738 = vmatpush.bf16.msra.mxu0 %v2800
    %3739 = vmatpush.bf16.msra.mxu0 %v2798
    %3740 = vmatpush.bf16.msra.mxu0 %v2796
    %3741 = vmatmul.bf16.gmra.mxu0 %v761
    %v3742 = vpop.f32.mrf.mxu0
    %v3743 = vadd.f32 %v3730, %v3742
    %v3744 = vpop.f32.mrf.mxu0
    %3745 = vdwg.mxu0
    %3746 = vmatpush.bf16.msra.mxu0 %v2826
    %3747 = vmatpush.bf16.msra.mxu0 %v2824
    %3748 = vmatpush.bf16.msra.mxu0 %v2822
    %3749 = vmatpush.bf16.msra.mxu0 %v2820
    %3750 = vmatpush.bf16.msra.mxu0 %v2818
    %3751 = vmatpush.bf16.msra.mxu0 %v2816
    %3752 = vmatpush.bf16.msra.mxu0 %v2814
    %3753 = vmatpush.bf16.msra.mxu0 %v2812
    %3754 = vmatmul.bf16.gmra.mxu0 %v762
    %v3755 = vpop.f32.mrf.mxu0
    %v3756 = vadd.f32 %v3743, %v3755
    %v3757 = vpop.f32.mrf.mxu0
    %3758 = vdwg.mxu0
    %3759 = vmatpush.bf16.msra.mxu0 %v2842
    %3760 = vmatpush.bf16.msra.mxu0 %v2840
    %3761 = vmatpush.bf16.msra.mxu0 %v2838
    %3762 = vmatpush.bf16.msra.mxu0 %v2836
    %3763 = vmatpush.bf16.msra.mxu0 %v2834
    %3764 = vmatpush.bf16.msra.mxu0 %v2832
    %3765 = vmatpush.bf16.msra.mxu0 %v2830
    %3766 = vmatpush.bf16.msra.mxu0 %v2828
    %3767 = vmatmul.bf16.gmra.mxu0 %v763
    %v3768 = vpop.f32.mrf.mxu0
    %v3769 = vadd.f32 %v3756, %v3768
    %v3770 = vpop.f32.mrf.mxu0
    %3771 = vdwg.mxu0
    %3772 = vmatpush.bf16.msra.mxu0 %v2347
    %3773 = vmatpush.bf16.msra.mxu0 %v2345
    %3774 = vmatpush.bf16.msra.mxu0 %v2343
    %3775 = vmatpush.bf16.msra.mxu0 %v2341
    %3776 = vmatpush.bf16.msra.mxu0 %v2339
    %3777 = vmatpush.bf16.msra.mxu0 %v2337
    %3778 = vmatpush.bf16.msra.mxu0 %v2335
    %3779 = vmatpush.bf16.msra.mxu0 %v2333
    %3780 = vmatmul.bf16.gmra.mxu0 %v732
    %v3781 = vpop.f32.mrf.mxu0
    %v3782 = vadd.f32 %v681, %v3781
    %v3783 = vpop.f32.mrf.mxu0
    %3784 = vdwg.mxu0
    %3785 = vmatpush.bf16.msra.mxu0 %v2363
    %3786 = vmatpush.bf16.msra.mxu0 %v2361
    %3787 = vmatpush.bf16.msra.mxu0 %v2359
    %3788 = vmatpush.bf16.msra.mxu0 %v2357
    %3789 = vmatpush.bf16.msra.mxu0 %v2355
    %3790 = vmatpush.bf16.msra.mxu0 %v2353
    %3791 = vmatpush.bf16.msra.mxu0 %v2351
    %3792 = vmatpush.bf16.msra.mxu0 %v2349
    %3793 = vmatmul.bf16.gmra.mxu0 %v733
    %v3794 = vpop.f32.mrf.mxu0
    %v3795 = vadd.f32 %v3782, %v3794
    %v3796 = vpop.f32.mrf.mxu0
    %3797 = vdwg.mxu0
    %3798 = vmatpush.bf16.msra.mxu0 %v2379
    %3799 = vmatpush.bf16.msra.mxu0 %v2377
    %3800 = vmatpush.bf16.msra.mxu0 %v2375
    %3801 = vmatpush.bf16.msra.mxu0 %v2373
    %3802 = vmatpush.bf16.msra.mxu0 %v2371
    %3803 = vmatpush.bf16.msra.mxu0 %v2369
    %3804 = vmatpush.bf16.msra.mxu0 %v2367
    %3805 = vmatpush.bf16.msra.mxu0 %v2365
    %3806 = vmatmul.bf16.gmra.mxu0 %v734
    %v3807 = vpop.f32.mrf.mxu0
    %v3808 = vadd.f32 %v3795, %v3807
    %v3809 = vpop.f32.mrf.mxu0
    %3810 = vdwg.mxu0
    %3811 = vmatpush.bf16.msra.mxu0 %v2395
    %3812 = vmatpush.bf16.msra.mxu0 %v2393
    %3813 = vmatpush.bf16.msra.mxu0 %v2391
    %3814 = vmatpush.bf16.msra.mxu0 %v2389
    %3815 = vmatpush.bf16.msra.mxu0 %v2387
    %3816 = vmatpush.bf16.msra.mxu0 %v2385
    %3817 = vmatpush.bf16.msra.mxu0 %v2383
    %3818 = vmatpush.bf16.msra.mxu0 %v2381
    %3819 = vmatmul.bf16.gmra.mxu0 %v735
    %v3820 = vpop.f32.mrf.mxu0
    %v3821 = vadd.f32 %v3808, %v3820
    %v3822 = vpop.f32.mrf.mxu0
    %3823 = vdwg.mxu0
    %3824 = vmatpush.bf16.msra.mxu0 %v2411
    %3825 = vmatpush.bf16.msra.mxu0 %v2409
    %3826 = vmatpush.bf16.msra.mxu0 %v2407
    %3827 = vmatpush.bf16.msra.mxu0 %v2405
    %3828 = vmatpush.bf16.msra.mxu0 %v2403
    %3829 = vmatpush.bf16.msra.mxu0 %v2401
    %3830 = vmatpush.bf16.msra.mxu0 %v2399
    %3831 = vmatpush.bf16.msra.mxu0 %v2397
    %3832 = vmatmul.bf16.gmra.mxu0 %v736
    %v3833 = vpop.f32.mrf.mxu0
    %v3834 = vadd.f32 %v3821, %v3833
    %v3835 = vpop.f32.mrf.mxu0
    %3836 = vdwg.mxu0
    %3837 = vmatpush.bf16.msra.mxu0 %v2427
    %3838 = vmatpush.bf16.msra.mxu0 %v2425
    %3839 = vmatpush.bf16.msra.mxu0 %v2423
    %3840 = vmatpush.bf16.msra.mxu0 %v2421
    %3841 = vmatpush.bf16.msra.mxu0 %v2419
    %3842 = vmatpush.bf16.msra.mxu0 %v2417
    %3843 = vmatpush.bf16.msra.mxu0 %v2415
    %3844 = vmatpush.bf16.msra.mxu0 %v2413
    %3845 = vmatmul.bf16.gmra.mxu0 %v737
    %v3846 = vpop.f32.mrf.mxu0
    %v3847 = vadd.f32 %v3834, %v3846
    %v3848 = vpop.f32.mrf.mxu0
    %3849 = vdwg.mxu0
    %3850 = vmatpush.bf16.msra.mxu0 %v2443
    %3851 = vmatpush.bf16.msra.mxu0 %v2441
    %3852 = vmatpush.bf16.msra.mxu0 %v2439
    %3853 = vmatpush.bf16.msra.mxu0 %v2437
    %3854 = vmatpush.bf16.msra.mxu0 %v2435
    %3855 = vmatpush.bf16.msra.mxu0 %v2433
    %3856 = vmatpush.bf16.msra.mxu0 %v2431
    %3857 = vmatpush.bf16.msra.mxu0 %v2429
    %3858 = vmatmul.bf16.gmra.mxu0 %v738
    %v3859 = vpop.f32.mrf.mxu0
    %v3860 = vadd.f32 %v3847, %v3859
    %v3861 = vpop.f32.mrf.mxu0
    %3862 = vdwg.mxu0
    %3863 = vmatpush.bf16.msra.mxu0 %v2459
    %3864 = vmatpush.bf16.msra.mxu0 %v2457
    %3865 = vmatpush.bf16.msra.mxu0 %v2455
    %3866 = vmatpush.bf16.msra.mxu0 %v2453
    %3867 = vmatpush.bf16.msra.mxu0 %v2451
    %3868 = vmatpush.bf16.msra.mxu0 %v2449
    %3869 = vmatpush.bf16.msra.mxu0 %v2447
    %3870 = vmatpush.bf16.msra.mxu0 %v2445
    %3871 = vmatmul.bf16.gmra.mxu0 %v739
    %v3872 = vpop.f32.mrf.mxu0
    %v3873 = vadd.f32 %v3860, %v3872
    %v3874 = vpop.f32.mrf.mxu0
    %3875 = vdwg.mxu0
    %3876 = vmatpush.bf16.msra.mxu0 %v2475
    %3877 = vmatpush.bf16.msra.mxu0 %v2473
    %3878 = vmatpush.bf16.msra.mxu0 %v2471
    %3879 = vmatpush.bf16.msra.mxu0 %v2469
    %3880 = vmatpush.bf16.msra.mxu0 %v2467
    %3881 = vmatpush.bf16.msra.mxu0 %v2465
    %3882 = vmatpush.bf16.msra.mxu0 %v2463
    %3883 = vmatpush.bf16.msra.mxu0 %v2461
    %3884 = vmatmul.bf16.gmra.mxu0 %v740
    %v3885 = vpop.f32.mrf.mxu0
    %v3886 = vadd.f32 %v3873, %v3885
    %v3887 = vpop.f32.mrf.mxu0
    %3888 = vdwg.mxu0
    %3889 = vmatpush.bf16.msra.mxu0 %v2491
    %3890 = vmatpush.bf16.msra.mxu0 %v2489
    %3891 = vmatpush.bf16.msra.mxu0 %v2487
    %3892 = vmatpush.bf16.msra.mxu0 %v2485
    %3893 = vmatpush.bf16.msra.mxu0 %v2483
    %3894 = vmatpush.bf16.msra.mxu0 %v2481
    %3895 = vmatpush.bf16.msra.mxu0 %v2479
    %3896 = vmatpush.bf16.msra.mxu0 %v2477
    %3897 = vmatmul.bf16.gmra.mxu0 %v741
    %v3898 = vpop.f32.mrf.mxu0
    %v3899 = vadd.f32 %v3886, %v3898
    %v3900 = vpop.f32.mrf.mxu0
    %3901 = vdwg.mxu0
    %3902 = vmatpush.bf16.msra.mxu0 %v2507
    %3903 = vmatpush.bf16.msra.mxu0 %v2505
    %3904 = vmatpush.bf16.msra.mxu0 %v2503
    %3905 = vmatpush.bf16.msra.mxu0 %v2501
    %3906 = vmatpush.bf16.msra.mxu0 %v2499
    %3907 = vmatpush.bf16.msra.mxu0 %v2497
    %3908 = vmatpush.bf16.msra.mxu0 %v2495
    %3909 = vmatpush.bf16.msra.mxu0 %v2493
    %3910 = vmatmul.bf16.gmra.mxu0 %v742
    %v3911 = vpop.f32.mrf.mxu0
    %v3912 = vadd.f32 %v3899, %v3911
    %v3913 = vpop.f32.mrf.mxu0
    %3914 = vdwg.mxu0
    %3915 = vmatpush.bf16.msra.mxu0 %v2523
    %3916 = vmatpush.bf16.msra.mxu0 %v2521
    %3917 = vmatpush.bf16.msra.mxu0 %v2519
    %3918 = vmatpush.bf16.msra.mxu0 %v2517
    %3919 = vmatpush.bf16.msra.mxu0 %v2515
    %3920 = vmatpush.bf16.msra.mxu0 %v2513
    %3921 = vmatpush.bf16.msra.mxu0 %v2511
    %3922 = vmatpush.bf16.msra.mxu0 %v2509
    %3923 = vmatmul.bf16.gmra.mxu0 %v743
    %v3924 = vpop.f32.mrf.mxu0
    %v3925 = vadd.f32 %v3912, %v3924
    %v3926 = vpop.f32.mrf.mxu0
    %3927 = vdwg.mxu0
    %3928 = vmatpush.bf16.msra.mxu0 %v2539
    %3929 = vmatpush.bf16.msra.mxu0 %v2537
    %3930 = vmatpush.bf16.msra.mxu0 %v2535
    %3931 = vmatpush.bf16.msra.mxu0 %v2533
    %3932 = vmatpush.bf16.msra.mxu0 %v2531
    %3933 = vmatpush.bf16.msra.mxu0 %v2529
    %3934 = vmatpush.bf16.msra.mxu0 %v2527
    %3935 = vmatpush.bf16.msra.mxu0 %v2525
    %3936 = vmatmul.bf16.gmra.mxu0 %v744
    %v3937 = vpop.f32.mrf.mxu0
    %v3938 = vadd.f32 %v3925, %v3937
    %v3939 = vpop.f32.mrf.mxu0
    %3940 = vdwg.mxu0
    %3941 = vmatpush.bf16.msra.mxu0 %v2555
    %3942 = vmatpush.bf16.msra.mxu0 %v2553
    %3943 = vmatpush.bf16.msra.mxu0 %v2551
    %3944 = vmatpush.bf16.msra.mxu0 %v2549
    %3945 = vmatpush.bf16.msra.mxu0 %v2547
    %3946 = vmatpush.bf16.msra.mxu0 %v2545
    %3947 = vmatpush.bf16.msra.mxu0 %v2543
    %3948 = vmatpush.bf16.msra.mxu0 %v2541
    %3949 = vmatmul.bf16.gmra.mxu0 %v745
    %v3950 = vpop.f32.mrf.mxu0
    %v3951 = vadd.f32 %v3938, %v3950
    %v3952 = vpop.f32.mrf.mxu0
    %3953 = vdwg.mxu0
    %3954 = vmatpush.bf16.msra.mxu0 %v2571
    %3955 = vmatpush.bf16.msra.mxu0 %v2569
    %3956 = vmatpush.bf16.msra.mxu0 %v2567
    %3957 = vmatpush.bf16.msra.mxu0 %v2565
    %3958 = vmatpush.bf16.msra.mxu0 %v2563
    %3959 = vmatpush.bf16.msra.mxu0 %v2561
    %3960 = vmatpush.bf16.msra.mxu0 %v2559
    %3961 = vmatpush.bf16.msra.mxu0 %v2557
    %3962 = vmatmul.bf16.gmra.mxu0 %v746
    %v3963 = vpop.f32.mrf.mxu0
    %v3964 = vadd.f32 %v3951, %v3963
    %v3965 = vpop.f32.mrf.mxu0
    %3966 = vdwg.mxu0
    %3967 = vmatpush.bf16.msra.mxu0 %v2587
    %3968 = vmatpush.bf16.msra.mxu0 %v2585
    %3969 = vmatpush.bf16.msra.mxu0 %v2583
    %3970 = vmatpush.bf16.msra.mxu0 %v2581
    %3971 = vmatpush.bf16.msra.mxu0 %v2579
    %3972 = vmatpush.bf16.msra.mxu0 %v2577
    %3973 = vmatpush.bf16.msra.mxu0 %v2575
    %3974 = vmatpush.bf16.msra.mxu0 %v2573
    %3975 = vmatmul.bf16.gmra.mxu0 %v747
    %v3976 = vpop.f32.mrf.mxu0
    %v3977 = vadd.f32 %v3964, %v3976
    %v3978 = vpop.f32.mrf.mxu0
    %3979 = vdwg.mxu0
    %3980 = vmatpush.bf16.msra.mxu0 %v2603
    %3981 = vmatpush.bf16.msra.mxu0 %v2601
    %3982 = vmatpush.bf16.msra.mxu0 %v2599
    %3983 = vmatpush.bf16.msra.mxu0 %v2597
    %3984 = vmatpush.bf16.msra.mxu0 %v2595
    %3985 = vmatpush.bf16.msra.mxu0 %v2593
    %3986 = vmatpush.bf16.msra.mxu0 %v2591
    %3987 = vmatpush.bf16.msra.mxu0 %v2589
    %3988 = vmatmul.bf16.gmra.mxu0 %v748
    %v3989 = vpop.f32.mrf.mxu0
    %v3990 = vadd.f32 %v3977, %v3989
    %v3991 = vpop.f32.mrf.mxu0
    %3992 = vdwg.mxu0
    %3993 = vmatpush.bf16.msra.mxu0 %v2619
    %3994 = vmatpush.bf16.msra.mxu0 %v2617
    %3995 = vmatpush.bf16.msra.mxu0 %v2615
    %3996 = vmatpush.bf16.msra.mxu0 %v2613
    %3997 = vmatpush.bf16.msra.mxu0 %v2611
    %3998 = vmatpush.bf16.msra.mxu0 %v2609
    %3999 = vmatpush.bf16.msra.mxu0 %v2607
    %4000 = vmatpush.bf16.msra.mxu0 %v2605
    %4001 = vmatmul.bf16.gmra.mxu0 %v749
    %v4002 = vpop.f32.mrf.mxu0
    %v4003 = vadd.f32 %v3990, %v4002
    %v4004 = vpop.f32.mrf.mxu0
    %4005 = vdwg.mxu0
    %4006 = vmatpush.bf16.msra.mxu0 %v2635
    %4007 = vmatpush.bf16.msra.mxu0 %v2633
    %4008 = vmatpush.bf16.msra.mxu0 %v2631
    %4009 = vmatpush.bf16.msra.mxu0 %v2629
    %4010 = vmatpush.bf16.msra.mxu0 %v2627
    %4011 = vmatpush.bf16.msra.mxu0 %v2625
    %4012 = vmatpush.bf16.msra.mxu0 %v2623
    %4013 = vmatpush.bf16.msra.mxu0 %v2621
    %4014 = vmatmul.bf16.gmra.mxu0 %v750
    %v4015 = vpop.f32.mrf.mxu0
    %v4016 = vadd.f32 %v4003, %v4015
    %v4017 = vpop.f32.mrf.mxu0
    %4018 = vdwg.mxu0
    %4019 = vmatpush.bf16.msra.mxu0 %v2651
    %4020 = vmatpush.bf16.msra.mxu0 %v2649
    %4021 = vmatpush.bf16.msra.mxu0 %v2647
    %4022 = vmatpush.bf16.msra.mxu0 %v2645
    %4023 = vmatpush.bf16.msra.mxu0 %v2643
    %4024 = vmatpush.bf16.msra.mxu0 %v2641
    %4025 = vmatpush.bf16.msra.mxu0 %v2639
    %4026 = vmatpush.bf16.msra.mxu0 %v2637
    %4027 = vmatmul.bf16.gmra.mxu0 %v751
    %v4028 = vpop.f32.mrf.mxu0
    %v4029 = vadd.f32 %v4016, %v4028
    %v4030 = vpop.f32.mrf.mxu0
    %4031 = vdwg.mxu0
    %4032 = vmatpush.bf16.msra.mxu0 %v2667
    %4033 = vmatpush.bf16.msra.mxu0 %v2665
    %4034 = vmatpush.bf16.msra.mxu0 %v2663
    %4035 = vmatpush.bf16.msra.mxu0 %v2661
    %4036 = vmatpush.bf16.msra.mxu0 %v2659
    %4037 = vmatpush.bf16.msra.mxu0 %v2657
    %4038 = vmatpush.bf16.msra.mxu0 %v2655
    %4039 = vmatpush.bf16.msra.mxu0 %v2653
    %4040 = vmatmul.bf16.gmra.mxu0 %v752
    %v4041 = vpop.f32.mrf.mxu0
    %v4042 = vadd.f32 %v4029, %v4041
    %v4043 = vpop.f32.mrf.mxu0
    %4044 = vdwg.mxu0
    %4045 = vmatpush.bf16.msra.mxu0 %v2683
    %4046 = vmatpush.bf16.msra.mxu0 %v2681
    %4047 = vmatpush.bf16.msra.mxu0 %v2679
    %4048 = vmatpush.bf16.msra.mxu0 %v2677
    %4049 = vmatpush.bf16.msra.mxu0 %v2675
    %4050 = vmatpush.bf16.msra.mxu0 %v2673
    %4051 = vmatpush.bf16.msra.mxu0 %v2671
    %4052 = vmatpush.bf16.msra.mxu0 %v2669
    %4053 = vmatmul.bf16.gmra.mxu0 %v753
    %v4054 = vpop.f32.mrf.mxu0
    %v4055 = vadd.f32 %v4042, %v4054
    %v4056 = vpop.f32.mrf.mxu0
    %4057 = vdwg.mxu0
    %4058 = vmatpush.bf16.msra.mxu0 %v2699
    %4059 = vmatpush.bf16.msra.mxu0 %v2697
    %4060 = vmatpush.bf16.msra.mxu0 %v2695
    %4061 = vmatpush.bf16.msra.mxu0 %v2693
    %4062 = vmatpush.bf16.msra.mxu0 %v2691
    %4063 = vmatpush.bf16.msra.mxu0 %v2689
    %4064 = vmatpush.bf16.msra.mxu0 %v2687
    %4065 = vmatpush.bf16.msra.mxu0 %v2685
    %4066 = vmatmul.bf16.gmra.mxu0 %v754
    %v4067 = vpop.f32.mrf.mxu0
    %v4068 = vadd.f32 %v4055, %v4067
    %v4069 = vpop.f32.mrf.mxu0
    %4070 = vdwg.mxu0
    %4071 = vmatpush.bf16.msra.mxu0 %v2715
    %4072 = vmatpush.bf16.msra.mxu0 %v2713
    %4073 = vmatpush.bf16.msra.mxu0 %v2711
    %4074 = vmatpush.bf16.msra.mxu0 %v2709
    %4075 = vmatpush.bf16.msra.mxu0 %v2707
    %4076 = vmatpush.bf16.msra.mxu0 %v2705
    %4077 = vmatpush.bf16.msra.mxu0 %v2703
    %4078 = vmatpush.bf16.msra.mxu0 %v2701
    %4079 = vmatmul.bf16.gmra.mxu0 %v755
    %v4080 = vpop.f32.mrf.mxu0
    %v4081 = vadd.f32 %v4068, %v4080
    %v4082 = vpop.f32.mrf.mxu0
    %4083 = vdwg.mxu0
    %4084 = vmatpush.bf16.msra.mxu0 %v2731
    %4085 = vmatpush.bf16.msra.mxu0 %v2729
    %4086 = vmatpush.bf16.msra.mxu0 %v2727
    %4087 = vmatpush.bf16.msra.mxu0 %v2725
    %4088 = vmatpush.bf16.msra.mxu0 %v2723
    %4089 = vmatpush.bf16.msra.mxu0 %v2721
    %4090 = vmatpush.bf16.msra.mxu0 %v2719
    %4091 = vmatpush.bf16.msra.mxu0 %v2717
    %4092 = vmatmul.bf16.gmra.mxu0 %v756
    %v4093 = vpop.f32.mrf.mxu0
    %v4094 = vadd.f32 %v4081, %v4093
    %v4095 = vpop.f32.mrf.mxu0
    %4096 = vdwg.mxu0
    %4097 = vmatpush.bf16.msra.mxu0 %v2747
    %4098 = vmatpush.bf16.msra.mxu0 %v2745
    %4099 = vmatpush.bf16.msra.mxu0 %v2743
    %4100 = vmatpush.bf16.msra.mxu0 %v2741
    %4101 = vmatpush.bf16.msra.mxu0 %v2739
    %4102 = vmatpush.bf16.msra.mxu0 %v2737
    %4103 = vmatpush.bf16.msra.mxu0 %v2735
    %4104 = vmatpush.bf16.msra.mxu0 %v2733
    %4105 = vmatmul.bf16.gmra.mxu0 %v757
    %v4106 = vpop.f32.mrf.mxu0
    %v4107 = vadd.f32 %v4094, %v4106
    %v4108 = vpop.f32.mrf.mxu0
    %4109 = vdwg.mxu0
    %4110 = vmatpush.bf16.msra.mxu0 %v2763
    %4111 = vmatpush.bf16.msra.mxu0 %v2761
    %4112 = vmatpush.bf16.msra.mxu0 %v2759
    %4113 = vmatpush.bf16.msra.mxu0 %v2757
    %4114 = vmatpush.bf16.msra.mxu0 %v2755
    %4115 = vmatpush.bf16.msra.mxu0 %v2753
    %4116 = vmatpush.bf16.msra.mxu0 %v2751
    %4117 = vmatpush.bf16.msra.mxu0 %v2749
    %4118 = vmatmul.bf16.gmra.mxu0 %v758
    %v4119 = vpop.f32.mrf.mxu0
    %v4120 = vadd.f32 %v4107, %v4119
    %v4121 = vpop.f32.mrf.mxu0
    %4122 = vdwg.mxu0
    %4123 = vmatpush.bf16.msra.mxu0 %v2779
    %4124 = vmatpush.bf16.msra.mxu0 %v2777
    %4125 = vmatpush.bf16.msra.mxu0 %v2775
    %4126 = vmatpush.bf16.msra.mxu0 %v2773
    %4127 = vmatpush.bf16.msra.mxu0 %v2771
    %4128 = vmatpush.bf16.msra.mxu0 %v2769
    %4129 = vmatpush.bf16.msra.mxu0 %v2767
    %4130 = vmatpush.bf16.msra.mxu0 %v2765
    %4131 = vmatmul.bf16.gmra.mxu0 %v759
    %v4132 = vpop.f32.mrf.mxu0
    %v4133 = vadd.f32 %v4120, %v4132
    %v4134 = vpop.f32.mrf.mxu0
    %4135 = vdwg.mxu0
    %4136 = vmatpush.bf16.msra.mxu0 %v2795
    %4137 = vmatpush.bf16.msra.mxu0 %v2793
    %4138 = vmatpush.bf16.msra.mxu0 %v2791
    %4139 = vmatpush.bf16.msra.mxu0 %v2789
    %4140 = vmatpush.bf16.msra.mxu0 %v2787
    %4141 = vmatpush.bf16.msra.mxu0 %v2785
    %4142 = vmatpush.bf16.msra.mxu0 %v2783
    %4143 = vmatpush.bf16.msra.mxu0 %v2781
    %4144 = vmatmul.bf16.gmra.mxu0 %v760
    %v4145 = vpop.f32.mrf.mxu0
    %v4146 = vadd.f32 %v4133, %v4145
    %v4147 = vpop.f32.mrf.mxu0
    %4148 = vdwg.mxu0
    %4149 = vmatpush.bf16.msra.mxu0 %v2811
    %4150 = vmatpush.bf16.msra.mxu0 %v2809
    %4151 = vmatpush.bf16.msra.mxu0 %v2807
    %4152 = vmatpush.bf16.msra.mxu0 %v2805
    %4153 = vmatpush.bf16.msra.mxu0 %v2803
    %4154 = vmatpush.bf16.msra.mxu0 %v2801
    %4155 = vmatpush.bf16.msra.mxu0 %v2799
    %4156 = vmatpush.bf16.msra.mxu0 %v2797
    %4157 = vmatmul.bf16.gmra.mxu0 %v761
    %v4158 = vpop.f32.mrf.mxu0
    %v4159 = vadd.f32 %v4146, %v4158
    %v4160 = vpop.f32.mrf.mxu0
    %4161 = vdwg.mxu0
    %4162 = vmatpush.bf16.msra.mxu0 %v2827
    %4163 = vmatpush.bf16.msra.mxu0 %v2825
    %4164 = vmatpush.bf16.msra.mxu0 %v2823
    %4165 = vmatpush.bf16.msra.mxu0 %v2821
    %4166 = vmatpush.bf16.msra.mxu0 %v2819
    %4167 = vmatpush.bf16.msra.mxu0 %v2817
    %4168 = vmatpush.bf16.msra.mxu0 %v2815
    %4169 = vmatpush.bf16.msra.mxu0 %v2813
    %4170 = vmatmul.bf16.gmra.mxu0 %v762
    %v4171 = vpop.f32.mrf.mxu0
    %v4172 = vadd.f32 %v4159, %v4171
    %v4173 = vpop.f32.mrf.mxu0
    %4174 = vdwg.mxu0
    %4175 = vmatpush.bf16.msra.mxu0 %v2843
    %4176 = vmatpush.bf16.msra.mxu0 %v2841
    %4177 = vmatpush.bf16.msra.mxu0 %v2839
    %4178 = vmatpush.bf16.msra.mxu0 %v2837
    %4179 = vmatpush.bf16.msra.mxu0 %v2835
    %4180 = vmatpush.bf16.msra.mxu0 %v2833
    %4181 = vmatpush.bf16.msra.mxu0 %v2831
    %4182 = vmatpush.bf16.msra.mxu0 %v2829
    %4183 = vmatmul.bf16.gmra.mxu0 %v763
    %v4184 = vpop.f32.mrf.mxu0
    %v4185 = vadd.f32 %v4172, %v4184
    %v4186 = vpop.f32.mrf.mxu0
    %4187 = vdwg.mxu0
    %v4188 = vld [vmem:[#allocation4] sm:$0xff]
    %v4189 = vld [vmem:[#allocation4 + $0x8] sm:$0xff]
    %v4190 = vld [vmem:[#allocation4 + $0x10] sm:$0xff]
    %v4191 = vld [vmem:[#allocation4 + $0x18] sm:$0xff]
    %v4192 = vld [vmem:[#allocation4 + $0x20] sm:$0xff]
    %v4193 = vld [vmem:[#allocation4 + $0x28] sm:$0xff]
    %v4194 = vld [vmem:[#allocation4 + $0x30] sm:$0xff]
    %v4195 = vld [vmem:[#allocation4 + $0x38] sm:$0xff]
    %v4196 = vld [vmem:[#allocation4 + $0x40] sm:$0xff]
    %v4197 = vld [vmem:[#allocation4 + $0x48] sm:$0xff]
    %v4198 = vld [vmem:[#allocation4 + $0x50] sm:$0xff]
    %v4199 = vld [vmem:[#allocation4 + $0x58] sm:$0xff]
    %v4200 = vld [vmem:[#allocation4 + $0x60] sm:$0xff]
    %v4201 = vld [vmem:[#allocation4 + $0x68] sm:$0xff]
    %v4202 = vld [vmem:[#allocation4 + $0x70] sm:$0xff]
    %v4203 = vld [vmem:[#allocation4 + $0x78] sm:$0xff]
    %v4220 = vunpack.c.l.b16 %v4188
    %v4221 = vunpack.c.h.b16 %v4188
    %v4222 = vunpack.c.l.b16 %v4189
    %v4223 = vunpack.c.h.b16 %v4189
    %v4224 = vunpack.c.l.b16 %v4190
    %v4225 = vunpack.c.h.b16 %v4190
    %v4226 = vunpack.c.l.b16 %v4191
    %v4227 = vunpack.c.h.b16 %v4191
    %v4228 = vunpack.c.l.b16 %v4192
    %v4229 = vunpack.c.h.b16 %v4192
    %v4230 = vunpack.c.l.b16 %v4193
    %v4231 = vunpack.c.h.b16 %v4193
    %v4232 = vunpack.c.l.b16 %v4194
    %v4233 = vunpack.c.h.b16 %v4194
    %v4234 = vunpack.c.l.b16 %v4195
    %v4235 = vunpack.c.h.b16 %v4195
    %v4236 = vunpack.c.l.b16 %v4196
    %v4237 = vunpack.c.h.b16 %v4196
    %v4238 = vunpack.c.l.b16 %v4197
    %v4239 = vunpack.c.h.b16 %v4197
    %v4240 = vunpack.c.l.b16 %v4198
    %v4241 = vunpack.c.h.b16 %v4198
    %v4242 = vunpack.c.l.b16 %v4199
    %v4243 = vunpack.c.h.b16 %v4199
    %v4244 = vunpack.c.l.b16 %v4200
    %v4245 = vunpack.c.h.b16 %v4200
    %v4246 = vunpack.c.l.b16 %v4201
    %v4247 = vunpack.c.h.b16 %v4201
    %v4248 = vunpack.c.l.b16 %v4202
    %v4249 = vunpack.c.h.b16 %v4202
    %v4250 = vunpack.c.l.b16 %v4203
    %v4251 = vunpack.c.h.b16 %v4203
    %v4252 = vpack.c.b16 %v4220, %v4220
    %v4253 = vpack.c.b16 %v4221, %v4221
    %v4254 = vpack.c.b16 %v4222, %v4222
    %v4255 = vpack.c.b16 %v4223, %v4223
    %v4256 = vpack.c.b16 %v4224, %v4224
    %v4257 = vpack.c.b16 %v4225, %v4225
    %v4258 = vpack.c.b16 %v4226, %v4226
    %v4259 = vpack.c.b16 %v4227, %v4227
    %v4260 = vpack.c.b16 %v4228, %v4228
    %v4261 = vpack.c.b16 %v4229, %v4229
    %v4262 = vpack.c.b16 %v4230, %v4230
    %v4263 = vpack.c.b16 %v4231, %v4231
    %v4264 = vpack.c.b16 %v4232, %v4232
    %v4265 = vpack.c.b16 %v4233, %v4233
    %v4266 = vpack.c.b16 %v4234, %v4234
    %v4267 = vpack.c.b16 %v4235, %v4235
    %v4268 = vpack.c.b16 %v4236, %v4236
    %v4269 = vpack.c.b16 %v4237, %v4237
    %v4270 = vpack.c.b16 %v4238, %v4238
    %v4271 = vpack.c.b16 %v4239, %v4239
    %v4272 = vpack.c.b16 %v4240, %v4240
    %v4273 = vpack.c.b16 %v4241, %v4241
    %v4274 = vpack.c.b16 %v4242, %v4242
    %v4275 = vpack.c.b16 %v4243, %v4243
    %v4276 = vpack.c.b16 %v4244, %v4244
    %v4277 = vpack.c.b16 %v4245, %v4245
    %v4278 = vpack.c.b16 %v4246, %v4246
    %v4279 = vpack.c.b16 %v4247, %v4247
    %v4280 = vpack.c.b16 %v4248, %v4248
    %v4281 = vpack.c.b16 %v4249, %v4249
    %v4282 = vpack.c.b16 %v4250, %v4250
    %v4283 = vpack.c.b16 %v4251, %v4251
    %4316 = vmatpush.bf16.msra.mxu0 %v2346
    %4317 = vmatpush.bf16.msra.mxu0 %v2344
    %4318 = vmatpush.bf16.msra.mxu0 %v2342
    %4319 = vmatpush.bf16.msra.mxu0 %v2340
    %4320 = vmatpush.bf16.msra.mxu0 %v2338
    %4321 = vmatpush.bf16.msra.mxu0 %v2336
    %4322 = vmatpush.bf16.msra.mxu0 %v2334
    %4323 = vmatpush.bf16.msra.mxu0 %v2332
    %4324 = vmatmul.bf16.gmra.mxu0 %v4252
    %v4325 = vpop.f32.mrf.mxu0
    %v4326 = vadd.f32 %v680, %v4325
    %v4327 = vpop.f32.mrf.mxu0
    %4328 = vdwg.mxu0
    %4329 = vmatpush.bf16.msra.mxu0 %v2362
    %4330 = vmatpush.bf16.msra.mxu0 %v2360
    %4331 = vmatpush.bf16.msra.mxu0 %v2358
    %4332 = vmatpush.bf16.msra.mxu0 %v2356
    %4333 = vmatpush.bf16.msra.mxu0 %v2354
    %4334 = vmatpush.bf16.msra.mxu0 %v2352
    %4335 = vmatpush.bf16.msra.mxu0 %v2350
    %4336 = vmatpush.bf16.msra.mxu0 %v2348
    %4337 = vmatmul.bf16.gmra.mxu0 %v4253
    %v4338 = vpop.f32.mrf.mxu0
    %v4339 = vadd.f32 %v4326, %v4338
    %v4340 = vpop.f32.mrf.mxu0
    %4341 = vdwg.mxu0
    %4342 = vmatpush.bf16.msra.mxu0 %v2378
    %4343 = vmatpush.bf16.msra.mxu0 %v2376
    %4344 = vmatpush.bf16.msra.mxu0 %v2374
    %4345 = vmatpush.bf16.msra.mxu0 %v2372
    %4346 = vmatpush.bf16.msra.mxu0 %v2370
    %4347 = vmatpush.bf16.msra.mxu0 %v2368
    %4348 = vmatpush.bf16.msra.mxu0 %v2366
    %4349 = vmatpush.bf16.msra.mxu0 %v2364
    %4350 = vmatmul.bf16.gmra.mxu0 %v4254
    %v4351 = vpop.f32.mrf.mxu0
    %v4352 = vadd.f32 %v4339, %v4351
    %v4353 = vpop.f32.mrf.mxu0
    %4354 = vdwg.mxu0
    %4355 = vmatpush.bf16.msra.mxu0 %v2394
    %4356 = vmatpush.bf16.msra.mxu0 %v2392
    %4357 = vmatpush.bf16.msra.mxu0 %v2390
    %4358 = vmatpush.bf16.msra.mxu0 %v2388
    %4359 = vmatpush.bf16.msra.mxu0 %v2386
    %4360 = vmatpush.bf16.msra.mxu0 %v2384
    %4361 = vmatpush.bf16.msra.mxu0 %v2382
    %4362 = vmatpush.bf16.msra.mxu0 %v2380
    %4363 = vmatmul.bf16.gmra.mxu0 %v4255
    %v4364 = vpop.f32.mrf.mxu0
    %v4365 = vadd.f32 %v4352, %v4364
    %v4366 = vpop.f32.mrf.mxu0
    %4367 = vdwg.mxu0
    %4368 = vmatpush.bf16.msra.mxu0 %v2410
    %4369 = vmatpush.bf16.msra.mxu0 %v2408
    %4370 = vmatpush.bf16.msra.mxu0 %v2406
    %4371 = vmatpush.bf16.msra.mxu0 %v2404
    %4372 = vmatpush.bf16.msra.mxu0 %v2402
    %4373 = vmatpush.bf16.msra.mxu0 %v2400
    %4374 = vmatpush.bf16.msra.mxu0 %v2398
    %4375 = vmatpush.bf16.msra.mxu0 %v2396
    %4376 = vmatmul.bf16.gmra.mxu0 %v4256
    %v4377 = vpop.f32.mrf.mxu0
    %v4378 = vadd.f32 %v4365, %v4377
    %v4379 = vpop.f32.mrf.mxu0
    %4380 = vdwg.mxu0
    %4381 = vmatpush.bf16.msra.mxu0 %v2426
    %4382 = vmatpush.bf16.msra.mxu0 %v2424
    %4383 = vmatpush.bf16.msra.mxu0 %v2422
    %4384 = vmatpush.bf16.msra.mxu0 %v2420
    %4385 = vmatpush.bf16.msra.mxu0 %v2418
    %4386 = vmatpush.bf16.msra.mxu0 %v2416
    %4387 = vmatpush.bf16.msra.mxu0 %v2414
    %4388 = vmatpush.bf16.msra.mxu0 %v2412
    %4389 = vmatmul.bf16.gmra.mxu0 %v4257
    %v4390 = vpop.f32.mrf.mxu0
    %v4391 = vadd.f32 %v4378, %v4390
    %v4392 = vpop.f32.mrf.mxu0
    %4393 = vdwg.mxu0
    %4394 = vmatpush.bf16.msra.mxu0 %v2442
    %4395 = vmatpush.bf16.msra.mxu0 %v2440
    %4396 = vmatpush.bf16.msra.mxu0 %v2438
    %4397 = vmatpush.bf16.msra.mxu0 %v2436
    %4398 = vmatpush.bf16.msra.mxu0 %v2434
    %4399 = vmatpush.bf16.msra.mxu0 %v2432
    %4400 = vmatpush.bf16.msra.mxu0 %v2430
    %4401 = vmatpush.bf16.msra.mxu0 %v2428
    %4402 = vmatmul.bf16.gmra.mxu0 %v4258
    %v4403 = vpop.f32.mrf.mxu0
    %v4404 = vadd.f32 %v4391, %v4403
    %v4405 = vpop.f32.mrf.mxu0
    %4406 = vdwg.mxu0
    %4407 = vmatpush.bf16.msra.mxu0 %v2458
    %4408 = vmatpush.bf16.msra.mxu0 %v2456
    %4409 = vmatpush.bf16.msra.mxu0 %v2454
    %4410 = vmatpush.bf16.msra.mxu0 %v2452
    %4411 = vmatpush.bf16.msra.mxu0 %v2450
    %4412 = vmatpush.bf16.msra.mxu0 %v2448
    %4413 = vmatpush.bf16.msra.mxu0 %v2446
    %4414 = vmatpush.bf16.msra.mxu0 %v2444
    %4415 = vmatmul.bf16.gmra.mxu0 %v4259
    %v4416 = vpop.f32.mrf.mxu0
    %v4417 = vadd.f32 %v4404, %v4416
    %v4418 = vpop.f32.mrf.mxu0
    %4419 = vdwg.mxu0
    %4420 = vmatpush.bf16.msra.mxu0 %v2474
    %4421 = vmatpush.bf16.msra.mxu0 %v2472
    %4422 = vmatpush.bf16.msra.mxu0 %v2470
    %4423 = vmatpush.bf16.msra.mxu0 %v2468
    %4424 = vmatpush.bf16.msra.mxu0 %v2466
    %4425 = vmatpush.bf16.msra.mxu0 %v2464
    %4426 = vmatpush.bf16.msra.mxu0 %v2462
    %4427 = vmatpush.bf16.msra.mxu0 %v2460
    %4428 = vmatmul.bf16.gmra.mxu0 %v4260
    %v4429 = vpop.f32.mrf.mxu0
    %v4430 = vadd.f32 %v4417, %v4429
    %v4431 = vpop.f32.mrf.mxu0
    %4432 = vdwg.mxu0
    %4433 = vmatpush.bf16.msra.mxu0 %v2490
    %4434 = vmatpush.bf16.msra.mxu0 %v2488
    %4435 = vmatpush.bf16.msra.mxu0 %v2486
    %4436 = vmatpush.bf16.msra.mxu0 %v2484
    %4437 = vmatpush.bf16.msra.mxu0 %v2482
    %4438 = vmatpush.bf16.msra.mxu0 %v2480
    %4439 = vmatpush.bf16.msra.mxu0 %v2478
    %4440 = vmatpush.bf16.msra.mxu0 %v2476
    %4441 = vmatmul.bf16.gmra.mxu0 %v4261
    %v4442 = vpop.f32.mrf.mxu0
    %v4443 = vadd.f32 %v4430, %v4442
    %v4444 = vpop.f32.mrf.mxu0
    %4445 = vdwg.mxu0
    %4446 = vmatpush.bf16.msra.mxu0 %v2506
    %4447 = vmatpush.bf16.msra.mxu0 %v2504
    %4448 = vmatpush.bf16.msra.mxu0 %v2502
    %4449 = vmatpush.bf16.msra.mxu0 %v2500
    %4450 = vmatpush.bf16.msra.mxu0 %v2498
    %4451 = vmatpush.bf16.msra.mxu0 %v2496
    %4452 = vmatpush.bf16.msra.mxu0 %v2494
    %4453 = vmatpush.bf16.msra.mxu0 %v2492
    %4454 = vmatmul.bf16.gmra.mxu0 %v4262
    %v4455 = vpop.f32.mrf.mxu0
    %v4456 = vadd.f32 %v4443, %v4455
    %v4457 = vpop.f32.mrf.mxu0
    %4458 = vdwg.mxu0
    %4459 = vmatpush.bf16.msra.mxu0 %v2522
    %4460 = vmatpush.bf16.msra.mxu0 %v2520
    %4461 = vmatpush.bf16.msra.mxu0 %v2518
    %4462 = vmatpush.bf16.msra.mxu0 %v2516
    %4463 = vmatpush.bf16.msra.mxu0 %v2514
    %4464 = vmatpush.bf16.msra.mxu0 %v2512
    %4465 = vmatpush.bf16.msra.mxu0 %v2510
    %4466 = vmatpush.bf16.msra.mxu0 %v2508
    %4467 = vmatmul.bf16.gmra.mxu0 %v4263
    %v4468 = vpop.f32.mrf.mxu0
    %v4469 = vadd.f32 %v4456, %v4468
    %v4470 = vpop.f32.mrf.mxu0
    %4471 = vdwg.mxu0
    %4472 = vmatpush.bf16.msra.mxu0 %v2538
    %4473 = vmatpush.bf16.msra.mxu0 %v2536
    %4474 = vmatpush.bf16.msra.mxu0 %v2534
    %4475 = vmatpush.bf16.msra.mxu0 %v2532
    %4476 = vmatpush.bf16.msra.mxu0 %v2530
    %4477 = vmatpush.bf16.msra.mxu0 %v2528
    %4478 = vmatpush.bf16.msra.mxu0 %v2526
    %4479 = vmatpush.bf16.msra.mxu0 %v2524
    %4480 = vmatmul.bf16.gmra.mxu0 %v4264
    %v4481 = vpop.f32.mrf.mxu0
    %v4482 = vadd.f32 %v4469, %v4481
    %v4483 = vpop.f32.mrf.mxu0
    %4484 = vdwg.mxu0
    %4485 = vmatpush.bf16.msra.mxu0 %v2554
    %4486 = vmatpush.bf16.msra.mxu0 %v2552
    %4487 = vmatpush.bf16.msra.mxu0 %v2550
    %4488 = vmatpush.bf16.msra.mxu0 %v2548
    %4489 = vmatpush.bf16.msra.mxu0 %v2546
    %4490 = vmatpush.bf16.msra.mxu0 %v2544
    %4491 = vmatpush.bf16.msra.mxu0 %v2542
    %4492 = vmatpush.bf16.msra.mxu0 %v2540
    %4493 = vmatmul.bf16.gmra.mxu0 %v4265
    %v4494 = vpop.f32.mrf.mxu0
    %v4495 = vadd.f32 %v4482, %v4494
    %v4496 = vpop.f32.mrf.mxu0
    %4497 = vdwg.mxu0
    %4498 = vmatpush.bf16.msra.mxu0 %v2570
    %4499 = vmatpush.bf16.msra.mxu0 %v2568
    %4500 = vmatpush.bf16.msra.mxu0 %v2566
    %4501 = vmatpush.bf16.msra.mxu0 %v2564
    %4502 = vmatpush.bf16.msra.mxu0 %v2562
    %4503 = vmatpush.bf16.msra.mxu0 %v2560
    %4504 = vmatpush.bf16.msra.mxu0 %v2558
    %4505 = vmatpush.bf16.msra.mxu0 %v2556
    %4506 = vmatmul.bf16.gmra.mxu0 %v4266
    %v4507 = vpop.f32.mrf.mxu0
    %v4508 = vadd.f32 %v4495, %v4507
    %v4509 = vpop.f32.mrf.mxu0
    %4510 = vdwg.mxu0
    %4511 = vmatpush.bf16.msra.mxu0 %v2586
    %4512 = vmatpush.bf16.msra.mxu0 %v2584
    %4513 = vmatpush.bf16.msra.mxu0 %v2582
    %4514 = vmatpush.bf16.msra.mxu0 %v2580
    %4515 = vmatpush.bf16.msra.mxu0 %v2578
    %4516 = vmatpush.bf16.msra.mxu0 %v2576
    %4517 = vmatpush.bf16.msra.mxu0 %v2574
    %4518 = vmatpush.bf16.msra.mxu0 %v2572
    %4519 = vmatmul.bf16.gmra.mxu0 %v4267
    %v4520 = vpop.f32.mrf.mxu0
    %v4521 = vadd.f32 %v4508, %v4520
    %v4522 = vpop.f32.mrf.mxu0
    %4523 = vdwg.mxu0
    %4524 = vmatpush.bf16.msra.mxu0 %v2602
    %4525 = vmatpush.bf16.msra.mxu0 %v2600
    %4526 = vmatpush.bf16.msra.mxu0 %v2598
    %4527 = vmatpush.bf16.msra.mxu0 %v2596
    %4528 = vmatpush.bf16.msra.mxu0 %v2594
    %4529 = vmatpush.bf16.msra.mxu0 %v2592
    %4530 = vmatpush.bf16.msra.mxu0 %v2590
    %4531 = vmatpush.bf16.msra.mxu0 %v2588
    %4532 = vmatmul.bf16.gmra.mxu0 %v4268
    %v4533 = vpop.f32.mrf.mxu0
    %v4534 = vadd.f32 %v4521, %v4533
    %v4535 = vpop.f32.mrf.mxu0
    %4536 = vdwg.mxu0
    %4537 = vmatpush.bf16.msra.mxu0 %v2618
    %4538 = vmatpush.bf16.msra.mxu0 %v2616
    %4539 = vmatpush.bf16.msra.mxu0 %v2614
    %4540 = vmatpush.bf16.msra.mxu0 %v2612
    %4541 = vmatpush.bf16.msra.mxu0 %v2610
    %4542 = vmatpush.bf16.msra.mxu0 %v2608
    %4543 = vmatpush.bf16.msra.mxu0 %v2606
    %4544 = vmatpush.bf16.msra.mxu0 %v2604
    %4545 = vmatmul.bf16.gmra.mxu0 %v4269
    %v4546 = vpop.f32.mrf.mxu0
    %v4547 = vadd.f32 %v4534, %v4546
    %v4548 = vpop.f32.mrf.mxu0
    %4549 = vdwg.mxu0
    %4550 = vmatpush.bf16.msra.mxu0 %v2634
    %4551 = vmatpush.bf16.msra.mxu0 %v2632
    %4552 = vmatpush.bf16.msra.mxu0 %v2630
    %4553 = vmatpush.bf16.msra.mxu0 %v2628
    %4554 = vmatpush.bf16.msra.mxu0 %v2626
    %4555 = vmatpush.bf16.msra.mxu0 %v2624
    %4556 = vmatpush.bf16.msra.mxu0 %v2622
    %4557 = vmatpush.bf16.msra.mxu0 %v2620
    %4558 = vmatmul.bf16.gmra.mxu0 %v4270
    %v4559 = vpop.f32.mrf.mxu0
    %v4560 = vadd.f32 %v4547, %v4559
    %v4561 = vpop.f32.mrf.mxu0
    %4562 = vdwg.mxu0
    %4563 = vmatpush.bf16.msra.mxu0 %v2650
    %4564 = vmatpush.bf16.msra.mxu0 %v2648
    %4565 = vmatpush.bf16.msra.mxu0 %v2646
    %4566 = vmatpush.bf16.msra.mxu0 %v2644
    %4567 = vmatpush.bf16.msra.mxu0 %v2642
    %4568 = vmatpush.bf16.msra.mxu0 %v2640
    %4569 = vmatpush.bf16.msra.mxu0 %v2638
    %4570 = vmatpush.bf16.msra.mxu0 %v2636
    %4571 = vmatmul.bf16.gmra.mxu0 %v4271
    %v4572 = vpop.f32.mrf.mxu0
    %v4573 = vadd.f32 %v4560, %v4572
    %v4574 = vpop.f32.mrf.mxu0
    %4575 = vdwg.mxu0
    %4576 = vmatpush.bf16.msra.mxu0 %v2666
    %4577 = vmatpush.bf16.msra.mxu0 %v2664
    %4578 = vmatpush.bf16.msra.mxu0 %v2662
    %4579 = vmatpush.bf16.msra.mxu0 %v2660
    %4580 = vmatpush.bf16.msra.mxu0 %v2658
    %4581 = vmatpush.bf16.msra.mxu0 %v2656
    %4582 = vmatpush.bf16.msra.mxu0 %v2654
    %4583 = vmatpush.bf16.msra.mxu0 %v2652
    %4584 = vmatmul.bf16.gmra.mxu0 %v4272
    %v4585 = vpop.f32.mrf.mxu0
    %v4586 = vadd.f32 %v4573, %v4585
    %v4587 = vpop.f32.mrf.mxu0
    %4588 = vdwg.mxu0
    %4589 = vmatpush.bf16.msra.mxu0 %v2682
    %4590 = vmatpush.bf16.msra.mxu0 %v2680
    %4591 = vmatpush.bf16.msra.mxu0 %v2678
    %4592 = vmatpush.bf16.msra.mxu0 %v2676
    %4593 = vmatpush.bf16.msra.mxu0 %v2674
    %4594 = vmatpush.bf16.msra.mxu0 %v2672
    %4595 = vmatpush.bf16.msra.mxu0 %v2670
    %4596 = vmatpush.bf16.msra.mxu0 %v2668
    %4597 = vmatmul.bf16.gmra.mxu0 %v4273
    %v4598 = vpop.f32.mrf.mxu0
    %v4599 = vadd.f32 %v4586, %v4598
    %v4600 = vpop.f32.mrf.mxu0
    %4601 = vdwg.mxu0
    %4602 = vmatpush.bf16.msra.mxu0 %v2698
    %4603 = vmatpush.bf16.msra.mxu0 %v2696
    %4604 = vmatpush.bf16.msra.mxu0 %v2694
    %4605 = vmatpush.bf16.msra.mxu0 %v2692
    %4606 = vmatpush.bf16.msra.mxu0 %v2690
    %4607 = vmatpush.bf16.msra.mxu0 %v2688
    %4608 = vmatpush.bf16.msra.mxu0 %v2686
    %4609 = vmatpush.bf16.msra.mxu0 %v2684
    %4610 = vmatmul.bf16.gmra.mxu0 %v4274
    %v4611 = vpop.f32.mrf.mxu0
    %v4612 = vadd.f32 %v4599, %v4611
    %v4613 = vpop.f32.mrf.mxu0
    %4614 = vdwg.mxu0
    %4615 = vmatpush.bf16.msra.mxu0 %v2714
    %4616 = vmatpush.bf16.msra.mxu0 %v2712
    %4617 = vmatpush.bf16.msra.mxu0 %v2710
    %4618 = vmatpush.bf16.msra.mxu0 %v2708
    %4619 = vmatpush.bf16.msra.mxu0 %v2706
    %4620 = vmatpush.bf16.msra.mxu0 %v2704
    %4621 = vmatpush.bf16.msra.mxu0 %v2702
    %4622 = vmatpush.bf16.msra.mxu0 %v2700
    %4623 = vmatmul.bf16.gmra.mxu0 %v4275
    %v4624 = vpop.f32.mrf.mxu0
    %v4625 = vadd.f32 %v4612, %v4624
    %v4626 = vpop.f32.mrf.mxu0
    %4627 = vdwg.mxu0
    %4628 = vmatpush.bf16.msra.mxu0 %v2730
    %4629 = vmatpush.bf16.msra.mxu0 %v2728
    %4630 = vmatpush.bf16.msra.mxu0 %v2726
    %4631 = vmatpush.bf16.msra.mxu0 %v2724
    %4632 = vmatpush.bf16.msra.mxu0 %v2722
    %4633 = vmatpush.bf16.msra.mxu0 %v2720
    %4634 = vmatpush.bf16.msra.mxu0 %v2718
    %4635 = vmatpush.bf16.msra.mxu0 %v2716
    %4636 = vmatmul.bf16.gmra.mxu0 %v4276
    %v4637 = vpop.f32.mrf.mxu0
    %v4638 = vadd.f32 %v4625, %v4637
    %v4639 = vpop.f32.mrf.mxu0
    %4640 = vdwg.mxu0
    %4641 = vmatpush.bf16.msra.mxu0 %v2746
    %4642 = vmatpush.bf16.msra.mxu0 %v2744
    %4643 = vmatpush.bf16.msra.mxu0 %v2742
    %4644 = vmatpush.bf16.msra.mxu0 %v2740
    %4645 = vmatpush.bf16.msra.mxu0 %v2738
    %4646 = vmatpush.bf16.msra.mxu0 %v2736
    %4647 = vmatpush.bf16.msra.mxu0 %v2734
    %4648 = vmatpush.bf16.msra.mxu0 %v2732
    %4649 = vmatmul.bf16.gmra.mxu0 %v4277
    %v4650 = vpop.f32.mrf.mxu0
    %v4651 = vadd.f32 %v4638, %v4650
    %v4652 = vpop.f32.mrf.mxu0
    %4653 = vdwg.mxu0
    %4654 = vmatpush.bf16.msra.mxu0 %v2762
    %4655 = vmatpush.bf16.msra.mxu0 %v2760
    %4656 = vmatpush.bf16.msra.mxu0 %v2758
    %4657 = vmatpush.bf16.msra.mxu0 %v2756
    %4658 = vmatpush.bf16.msra.mxu0 %v2754
    %4659 = vmatpush.bf16.msra.mxu0 %v2752
    %4660 = vmatpush.bf16.msra.mxu0 %v2750
    %4661 = vmatpush.bf16.msra.mxu0 %v2748
    %4662 = vmatmul.bf16.gmra.mxu0 %v4278
    %v4663 = vpop.f32.mrf.mxu0
    %v4664 = vadd.f32 %v4651, %v4663
    %v4665 = vpop.f32.mrf.mxu0
    %4666 = vdwg.mxu0
    %4667 = vmatpush.bf16.msra.mxu0 %v2778
    %4668 = vmatpush.bf16.msra.mxu0 %v2776
    %4669 = vmatpush.bf16.msra.mxu0 %v2774
    %4670 = vmatpush.bf16.msra.mxu0 %v2772
    %4671 = vmatpush.bf16.msra.mxu0 %v2770
    %4672 = vmatpush.bf16.msra.mxu0 %v2768
    %4673 = vmatpush.bf16.msra.mxu0 %v2766
    %4674 = vmatpush.bf16.msra.mxu0 %v2764
    %4675 = vmatmul.bf16.gmra.mxu0 %v4279
    %v4676 = vpop.f32.mrf.mxu0
    %v4677 = vadd.f32 %v4664, %v4676
    %v4678 = vpop.f32.mrf.mxu0
    %4679 = vdwg.mxu0
    %4680 = vmatpush.bf16.msra.mxu0 %v2794
    %4681 = vmatpush.bf16.msra.mxu0 %v2792
    %4682 = vmatpush.bf16.msra.mxu0 %v2790
    %4683 = vmatpush.bf16.msra.mxu0 %v2788
    %4684 = vmatpush.bf16.msra.mxu0 %v2786
    %4685 = vmatpush.bf16.msra.mxu0 %v2784
    %4686 = vmatpush.bf16.msra.mxu0 %v2782
    %4687 = vmatpush.bf16.msra.mxu0 %v2780
    %4688 = vmatmul.bf16.gmra.mxu0 %v4280
    %v4689 = vpop.f32.mrf.mxu0
    %v4690 = vadd.f32 %v4677, %v4689
    %v4691 = vpop.f32.mrf.mxu0
    %4692 = vdwg.mxu0
    %4693 = vmatpush.bf16.msra.mxu0 %v2810
    %4694 = vmatpush.bf16.msra.mxu0 %v2808
    %4695 = vmatpush.bf16.msra.mxu0 %v2806
    %4696 = vmatpush.bf16.msra.mxu0 %v2804
    %4697 = vmatpush.bf16.msra.mxu0 %v2802
    %4698 = vmatpush.bf16.msra.mxu0 %v2800
    %4699 = vmatpush.bf16.msra.mxu0 %v2798
    %4700 = vmatpush.bf16.msra.mxu0 %v2796
    %4701 = vmatmul.bf16.gmra.mxu0 %v4281
    %v4702 = vpop.f32.mrf.mxu0
    %v4703 = vadd.f32 %v4690, %v4702
    %v4704 = vpop.f32.mrf.mxu0
    %4705 = vdwg.mxu0
    %4706 = vmatpush.bf16.msra.mxu0 %v2826
    %4707 = vmatpush.bf16.msra.mxu0 %v2824
    %4708 = vmatpush.bf16.msra.mxu0 %v2822
    %4709 = vmatpush.bf16.msra.mxu0 %v2820
    %4710 = vmatpush.bf16.msra.mxu0 %v2818
    %4711 = vmatpush.bf16.msra.mxu0 %v2816
    %4712 = vmatpush.bf16.msra.mxu0 %v2814
    %4713 = vmatpush.bf16.msra.mxu0 %v2812
    %4714 = vmatmul.bf16.gmra.mxu0 %v4282
    %v4715 = vpop.f32.mrf.mxu0
    %v4716 = vadd.f32 %v4703, %v4715
    %v4717 = vpop.f32.mrf.mxu0
    %4718 = vdwg.mxu0
    %4719 = vmatpush.bf16.msra.mxu0 %v2842
    %4720 = vmatpush.bf16.msra.mxu0 %v2840
    %4721 = vmatpush.bf16.msra.mxu0 %v2838
    %4722 = vmatpush.bf16.msra.mxu0 %v2836
    %4723 = vmatpush.bf16.msra.mxu0 %v2834
    %4724 = vmatpush.bf16.msra.mxu0 %v2832
    %4725 = vmatpush.bf16.msra.mxu0 %v2830
    %4726 = vmatpush.bf16.msra.mxu0 %v2828
    %4727 = vmatmul.bf16.gmra.mxu0 %v4283
    %v4728 = vpop.f32.mrf.mxu0
    %v4729 = vadd.f32 %v4716, %v4728
    %v4730 = vpop.f32.mrf.mxu0
    %4731 = vdwg.mxu0
    %4732 = vmatpush.bf16.msra.mxu0 %v2347
    %4733 = vmatpush.bf16.msra.mxu0 %v2345
    %4734 = vmatpush.bf16.msra.mxu0 %v2343
    %4735 = vmatpush.bf16.msra.mxu0 %v2341
    %4736 = vmatpush.bf16.msra.mxu0 %v2339
    %4737 = vmatpush.bf16.msra.mxu0 %v2337
    %4738 = vmatpush.bf16.msra.mxu0 %v2335
    %4739 = vmatpush.bf16.msra.mxu0 %v2333
    %4740 = vmatmul.bf16.gmra.mxu0 %v4252
    %v4741 = vpop.f32.mrf.mxu0
    %v4742 = vadd.f32 %v681, %v4741
    %v4743 = vpop.f32.mrf.mxu0
    %4744 = vdwg.mxu0
    %4745 = vmatpush.bf16.msra.mxu0 %v2363
    %4746 = vmatpush.bf16.msra.mxu0 %v2361
    %4747 = vmatpush.bf16.msra.mxu0 %v2359
    %4748 = vmatpush.bf16.msra.mxu0 %v2357
    %4749 = vmatpush.bf16.msra.mxu0 %v2355
    %4750 = vmatpush.bf16.msra.mxu0 %v2353
    %4751 = vmatpush.bf16.msra.mxu0 %v2351
    %4752 = vmatpush.bf16.msra.mxu0 %v2349
    %4753 = vmatmul.bf16.gmra.mxu0 %v4253
    %v4754 = vpop.f32.mrf.mxu0
    %v4755 = vadd.f32 %v4742, %v4754
    %v4756 = vpop.f32.mrf.mxu0
    %4757 = vdwg.mxu0
    %4758 = vmatpush.bf16.msra.mxu0 %v2379
    %4759 = vmatpush.bf16.msra.mxu0 %v2377
    %4760 = vmatpush.bf16.msra.mxu0 %v2375
    %4761 = vmatpush.bf16.msra.mxu0 %v2373
    %4762 = vmatpush.bf16.msra.mxu0 %v2371
    %4763 = vmatpush.bf16.msra.mxu0 %v2369
    %4764 = vmatpush.bf16.msra.mxu0 %v2367
    %4765 = vmatpush.bf16.msra.mxu0 %v2365
    %4766 = vmatmul.bf16.gmra.mxu0 %v4254
    %v4767 = vpop.f32.mrf.mxu0
    %v4768 = vadd.f32 %v4755, %v4767
    %v4769 = vpop.f32.mrf.mxu0
    %4770 = vdwg.mxu0
    %4771 = vmatpush.bf16.msra.mxu0 %v2395
    %4772 = vmatpush.bf16.msra.mxu0 %v2393
    %4773 = vmatpush.bf16.msra.mxu0 %v2391
    %4774 = vmatpush.bf16.msra.mxu0 %v2389
    %4775 = vmatpush.bf16.msra.mxu0 %v2387
    %4776 = vmatpush.bf16.msra.mxu0 %v2385
    %4777 = vmatpush.bf16.msra.mxu0 %v2383
    %4778 = vmatpush.bf16.msra.mxu0 %v2381
    %4779 = vmatmul.bf16.gmra.mxu0 %v4255
    %v4780 = vpop.f32.mrf.mxu0
    %v4781 = vadd.f32 %v4768, %v4780
    %v4782 = vpop.f32.mrf.mxu0
    %4783 = vdwg.mxu0
    %4784 = vmatpush.bf16.msra.mxu0 %v2411
    %4785 = vmatpush.bf16.msra.mxu0 %v2409
    %4786 = vmatpush.bf16.msra.mxu0 %v2407
    %4787 = vmatpush.bf16.msra.mxu0 %v2405
    %4788 = vmatpush.bf16.msra.mxu0 %v2403
    %4789 = vmatpush.bf16.msra.mxu0 %v2401
    %4790 = vmatpush.bf16.msra.mxu0 %v2399
    %4791 = vmatpush.bf16.msra.mxu0 %v2397
    %4792 = vmatmul.bf16.gmra.mxu0 %v4256
    %v4793 = vpop.f32.mrf.mxu0
    %v4794 = vadd.f32 %v4781, %v4793
    %v4795 = vpop.f32.mrf.mxu0
    %4796 = vdwg.mxu0
    %4797 = vmatpush.bf16.msra.mxu0 %v2427
    %4798 = vmatpush.bf16.msra.mxu0 %v2425
    %4799 = vmatpush.bf16.msra.mxu0 %v2423
    %4800 = vmatpush.bf16.msra.mxu0 %v2421
    %4801 = vmatpush.bf16.msra.mxu0 %v2419
    %4802 = vmatpush.bf16.msra.mxu0 %v2417
    %4803 = vmatpush.bf16.msra.mxu0 %v2415
    %4804 = vmatpush.bf16.msra.mxu0 %v2413
    %4805 = vmatmul.bf16.gmra.mxu0 %v4257
    %v4806 = vpop.f32.mrf.mxu0
    %v4807 = vadd.f32 %v4794, %v4806
    %v4808 = vpop.f32.mrf.mxu0
    %4809 = vdwg.mxu0
    %4810 = vmatpush.bf16.msra.mxu0 %v2443
    %4811 = vmatpush.bf16.msra.mxu0 %v2441
    %4812 = vmatpush.bf16.msra.mxu0 %v2439
    %4813 = vmatpush.bf16.msra.mxu0 %v2437
    %4814 = vmatpush.bf16.msra.mxu0 %v2435
    %4815 = vmatpush.bf16.msra.mxu0 %v2433
    %4816 = vmatpush.bf16.msra.mxu0 %v2431
    %4817 = vmatpush.bf16.msra.mxu0 %v2429
    %4818 = vmatmul.bf16.gmra.mxu0 %v4258
    %v4819 = vpop.f32.mrf.mxu0
    %v4820 = vadd.f32 %v4807, %v4819
    %v4821 = vpop.f32.mrf.mxu0
    %4822 = vdwg.mxu0
    %4823 = vmatpush.bf16.msra.mxu0 %v2459
    %4824 = vmatpush.bf16.msra.mxu0 %v2457
    %4825 = vmatpush.bf16.msra.mxu0 %v2455
    %4826 = vmatpush.bf16.msra.mxu0 %v2453
    %4827 = vmatpush.bf16.msra.mxu0 %v2451
    %4828 = vmatpush.bf16.msra.mxu0 %v2449
    %4829 = vmatpush.bf16.msra.mxu0 %v2447
    %4830 = vmatpush.bf16.msra.mxu0 %v2445
    %4831 = vmatmul.bf16.gmra.mxu0 %v4259
    %v4832 = vpop.f32.mrf.mxu0
    %v4833 = vadd.f32 %v4820, %v4832
    %v4834 = vpop.f32.mrf.mxu0
    %4835 = vdwg.mxu0
    %4836 = vmatpush.bf16.msra.mxu0 %v2475
    %4837 = vmatpush.bf16.msra.mxu0 %v2473
    %4838 = vmatpush.bf16.msra.mxu0 %v2471
    %4839 = vmatpush.bf16.msra.mxu0 %v2469
    %4840 = vmatpush.bf16.msra.mxu0 %v2467
    %4841 = vmatpush.bf16.msra.mxu0 %v2465
    %4842 = vmatpush.bf16.msra.mxu0 %v2463
    %4843 = vmatpush.bf16.msra.mxu0 %v2461
    %4844 = vmatmul.bf16.gmra.mxu0 %v4260
    %v4845 = vpop.f32.mrf.mxu0
    %v4846 = vadd.f32 %v4833, %v4845
    %v4847 = vpop.f32.mrf.mxu0
    %4848 = vdwg.mxu0
    %4849 = vmatpush.bf16.msra.mxu0 %v2491
    %4850 = vmatpush.bf16.msra.mxu0 %v2489
    %4851 = vmatpush.bf16.msra.mxu0 %v2487
    %4852 = vmatpush.bf16.msra.mxu0 %v2485
    %4853 = vmatpush.bf16.msra.mxu0 %v2483
    %4854 = vmatpush.bf16.msra.mxu0 %v2481
    %4855 = vmatpush.bf16.msra.mxu0 %v2479
    %4856 = vmatpush.bf16.msra.mxu0 %v2477
    %4857 = vmatmul.bf16.gmra.mxu0 %v4261
    %v4858 = vpop.f32.mrf.mxu0
    %v4859 = vadd.f32 %v4846, %v4858
    %v4860 = vpop.f32.mrf.mxu0
    %4861 = vdwg.mxu0
    %4862 = vmatpush.bf16.msra.mxu0 %v2507
    %4863 = vmatpush.bf16.msra.mxu0 %v2505
    %4864 = vmatpush.bf16.msra.mxu0 %v2503
    %4865 = vmatpush.bf16.msra.mxu0 %v2501
    %4866 = vmatpush.bf16.msra.mxu0 %v2499
    %4867 = vmatpush.bf16.msra.mxu0 %v2497
    %4868 = vmatpush.bf16.msra.mxu0 %v2495
    %4869 = vmatpush.bf16.msra.mxu0 %v2493
    %4870 = vmatmul.bf16.gmra.mxu0 %v4262
    %v4871 = vpop.f32.mrf.mxu0
    %v4872 = vadd.f32 %v4859, %v4871
    %v4873 = vpop.f32.mrf.mxu0
    %4874 = vdwg.mxu0
    %4875 = vmatpush.bf16.msra.mxu0 %v2523
    %4876 = vmatpush.bf16.msra.mxu0 %v2521
    %4877 = vmatpush.bf16.msra.mxu0 %v2519
    %4878 = vmatpush.bf16.msra.mxu0 %v2517
    %4879 = vmatpush.bf16.msra.mxu0 %v2515
    %4880 = vmatpush.bf16.msra.mxu0 %v2513
    %4881 = vmatpush.bf16.msra.mxu0 %v2511
    %4882 = vmatpush.bf16.msra.mxu0 %v2509
    %4883 = vmatmul.bf16.gmra.mxu0 %v4263
    %v4884 = vpop.f32.mrf.mxu0
    %v4885 = vadd.f32 %v4872, %v4884
    %v4886 = vpop.f32.mrf.mxu0
    %4887 = vdwg.mxu0
    %4888 = vmatpush.bf16.msra.mxu0 %v2539
    %4889 = vmatpush.bf16.msra.mxu0 %v2537
    %4890 = vmatpush.bf16.msra.mxu0 %v2535
    %4891 = vmatpush.bf16.msra.mxu0 %v2533
    %4892 = vmatpush.bf16.msra.mxu0 %v2531
    %4893 = vmatpush.bf16.msra.mxu0 %v2529
    %4894 = vmatpush.bf16.msra.mxu0 %v2527
    %4895 = vmatpush.bf16.msra.mxu0 %v2525
    %4896 = vmatmul.bf16.gmra.mxu0 %v4264
    %v4897 = vpop.f32.mrf.mxu0
    %v4898 = vadd.f32 %v4885, %v4897
    %v4899 = vpop.f32.mrf.mxu0
    %4900 = vdwg.mxu0
    %4901 = vmatpush.bf16.msra.mxu0 %v2555
    %4902 = vmatpush.bf16.msra.mxu0 %v2553
    %4903 = vmatpush.bf16.msra.mxu0 %v2551
    %4904 = vmatpush.bf16.msra.mxu0 %v2549
    %4905 = vmatpush.bf16.msra.mxu0 %v2547
    %4906 = vmatpush.bf16.msra.mxu0 %v2545
    %4907 = vmatpush.bf16.msra.mxu0 %v2543
    %4908 = vmatpush.bf16.msra.mxu0 %v2541
    %4909 = vmatmul.bf16.gmra.mxu0 %v4265
    %v4910 = vpop.f32.mrf.mxu0
    %v4911 = vadd.f32 %v4898, %v4910
    %v4912 = vpop.f32.mrf.mxu0
    %4913 = vdwg.mxu0
    %4914 = vmatpush.bf16.msra.mxu0 %v2571
    %4915 = vmatpush.bf16.msra.mxu0 %v2569
    %4916 = vmatpush.bf16.msra.mxu0 %v2567
    %4917 = vmatpush.bf16.msra.mxu0 %v2565
    %4918 = vmatpush.bf16.msra.mxu0 %v2563
    %4919 = vmatpush.bf16.msra.mxu0 %v2561
    %4920 = vmatpush.bf16.msra.mxu0 %v2559
    %4921 = vmatpush.bf16.msra.mxu0 %v2557
    %4922 = vmatmul.bf16.gmra.mxu0 %v4266
    %v4923 = vpop.f32.mrf.mxu0
    %v4924 = vadd.f32 %v4911, %v4923
    %v4925 = vpop.f32.mrf.mxu0
    %4926 = vdwg.mxu0
    %4927 = vmatpush.bf16.msra.mxu0 %v2587
    %4928 = vmatpush.bf16.msra.mxu0 %v2585
    %4929 = vmatpush.bf16.msra.mxu0 %v2583
    %4930 = vmatpush.bf16.msra.mxu0 %v2581
    %4931 = vmatpush.bf16.msra.mxu0 %v2579
    %4932 = vmatpush.bf16.msra.mxu0 %v2577
    %4933 = vmatpush.bf16.msra.mxu0 %v2575
    %4934 = vmatpush.bf16.msra.mxu0 %v2573
    %4935 = vmatmul.bf16.gmra.mxu0 %v4267
    %v4936 = vpop.f32.mrf.mxu0
    %v4937 = vadd.f32 %v4924, %v4936
    %v4938 = vpop.f32.mrf.mxu0
    %4939 = vdwg.mxu0
    %4940 = vmatpush.bf16.msra.mxu0 %v2603
    %4941 = vmatpush.bf16.msra.mxu0 %v2601
    %4942 = vmatpush.bf16.msra.mxu0 %v2599
    %4943 = vmatpush.bf16.msra.mxu0 %v2597
    %4944 = vmatpush.bf16.msra.mxu0 %v2595
    %4945 = vmatpush.bf16.msra.mxu0 %v2593
    %4946 = vmatpush.bf16.msra.mxu0 %v2591
    %4947 = vmatpush.bf16.msra.mxu0 %v2589
    %4948 = vmatmul.bf16.gmra.mxu0 %v4268
    %v4949 = vpop.f32.mrf.mxu0
    %v4950 = vadd.f32 %v4937, %v4949
    %v4951 = vpop.f32.mrf.mxu0
    %4952 = vdwg.mxu0
    %4953 = vmatpush.bf16.msra.mxu0 %v2619
    %4954 = vmatpush.bf16.msra.mxu0 %v2617
    %4955 = vmatpush.bf16.msra.mxu0 %v2615
    %4956 = vmatpush.bf16.msra.mxu0 %v2613
    %4957 = vmatpush.bf16.msra.mxu0 %v2611
    %4958 = vmatpush.bf16.msra.mxu0 %v2609
    %4959 = vmatpush.bf16.msra.mxu0 %v2607
    %4960 = vmatpush.bf16.msra.mxu0 %v2605
    %4961 = vmatmul.bf16.gmra.mxu0 %v4269
    %v4962 = vpop.f32.mrf.mxu0
    %v4963 = vadd.f32 %v4950, %v4962
    %v4964 = vpop.f32.mrf.mxu0
    %4965 = vdwg.mxu0
    %4966 = vmatpush.bf16.msra.mxu0 %v2635
    %4967 = vmatpush.bf16.msra.mxu0 %v2633
    %4968 = vmatpush.bf16.msra.mxu0 %v2631
    %4969 = vmatpush.bf16.msra.mxu0 %v2629
    %4970 = vmatpush.bf16.msra.mxu0 %v2627
    %4971 = vmatpush.bf16.msra.mxu0 %v2625
    %4972 = vmatpush.bf16.msra.mxu0 %v2623
    %4973 = vmatpush.bf16.msra.mxu0 %v2621
    %4974 = vmatmul.bf16.gmra.mxu0 %v4270
    %v4975 = vpop.f32.mrf.mxu0
    %v4976 = vadd.f32 %v4963, %v4975
    %v4977 = vpop.f32.mrf.mxu0
    %4978 = vdwg.mxu0
    %4979 = vmatpush.bf16.msra.mxu0 %v2651
    %4980 = vmatpush.bf16.msra.mxu0 %v2649
    %4981 = vmatpush.bf16.msra.mxu0 %v2647
    %4982 = vmatpush.bf16.msra.mxu0 %v2645
    %4983 = vmatpush.bf16.msra.mxu0 %v2643
    %4984 = vmatpush.bf16.msra.mxu0 %v2641
    %4985 = vmatpush.bf16.msra.mxu0 %v2639
    %4986 = vmatpush.bf16.msra.mxu0 %v2637
    %4987 = vmatmul.bf16.gmra.mxu0 %v4271
    %v4988 = vpop.f32.mrf.mxu0
    %v4989 = vadd.f32 %v4976, %v4988
    %v4990 = vpop.f32.mrf.mxu0
    %4991 = vdwg.mxu0
    %4992 = vmatpush.bf16.msra.mxu0 %v2667
    %4993 = vmatpush.bf16.msra.mxu0 %v2665
    %4994 = vmatpush.bf16.msra.mxu0 %v2663
    %4995 = vmatpush.bf16.msra.mxu0 %v2661
    %4996 = vmatpush.bf16.msra.mxu0 %v2659
    %4997 = vmatpush.bf16.msra.mxu0 %v2657
    %4998 = vmatpush.bf16.msra.mxu0 %v2655
    %4999 = vmatpush.bf16.msra.mxu0 %v2653
    %5000 = vmatmul.bf16.gmra.mxu0 %v4272
    %v5001 = vpop.f32.mrf.mxu0
    %v5002 = vadd.f32 %v4989, %v5001
    %v5003 = vpop.f32.mrf.mxu0
    %5004 = vdwg.mxu0
    %5005 = vmatpush.bf16.msra.mxu0 %v2683
    %5006 = vmatpush.bf16.msra.mxu0 %v2681
    %5007 = vmatpush.bf16.msra.mxu0 %v2679
    %5008 = vmatpush.bf16.msra.mxu0 %v2677
    %5009 = vmatpush.bf16.msra.mxu0 %v2675
    %5010 = vmatpush.bf16.msra.mxu0 %v2673
    %5011 = vmatpush.bf16.msra.mxu0 %v2671
    %5012 = vmatpush.bf16.msra.mxu0 %v2669
    %5013 = vmatmul.bf16.gmra.mxu0 %v4273
    %v5014 = vpop.f32.mrf.mxu0
    %v5015 = vadd.f32 %v5002, %v5014
    %v5016 = vpop.f32.mrf.mxu0
    %5017 = vdwg.mxu0
    %5018 = vmatpush.bf16.msra.mxu0 %v2699
    %5019 = vmatpush.bf16.msra.mxu0 %v2697
    %5020 = vmatpush.bf16.msra.mxu0 %v2695
    %5021 = vmatpush.bf16.msra.mxu0 %v2693
    %5022 = vmatpush.bf16.msra.mxu0 %v2691
    %5023 = vmatpush.bf16.msra.mxu0 %v2689
    %5024 = vmatpush.bf16.msra.mxu0 %v2687
    %5025 = vmatpush.bf16.msra.mxu0 %v2685
    %5026 = vmatmul.bf16.gmra.mxu0 %v4274
    %v5027 = vpop.f32.mrf.mxu0
    %v5028 = vadd.f32 %v5015, %v5027
    %v5029 = vpop.f32.mrf.mxu0
    %5030 = vdwg.mxu0
    %5031 = vmatpush.bf16.msra.mxu0 %v2715
    %5032 = vmatpush.bf16.msra.mxu0 %v2713
    %5033 = vmatpush.bf16.msra.mxu0 %v2711
    %5034 = vmatpush.bf16.msra.mxu0 %v2709
    %5035 = vmatpush.bf16.msra.mxu0 %v2707
    %5036 = vmatpush.bf16.msra.mxu0 %v2705
    %5037 = vmatpush.bf16.msra.mxu0 %v2703
    %5038 = vmatpush.bf16.msra.mxu0 %v2701
    %5039 = vmatmul.bf16.gmra.mxu0 %v4275
    %v5040 = vpop.f32.mrf.mxu0
    %v5041 = vadd.f32 %v5028, %v5040
    %v5042 = vpop.f32.mrf.mxu0
    %5043 = vdwg.mxu0
    %5044 = vmatpush.bf16.msra.mxu0 %v2731
    %5045 = vmatpush.bf16.msra.mxu0 %v2729
    %5046 = vmatpush.bf16.msra.mxu0 %v2727
    %5047 = vmatpush.bf16.msra.mxu0 %v2725
    %5048 = vmatpush.bf16.msra.mxu0 %v2723
    %5049 = vmatpush.bf16.msra.mxu0 %v2721
    %5050 = vmatpush.bf16.msra.mxu0 %v2719
    %5051 = vmatpush.bf16.msra.mxu0 %v2717
    %5052 = vmatmul.bf16.gmra.mxu0 %v4276
    %v5053 = vpop.f32.mrf.mxu0
    %v5054 = vadd.f32 %v5041, %v5053
    %v5055 = vpop.f32.mrf.mxu0
    %5056 = vdwg.mxu0
    %5057 = vmatpush.bf16.msra.mxu0 %v2747
    %5058 = vmatpush.bf16.msra.mxu0 %v2745
    %5059 = vmatpush.bf16.msra.mxu0 %v2743
    %5060 = vmatpush.bf16.msra.mxu0 %v2741
    %5061 = vmatpush.bf16.msra.mxu0 %v2739
    %5062 = vmatpush.bf16.msra.mxu0 %v2737
    %5063 = vmatpush.bf16.msra.mxu0 %v2735
    %5064 = vmatpush.bf16.msra.mxu0 %v2733
    %5065 = vmatmul.bf16.gmra.mxu0 %v4277
    %v5066 = vpop.f32.mrf.mxu0
    %v5067 = vadd.f32 %v5054, %v5066
    %v5068 = vpop.f32.mrf.mxu0
    %5069 = vdwg.mxu0
    %5070 = vmatpush.bf16.msra.mxu0 %v2763
    %5071 = vmatpush.bf16.msra.mxu0 %v2761
    %5072 = vmatpush.bf16.msra.mxu0 %v2759
    %5073 = vmatpush.bf16.msra.mxu0 %v2757
    %5074 = vmatpush.bf16.msra.mxu0 %v2755
    %5075 = vmatpush.bf16.msra.mxu0 %v2753
    %5076 = vmatpush.bf16.msra.mxu0 %v2751
    %5077 = vmatpush.bf16.msra.mxu0 %v2749
    %5078 = vmatmul.bf16.gmra.mxu0 %v4278
    %v5079 = vpop.f32.mrf.mxu0
    %v5080 = vadd.f32 %v5067, %v5079
    %v5081 = vpop.f32.mrf.mxu0
    %5082 = vdwg.mxu0
    %5083 = vmatpush.bf16.msra.mxu0 %v2779
    %5084 = vmatpush.bf16.msra.mxu0 %v2777
    %5085 = vmatpush.bf16.msra.mxu0 %v2775
    %5086 = vmatpush.bf16.msra.mxu0 %v2773
    %5087 = vmatpush.bf16.msra.mxu0 %v2771
    %5088 = vmatpush.bf16.msra.mxu0 %v2769
    %5089 = vmatpush.bf16.msra.mxu0 %v2767
    %5090 = vmatpush.bf16.msra.mxu0 %v2765
    %5091 = vmatmul.bf16.gmra.mxu0 %v4279
    %v5092 = vpop.f32.mrf.mxu0
    %v5093 = vadd.f32 %v5080, %v5092
    %v5094 = vpop.f32.mrf.mxu0
    %5095 = vdwg.mxu0
    %5096 = vmatpush.bf16.msra.mxu0 %v2795
    %5097 = vmatpush.bf16.msra.mxu0 %v2793
    %5098 = vmatpush.bf16.msra.mxu0 %v2791
    %5099 = vmatpush.bf16.msra.mxu0 %v2789
    %5100 = vmatpush.bf16.msra.mxu0 %v2787
    %5101 = vmatpush.bf16.msra.mxu0 %v2785
    %5102 = vmatpush.bf16.msra.mxu0 %v2783
    %5103 = vmatpush.bf16.msra.mxu0 %v2781
    %5104 = vmatmul.bf16.gmra.mxu0 %v4280
    %v5105 = vpop.f32.mrf.mxu0
    %v5106 = vadd.f32 %v5093, %v5105
    %v5107 = vpop.f32.mrf.mxu0
    %5108 = vdwg.mxu0
    %5109 = vmatpush.bf16.msra.mxu0 %v2811
    %5110 = vmatpush.bf16.msra.mxu0 %v2809
    %5111 = vmatpush.bf16.msra.mxu0 %v2807
    %5112 = vmatpush.bf16.msra.mxu0 %v2805
    %5113 = vmatpush.bf16.msra.mxu0 %v2803
    %5114 = vmatpush.bf16.msra.mxu0 %v2801
    %5115 = vmatpush.bf16.msra.mxu0 %v2799
    %5116 = vmatpush.bf16.msra.mxu0 %v2797
    %5117 = vmatmul.bf16.gmra.mxu0 %v4281
    %v5118 = vpop.f32.mrf.mxu0
    %v5119 = vadd.f32 %v5106, %v5118
    %v5120 = vpop.f32.mrf.mxu0
    %5121 = vdwg.mxu0
    %5122 = vmatpush.bf16.msra.mxu0 %v2827
    %5123 = vmatpush.bf16.msra.mxu0 %v2825
    %5124 = vmatpush.bf16.msra.mxu0 %v2823
    %5125 = vmatpush.bf16.msra.mxu0 %v2821
    %5126 = vmatpush.bf16.msra.mxu0 %v2819
    %5127 = vmatpush.bf16.msra.mxu0 %v2817
    %5128 = vmatpush.bf16.msra.mxu0 %v2815
    %5129 = vmatpush.bf16.msra.mxu0 %v2813
    %5130 = vmatmul.bf16.gmra.mxu0 %v4282
    %v5131 = vpop.f32.mrf.mxu0
    %v5132 = vadd.f32 %v5119, %v5131
    %v5133 = vpop.f32.mrf.mxu0
    %5134 = vdwg.mxu0
    %5135 = vmatpush.bf16.msra.mxu0 %v2843
    %5136 = vmatpush.bf16.msra.mxu0 %v2841
    %5137 = vmatpush.bf16.msra.mxu0 %v2839
    %5138 = vmatpush.bf16.msra.mxu0 %v2837
    %5139 = vmatpush.bf16.msra.mxu0 %v2835
    %5140 = vmatpush.bf16.msra.mxu0 %v2833
    %5141 = vmatpush.bf16.msra.mxu0 %v2831
    %5142 = vmatpush.bf16.msra.mxu0 %v2829
    %5143 = vmatmul.bf16.gmra.mxu0 %v4283
    %v5144 = vpop.f32.mrf.mxu0
    %v5145 = vadd.f32 %v5132, %v5144
    %v5146 = vpop.f32.mrf.mxu0
    %5147 = vdwg.mxu0
    %v5148 = vld [vmem:[#allocation9] sm:$0xff]
    %v5149 = vld [vmem:[#allocation9 + $0x8] sm:$0xff]
    %v5150 = vld [vmem:[#allocation9 + $0x10] sm:$0xff]
    %v5151 = vld [vmem:[#allocation9 + $0x18] sm:$0xff]
    %v5152 = vld [vmem:[#allocation9 + $0x20] sm:$0xff]
    %v5153 = vld [vmem:[#allocation9 + $0x28] sm:$0xff]
    %v5154 = vld [vmem:[#allocation9 + $0x30] sm:$0xff]
    %v5155 = vld [vmem:[#allocation9 + $0x38] sm:$0xff]
    %v5156 = vld [vmem:[#allocation9 + $0x40] sm:$0xff]
    %v5157 = vld [vmem:[#allocation9 + $0x48] sm:$0xff]
    %v5158 = vld [vmem:[#allocation9 + $0x50] sm:$0xff]
    %v5159 = vld [vmem:[#allocation9 + $0x58] sm:$0xff]
    %v5160 = vld [vmem:[#allocation9 + $0x60] sm:$0xff]
    %v5161 = vld [vmem:[#allocation9 + $0x68] sm:$0xff]
    %v5162 = vld [vmem:[#allocation9 + $0x70] sm:$0xff]
    %v5163 = vld [vmem:[#allocation9 + $0x78] sm:$0xff]
    %v5164 = vld [vmem:[#allocation9 + $0x80] sm:$0xff]
    %v5165 = vld [vmem:[#allocation9 + $0x88] sm:$0xff]
    %v5166 = vld [vmem:[#allocation9 + $0x90] sm:$0xff]
    %v5167 = vld [vmem:[#allocation9 + $0x98] sm:$0xff]
    %v5168 = vld [vmem:[#allocation9 + $0xa0] sm:$0xff]
    %v5169 = vld [vmem:[#allocation9 + $0xa8] sm:$0xff]
    %v5170 = vld [vmem:[#allocation9 + $0xb0] sm:$0xff]
    %v5171 = vld [vmem:[#allocation9 + $0xb8] sm:$0xff]
    %v5172 = vld [vmem:[#allocation9 + $0xc0] sm:$0xff]
    %v5173 = vld [vmem:[#allocation9 + $0xc8] sm:$0xff]
    %v5174 = vld [vmem:[#allocation9 + $0xd0] sm:$0xff]
    %v5175 = vld [vmem:[#allocation9 + $0xd8] sm:$0xff]
    %v5176 = vld [vmem:[#allocation9 + $0xe0] sm:$0xff]
    %v5177 = vld [vmem:[#allocation9 + $0xe8] sm:$0xff]
    %v5178 = vld [vmem:[#allocation9 + $0xf0] sm:$0xff]
    %v5179 = vld [vmem:[#allocation9 + $0xf8] sm:$0xff]
    %v5180 = vld [vmem:[#allocation9 + $0x100] sm:$0xff]
    %v5181 = vld [vmem:[#allocation9 + $0x108] sm:$0xff]
    %v5182 = vld [vmem:[#allocation9 + $0x110] sm:$0xff]
    %v5183 = vld [vmem:[#allocation9 + $0x118] sm:$0xff]
    %v5184 = vld [vmem:[#allocation9 + $0x120] sm:$0xff]
    %v5185 = vld [vmem:[#allocation9 + $0x128] sm:$0xff]
    %v5186 = vld [vmem:[#allocation9 + $0x130] sm:$0xff]
    %v5187 = vld [vmem:[#allocation9 + $0x138] sm:$0xff]
    %v5188 = vld [vmem:[#allocation9 + $0x140] sm:$0xff]
    %v5189 = vld [vmem:[#allocation9 + $0x148] sm:$0xff]
    %v5190 = vld [vmem:[#allocation9 + $0x150] sm:$0xff]
    %v5191 = vld [vmem:[#allocation9 + $0x158] sm:$0xff]
    %v5192 = vld [vmem:[#allocation9 + $0x160] sm:$0xff]
    %v5193 = vld [vmem:[#allocation9 + $0x168] sm:$0xff]
    %v5194 = vld [vmem:[#allocation9 + $0x170] sm:$0xff]
    %v5195 = vld [vmem:[#allocation9 + $0x178] sm:$0xff]
    %v5196 = vld [vmem:[#allocation9 + $0x180] sm:$0xff]
    %v5197 = vld [vmem:[#allocation9 + $0x188] sm:$0xff]
    %v5198 = vld [vmem:[#allocation9 + $0x190] sm:$0xff]
    %v5199 = vld [vmem:[#allocation9 + $0x198] sm:$0xff]
    %v5200 = vld [vmem:[#allocation9 + $0x1a0] sm:$0xff]
    %v5201 = vld [vmem:[#allocation9 + $0x1a8] sm:$0xff]
    %v5202 = vld [vmem:[#allocation9 + $0x1b0] sm:$0xff]
    %v5203 = vld [vmem:[#allocation9 + $0x1b8] sm:$0xff]
    %v5204 = vld [vmem:[#allocation9 + $0x1c0] sm:$0xff]
    %v5205 = vld [vmem:[#allocation9 + $0x1c8] sm:$0xff]
    %v5206 = vld [vmem:[#allocation9 + $0x1d0] sm:$0xff]
    %v5207 = vld [vmem:[#allocation9 + $0x1d8] sm:$0xff]
    %v5208 = vld [vmem:[#allocation9 + $0x1e0] sm:$0xff]
    %v5209 = vld [vmem:[#allocation9 + $0x1e8] sm:$0xff]
    %v5210 = vld [vmem:[#allocation9 + $0x1f0] sm:$0xff]
    %v5211 = vld [vmem:[#allocation9 + $0x1f8] sm:$0xff]
    %v5212 = vld [vmem:[#allocation9 + $0x200] sm:$0xff]
    %v5213 = vld [vmem:[#allocation9 + $0x208] sm:$0xff]
    %v5214 = vld [vmem:[#allocation9 + $0x210] sm:$0xff]
    %v5215 = vld [vmem:[#allocation9 + $0x218] sm:$0xff]
    %v5216 = vld [vmem:[#allocation9 + $0x220] sm:$0xff]
    %v5217 = vld [vmem:[#allocation9 + $0x228] sm:$0xff]
    %v5218 = vld [vmem:[#allocation9 + $0x230] sm:$0xff]
    %v5219 = vld [vmem:[#allocation9 + $0x238] sm:$0xff]
    %v5220 = vld [vmem:[#allocation9 + $0x240] sm:$0xff]
    %v5221 = vld [vmem:[#allocation9 + $0x248] sm:$0xff]
    %v5222 = vld [vmem:[#allocation9 + $0x250] sm:$0xff]
    %v5223 = vld [vmem:[#allocation9 + $0x258] sm:$0xff]
    %v5224 = vld [vmem:[#allocation9 + $0x260] sm:$0xff]
    %v5225 = vld [vmem:[#allocation9 + $0x268] sm:$0xff]
    %v5226 = vld [vmem:[#allocation9 + $0x270] sm:$0xff]
    %v5227 = vld [vmem:[#allocation9 + $0x278] sm:$0xff]
    %v5228 = vld [vmem:[#allocation9 + $0x280] sm:$0xff]
    %v5229 = vld [vmem:[#allocation9 + $0x288] sm:$0xff]
    %v5230 = vld [vmem:[#allocation9 + $0x290] sm:$0xff]
    %v5231 = vld [vmem:[#allocation9 + $0x298] sm:$0xff]
    %v5232 = vld [vmem:[#allocation9 + $0x2a0] sm:$0xff]
    %v5233 = vld [vmem:[#allocation9 + $0x2a8] sm:$0xff]
    %v5234 = vld [vmem:[#allocation9 + $0x2b0] sm:$0xff]
    %v5235 = vld [vmem:[#allocation9 + $0x2b8] sm:$0xff]
    %v5236 = vld [vmem:[#allocation9 + $0x2c0] sm:$0xff]
    %v5237 = vld [vmem:[#allocation9 + $0x2c8] sm:$0xff]
    %v5238 = vld [vmem:[#allocation9 + $0x2d0] sm:$0xff]
    %v5239 = vld [vmem:[#allocation9 + $0x2d8] sm:$0xff]
    %v5240 = vld [vmem:[#allocation9 + $0x2e0] sm:$0xff]
    %v5241 = vld [vmem:[#allocation9 + $0x2e8] sm:$0xff]
    %v5242 = vld [vmem:[#allocation9 + $0x2f0] sm:$0xff]
    %v5243 = vld [vmem:[#allocation9 + $0x2f8] sm:$0xff]
    %v5244 = vld [vmem:[#allocation9 + $0x300] sm:$0xff]
    %v5245 = vld [vmem:[#allocation9 + $0x308] sm:$0xff]
    %v5246 = vld [vmem:[#allocation9 + $0x310] sm:$0xff]
    %v5247 = vld [vmem:[#allocation9 + $0x318] sm:$0xff]
    %v5248 = vld [vmem:[#allocation9 + $0x320] sm:$0xff]
    %v5249 = vld [vmem:[#allocation9 + $0x328] sm:$0xff]
    %v5250 = vld [vmem:[#allocation9 + $0x330] sm:$0xff]
    %v5251 = vld [vmem:[#allocation9 + $0x338] sm:$0xff]
    %v5252 = vld [vmem:[#allocation9 + $0x340] sm:$0xff]
    %v5253 = vld [vmem:[#allocation9 + $0x348] sm:$0xff]
    %v5254 = vld [vmem:[#allocation9 + $0x350] sm:$0xff]
    %v5255 = vld [vmem:[#allocation9 + $0x358] sm:$0xff]
    %v5256 = vld [vmem:[#allocation9 + $0x360] sm:$0xff]
    %v5257 = vld [vmem:[#allocation9 + $0x368] sm:$0xff]
    %v5258 = vld [vmem:[#allocation9 + $0x370] sm:$0xff]
    %v5259 = vld [vmem:[#allocation9 + $0x378] sm:$0xff]
    %v5260 = vld [vmem:[#allocation9 + $0x380] sm:$0xff]
    %v5261 = vld [vmem:[#allocation9 + $0x388] sm:$0xff]
    %v5262 = vld [vmem:[#allocation9 + $0x390] sm:$0xff]
    %v5263 = vld [vmem:[#allocation9 + $0x398] sm:$0xff]
    %v5264 = vld [vmem:[#allocation9 + $0x3a0] sm:$0xff]
    %v5265 = vld [vmem:[#allocation9 + $0x3a8] sm:$0xff]
    %v5266 = vld [vmem:[#allocation9 + $0x3b0] sm:$0xff]
    %v5267 = vld [vmem:[#allocation9 + $0x3b8] sm:$0xff]
    %v5268 = vld [vmem:[#allocation9 + $0x3c0] sm:$0xff]
    %v5269 = vld [vmem:[#allocation9 + $0x3c8] sm:$0xff]
    %v5270 = vld [vmem:[#allocation9 + $0x3d0] sm:$0xff]
    %v5271 = vld [vmem:[#allocation9 + $0x3d8] sm:$0xff]
    %v5272 = vld [vmem:[#allocation9 + $0x3e0] sm:$0xff]
    %v5273 = vld [vmem:[#allocation9 + $0x3e8] sm:$0xff]
    %v5274 = vld [vmem:[#allocation9 + $0x3f0] sm:$0xff]
    %v5275 = vld [vmem:[#allocation9 + $0x3f8] sm:$0xff]
    %v5276 = vld [vmem:[#allocation9 + $0x400] sm:$0xff]
    %v5277 = vld [vmem:[#allocation9 + $0x408] sm:$0xff]
    %v5278 = vld [vmem:[#allocation9 + $0x410] sm:$0xff]
    %v5279 = vld [vmem:[#allocation9 + $0x418] sm:$0xff]
    %v5280 = vld [vmem:[#allocation9 + $0x420] sm:$0xff]
    %v5281 = vld [vmem:[#allocation9 + $0x428] sm:$0xff]
    %v5282 = vld [vmem:[#allocation9 + $0x430] sm:$0xff]
    %v5283 = vld [vmem:[#allocation9 + $0x438] sm:$0xff]
    %v5284 = vld [vmem:[#allocation9 + $0x440] sm:$0xff]
    %v5285 = vld [vmem:[#allocation9 + $0x448] sm:$0xff]
    %v5286 = vld [vmem:[#allocation9 + $0x450] sm:$0xff]
    %v5287 = vld [vmem:[#allocation9 + $0x458] sm:$0xff]
    %v5288 = vld [vmem:[#allocation9 + $0x460] sm:$0xff]
    %v5289 = vld [vmem:[#allocation9 + $0x468] sm:$0xff]
    %v5290 = vld [vmem:[#allocation9 + $0x470] sm:$0xff]
    %v5291 = vld [vmem:[#allocation9 + $0x478] sm:$0xff]
    %v5292 = vld [vmem:[#allocation9 + $0x480] sm:$0xff]
    %v5293 = vld [vmem:[#allocation9 + $0x488] sm:$0xff]
    %v5294 = vld [vmem:[#allocation9 + $0x490] sm:$0xff]
    %v5295 = vld [vmem:[#allocation9 + $0x498] sm:$0xff]
    %v5296 = vld [vmem:[#allocation9 + $0x4a0] sm:$0xff]
    %v5297 = vld [vmem:[#allocation9 + $0x4a8] sm:$0xff]
    %v5298 = vld [vmem:[#allocation9 + $0x4b0] sm:$0xff]
    %v5299 = vld [vmem:[#allocation9 + $0x4b8] sm:$0xff]
    %v5300 = vld [vmem:[#allocation9 + $0x4c0] sm:$0xff]
    %v5301 = vld [vmem:[#allocation9 + $0x4c8] sm:$0xff]
    %v5302 = vld [vmem:[#allocation9 + $0x4d0] sm:$0xff]
    %v5303 = vld [vmem:[#allocation9 + $0x4d8] sm:$0xff]
    %v5304 = vld [vmem:[#allocation9 + $0x4e0] sm:$0xff]
    %v5305 = vld [vmem:[#allocation9 + $0x4e8] sm:$0xff]
    %v5306 = vld [vmem:[#allocation9 + $0x4f0] sm:$0xff]
    %v5307 = vld [vmem:[#allocation9 + $0x4f8] sm:$0xff]
    %v5308 = vld [vmem:[#allocation9 + $0x500] sm:$0xff]
    %v5309 = vld [vmem:[#allocation9 + $0x508] sm:$0xff]
    %v5310 = vld [vmem:[#allocation9 + $0x510] sm:$0xff]
    %v5311 = vld [vmem:[#allocation9 + $0x518] sm:$0xff]
    %v5312 = vld [vmem:[#allocation9 + $0x520] sm:$0xff]
    %v5313 = vld [vmem:[#allocation9 + $0x528] sm:$0xff]
    %v5314 = vld [vmem:[#allocation9 + $0x530] sm:$0xff]
    %v5315 = vld [vmem:[#allocation9 + $0x538] sm:$0xff]
    %v5316 = vld [vmem:[#allocation9 + $0x540] sm:$0xff]
    %v5317 = vld [vmem:[#allocation9 + $0x548] sm:$0xff]
    %v5318 = vld [vmem:[#allocation9 + $0x550] sm:$0xff]
    %v5319 = vld [vmem:[#allocation9 + $0x558] sm:$0xff]
    %v5320 = vld [vmem:[#allocation9 + $0x560] sm:$0xff]
    %v5321 = vld [vmem:[#allocation9 + $0x568] sm:$0xff]
    %v5322 = vld [vmem:[#allocation9 + $0x570] sm:$0xff]
    %v5323 = vld [vmem:[#allocation9 + $0x578] sm:$0xff]
    %v5324 = vld [vmem:[#allocation9 + $0x580] sm:$0xff]
    %v5325 = vld [vmem:[#allocation9 + $0x588] sm:$0xff]
    %v5326 = vld [vmem:[#allocation9 + $0x590] sm:$0xff]
    %v5327 = vld [vmem:[#allocation9 + $0x598] sm:$0xff]
    %v5328 = vld [vmem:[#allocation9 + $0x5a0] sm:$0xff]
    %v5329 = vld [vmem:[#allocation9 + $0x5a8] sm:$0xff]
    %v5330 = vld [vmem:[#allocation9 + $0x5b0] sm:$0xff]
    %v5331 = vld [vmem:[#allocation9 + $0x5b8] sm:$0xff]
    %v5332 = vld [vmem:[#allocation9 + $0x5c0] sm:$0xff]
    %v5333 = vld [vmem:[#allocation9 + $0x5c8] sm:$0xff]
    %v5334 = vld [vmem:[#allocation9 + $0x5d0] sm:$0xff]
    %v5335 = vld [vmem:[#allocation9 + $0x5d8] sm:$0xff]
    %v5336 = vld [vmem:[#allocation9 + $0x5e0] sm:$0xff]
    %v5337 = vld [vmem:[#allocation9 + $0x5e8] sm:$0xff]
    %v5338 = vld [vmem:[#allocation9 + $0x5f0] sm:$0xff]
    %v5339 = vld [vmem:[#allocation9 + $0x5f8] sm:$0xff]
    %v5340 = vld [vmem:[#allocation10] sm:$0x3f]
    %v5342 = vperm.slane %v5340, 0
    %v5343 = vperm.slane %v5340, 1
    %v5344 = vperm.slane %v5340, 2
    %v5345 = vperm.slane %v5340, 3
    %v5346 = vperm.slane %v5340, 4
    %v5347 = vperm.slane %v5340, 5
    %5354 = vmatpush.msra.mxu0 %v5238
    %5355 = vmatpush.msra.mxu0 %v5232
    %5356 = vmatpush.msra.mxu0 %v5226
    %5357 = vmatpush.msra.mxu0 %v5220
    %5358 = vmatpush.msra.mxu0 %v5214
    %5359 = vmatpush.msra.mxu0 %v5208
    %5360 = vmatpush.msra.mxu0 %v5202
    %5361 = vmatpush.msra.mxu0 %v5196
    %5362 = vmatpush.msra.mxu0 %v5190
    %5363 = vmatpush.msra.mxu0 %v5184
    %5364 = vmatpush.msra.mxu0 %v5178
    %5365 = vmatpush.msra.mxu0 %v5172
    %5366 = vmatpush.msra.mxu0 %v5166
    %5367 = vmatpush.msra.mxu0 %v5160
    %5368 = vmatpush.msra.mxu0 %v5154
    %5369 = vmatpush.msra.mxu0 %v5148
    %5370 = vmatmul.f32.gmra.mxu0 %v3769
    %v5371 = vpop.f32.mrf.mxu0
    %v5372 = vadd.f32 %v5342, %v5371
    %5373 = vdwg.mxu0
    %5374 = vmatpush.msra.mxu0 %v5334
    %5375 = vmatpush.msra.mxu0 %v5328
    %5376 = vmatpush.msra.mxu0 %v5322
    %5377 = vmatpush.msra.mxu0 %v5316
    %5378 = vmatpush.msra.mxu0 %v5310
    %5379 = vmatpush.msra.mxu0 %v5304
    %5380 = vmatpush.msra.mxu0 %v5298
    %5381 = vmatpush.msra.mxu0 %v5292
    %5382 = vmatpush.msra.mxu0 %v5286
    %5383 = vmatpush.msra.mxu0 %v5280
    %5384 = vmatpush.msra.mxu0 %v5274
    %5385 = vmatpush.msra.mxu0 %v5268
    %5386 = vmatpush.msra.mxu0 %v5262
    %5387 = vmatpush.msra.mxu0 %v5256
    %5388 = vmatpush.msra.mxu0 %v5250
    %5389 = vmatpush.msra.mxu0 %v5244
    %5390 = vmatmul.f32.gmra.mxu0 %v4185
    %v5391 = vpop.f32.mrf.mxu0
    %v5392 = vadd.f32 %v5372, %v5391
    %5393 = vdwg.mxu0
    %5394 = vmatpush.msra.mxu0 %v5239
    %5395 = vmatpush.msra.mxu0 %v5233
    %5396 = vmatpush.msra.mxu0 %v5227
    %5397 = vmatpush.msra.mxu0 %v5221
    %5398 = vmatpush.msra.mxu0 %v5215
    %5399 = vmatpush.msra.mxu0 %v5209
    %5400 = vmatpush.msra.mxu0 %v5203
    %5401 = vmatpush.msra.mxu0 %v5197
    %5402 = vmatpush.msra.mxu0 %v5191
    %5403 = vmatpush.msra.mxu0 %v5185
    %5404 = vmatpush.msra.mxu0 %v5179
    %5405 = vmatpush.msra.mxu0 %v5173
    %5406 = vmatpush.msra.mxu0 %v5167
    %5407 = vmatpush.msra.mxu0 %v5161
    %5408 = vmatpush.msra.mxu0 %v5155
    %5409 = vmatpush.msra.mxu0 %v5149
    %5410 = vmatmul.f32.gmra.mxu0 %v3769
    %v5411 = vpop.f32.mrf.mxu0
    %v5412 = vadd.f32 %v5343, %v5411
    %5413 = vdwg.mxu0
    %5414 = vmatpush.msra.mxu0 %v5335
    %5415 = vmatpush.msra.mxu0 %v5329
    %5416 = vmatpush.msra.mxu0 %v5323
    %5417 = vmatpush.msra.mxu0 %v5317
    %5418 = vmatpush.msra.mxu0 %v5311
    %5419 = vmatpush.msra.mxu0 %v5305
    %5420 = vmatpush.msra.mxu0 %v5299
    %5421 = vmatpush.msra.mxu0 %v5293
    %5422 = vmatpush.msra.mxu0 %v5287
    %5423 = vmatpush.msra.mxu0 %v5281
    %5424 = vmatpush.msra.mxu0 %v5275
    %5425 = vmatpush.msra.mxu0 %v5269
    %5426 = vmatpush.msra.mxu0 %v5263
    %5427 = vmatpush.msra.mxu0 %v5257
    %5428 = vmatpush.msra.mxu0 %v5251
    %5429 = vmatpush.msra.mxu0 %v5245
    %5430 = vmatmul.f32.gmra.mxu0 %v4185
    %v5431 = vpop.f32.mrf.mxu0
    %v5432 = vadd.f32 %v5412, %v5431
    %5433 = vdwg.mxu0
    %5434 = vmatpush.msra.mxu0 %v5240
    %5435 = vmatpush.msra.mxu0 %v5234
    %5436 = vmatpush.msra.mxu0 %v5228
    %5437 = vmatpush.msra.mxu0 %v5222
    %5438 = vmatpush.msra.mxu0 %v5216
    %5439 = vmatpush.msra.mxu0 %v5210
    %5440 = vmatpush.msra.mxu0 %v5204
    %5441 = vmatpush.msra.mxu0 %v5198
    %5442 = vmatpush.msra.mxu0 %v5192
    %5443 = vmatpush.msra.mxu0 %v5186
    %5444 = vmatpush.msra.mxu0 %v5180
    %5445 = vmatpush.msra.mxu0 %v5174
    %5446 = vmatpush.msra.mxu0 %v5168
    %5447 = vmatpush.msra.mxu0 %v5162
    %5448 = vmatpush.msra.mxu0 %v5156
    %5449 = vmatpush.msra.mxu0 %v5150
    %5450 = vmatmul.f32.gmra.mxu0 %v3769
    %v5451 = vpop.f32.mrf.mxu0
    %v5452 = vadd.f32 %v5344, %v5451
    %5453 = vdwg.mxu0
    %5454 = vmatpush.msra.mxu0 %v5336
    %5455 = vmatpush.msra.mxu0 %v5330
    %5456 = vmatpush.msra.mxu0 %v5324
    %5457 = vmatpush.msra.mxu0 %v5318
    %5458 = vmatpush.msra.mxu0 %v5312
    %5459 = vmatpush.msra.mxu0 %v5306
    %5460 = vmatpush.msra.mxu0 %v5300
    %5461 = vmatpush.msra.mxu0 %v5294
    %5462 = vmatpush.msra.mxu0 %v5288
    %5463 = vmatpush.msra.mxu0 %v5282
    %5464 = vmatpush.msra.mxu0 %v5276
    %5465 = vmatpush.msra.mxu0 %v5270
    %5466 = vmatpush.msra.mxu0 %v5264
    %5467 = vmatpush.msra.mxu0 %v5258
    %5468 = vmatpush.msra.mxu0 %v5252
    %5469 = vmatpush.msra.mxu0 %v5246
    %5470 = vmatmul.f32.gmra.mxu0 %v4185
    %v5471 = vpop.f32.mrf.mxu0
    %v5472 = vadd.f32 %v5452, %v5471
    %5473 = vdwg.mxu0
    %5474 = vmatpush.msra.mxu0 %v5241
    %5475 = vmatpush.msra.mxu0 %v5235
    %5476 = vmatpush.msra.mxu0 %v5229
    %5477 = vmatpush.msra.mxu0 %v5223
    %5478 = vmatpush.msra.mxu0 %v5217
    %5479 = vmatpush.msra.mxu0 %v5211
    %5480 = vmatpush.msra.mxu0 %v5205
    %5481 = vmatpush.msra.mxu0 %v5199
    %5482 = vmatpush.msra.mxu0 %v5193
    %5483 = vmatpush.msra.mxu0 %v5187
    %5484 = vmatpush.msra.mxu0 %v5181
    %5485 = vmatpush.msra.mxu0 %v5175
    %5486 = vmatpush.msra.mxu0 %v5169
    %5487 = vmatpush.msra.mxu0 %v5163
    %5488 = vmatpush.msra.mxu0 %v5157
    %5489 = vmatpush.msra.mxu0 %v5151
    %5490 = vmatmul.f32.gmra.mxu0 %v3769
    %v5491 = vpop.f32.mrf.mxu0
    %v5492 = vadd.f32 %v5345, %v5491
    %5493 = vdwg.mxu0
    %5494 = vmatpush.msra.mxu0 %v5337
    %5495 = vmatpush.msra.mxu0 %v5331
    %5496 = vmatpush.msra.mxu0 %v5325
    %5497 = vmatpush.msra.mxu0 %v5319
    %5498 = vmatpush.msra.mxu0 %v5313
    %5499 = vmatpush.msra.mxu0 %v5307
    %5500 = vmatpush.msra.mxu0 %v5301
    %5501 = vmatpush.msra.mxu0 %v5295
    %5502 = vmatpush.msra.mxu0 %v5289
    %5503 = vmatpush.msra.mxu0 %v5283
    %5504 = vmatpush.msra.mxu0 %v5277
    %5505 = vmatpush.msra.mxu0 %v5271
    %5506 = vmatpush.msra.mxu0 %v5265
    %5507 = vmatpush.msra.mxu0 %v5259
    %5508 = vmatpush.msra.mxu0 %v5253
    %5509 = vmatpush.msra.mxu0 %v5247
    %5510 = vmatmul.f32.gmra.mxu0 %v4185
    %v5511 = vpop.f32.mrf.mxu0
    %v5512 = vadd.f32 %v5492, %v5511
    %5513 = vdwg.mxu0
    %5514 = vmatpush.msra.mxu0 %v5242
    %5515 = vmatpush.msra.mxu0 %v5236
    %5516 = vmatpush.msra.mxu0 %v5230
    %5517 = vmatpush.msra.mxu0 %v5224
    %5518 = vmatpush.msra.mxu0 %v5218
    %5519 = vmatpush.msra.mxu0 %v5212
    %5520 = vmatpush.msra.mxu0 %v5206
    %5521 = vmatpush.msra.mxu0 %v5200
    %5522 = vmatpush.msra.mxu0 %v5194
    %5523 = vmatpush.msra.mxu0 %v5188
    %5524 = vmatpush.msra.mxu0 %v5182
    %5525 = vmatpush.msra.mxu0 %v5176
    %5526 = vmatpush.msra.mxu0 %v5170
    %5527 = vmatpush.msra.mxu0 %v5164
    %5528 = vmatpush.msra.mxu0 %v5158
    %5529 = vmatpush.msra.mxu0 %v5152
    %5530 = vmatmul.f32.gmra.mxu0 %v3769
    %v5531 = vpop.f32.mrf.mxu0
    %v5532 = vadd.f32 %v5346, %v5531
    %5533 = vdwg.mxu0
    %5534 = vmatpush.msra.mxu0 %v5338
    %5535 = vmatpush.msra.mxu0 %v5332
    %5536 = vmatpush.msra.mxu0 %v5326
    %5537 = vmatpush.msra.mxu0 %v5320
    %5538 = vmatpush.msra.mxu0 %v5314
    %5539 = vmatpush.msra.mxu0 %v5308
    %5540 = vmatpush.msra.mxu0 %v5302
    %5541 = vmatpush.msra.mxu0 %v5296
    %5542 = vmatpush.msra.mxu0 %v5290
    %5543 = vmatpush.msra.mxu0 %v5284
    %5544 = vmatpush.msra.mxu0 %v5278
    %5545 = vmatpush.msra.mxu0 %v5272
    %5546 = vmatpush.msra.mxu0 %v5266
    %5547 = vmatpush.msra.mxu0 %v5260
    %5548 = vmatpush.msra.mxu0 %v5254
    %5549 = vmatpush.msra.mxu0 %v5248
    %5550 = vmatmul.f32.gmra.mxu0 %v4185
    %v5551 = vpop.f32.mrf.mxu0
    %v5552 = vadd.f32 %v5532, %v5551
    %5553 = vdwg.mxu0
    %5554 = vmatpush.msra.mxu0 %v5243
    %5555 = vmatpush.msra.mxu0 %v5237
    %5556 = vmatpush.msra.mxu0 %v5231
    %5557 = vmatpush.msra.mxu0 %v5225
    %5558 = vmatpush.msra.mxu0 %v5219
    %5559 = vmatpush.msra.mxu0 %v5213
    %5560 = vmatpush.msra.mxu0 %v5207
    %5561 = vmatpush.msra.mxu0 %v5201
    %5562 = vmatpush.msra.mxu0 %v5195
    %5563 = vmatpush.msra.mxu0 %v5189
    %5564 = vmatpush.msra.mxu0 %v5183
    %5565 = vmatpush.msra.mxu0 %v5177
    %5566 = vmatpush.msra.mxu0 %v5171
    %5567 = vmatpush.msra.mxu0 %v5165
    %5568 = vmatpush.msra.mxu0 %v5159
    %5569 = vmatpush.msra.mxu0 %v5153
    %5570 = vmatmul.f32.gmra.mxu0 %v3769
    %v5571 = vpop.f32.mrf.mxu0
    %v5572 = vadd.f32 %v5347, %v5571
    %5573 = vdwg.mxu0
    %5574 = vmatpush.msra.mxu0 %v5339
    %5575 = vmatpush.msra.mxu0 %v5333
    %5576 = vmatpush.msra.mxu0 %v5327
    %5577 = vmatpush.msra.mxu0 %v5321
    %5578 = vmatpush.msra.mxu0 %v5315
    %5579 = vmatpush.msra.mxu0 %v5309
    %5580 = vmatpush.msra.mxu0 %v5303
    %5581 = vmatpush.msra.mxu0 %v5297
    %5582 = vmatpush.msra.mxu0 %v5291
    %5583 = vmatpush.msra.mxu0 %v5285
    %5584 = vmatpush.msra.mxu0 %v5279
    %5585 = vmatpush.msra.mxu0 %v5273
    %5586 = vmatpush.msra.mxu0 %v5267
    %5587 = vmatpush.msra.mxu0 %v5261
    %5588 = vmatpush.msra.mxu0 %v5255
    %5589 = vmatpush.msra.mxu0 %v5249
    %5590 = vmatmul.f32.gmra.mxu0 %v4185
    %v5591 = vpop.f32.mrf.mxu0
    %v5592 = vadd.f32 %v5572, %v5591
    %5593 = vdwg.mxu0
    %5594 = vmatpush.msra.mxu0 %v5238
    %5595 = vmatpush.msra.mxu0 %v5232
    %5596 = vmatpush.msra.mxu0 %v5226
    %5597 = vmatpush.msra.mxu0 %v5220
    %5598 = vmatpush.msra.mxu0 %v5214
    %5599 = vmatpush.msra.mxu0 %v5208
    %5600 = vmatpush.msra.mxu0 %v5202
    %5601 = vmatpush.msra.mxu0 %v5196
    %5602 = vmatpush.msra.mxu0 %v5190
    %5603 = vmatpush.msra.mxu0 %v5184
    %5604 = vmatpush.msra.mxu0 %v5178
    %5605 = vmatpush.msra.mxu0 %v5172
    %5606 = vmatpush.msra.mxu0 %v5166
    %5607 = vmatpush.msra.mxu0 %v5160
    %5608 = vmatpush.msra.mxu0 %v5154
    %5609 = vmatpush.msra.mxu0 %v5148
    %5610 = vmatmul.f32.gmra.mxu0 %v4729
    %v5611 = vpop.f32.mrf.mxu0
    %v5612 = vadd.f32 %v5342, %v5611
    %5613 = vdwg.mxu0
    %5614 = vmatpush.msra.mxu0 %v5334
    %5615 = vmatpush.msra.mxu0 %v5328
    %5616 = vmatpush.msra.mxu0 %v5322
    %5617 = vmatpush.msra.mxu0 %v5316
    %5618 = vmatpush.msra.mxu0 %v5310
    %5619 = vmatpush.msra.mxu0 %v5304
    %5620 = vmatpush.msra.mxu0 %v5298
    %5621 = vmatpush.msra.mxu0 %v5292
    %5622 = vmatpush.msra.mxu0 %v5286
    %5623 = vmatpush.msra.mxu0 %v5280
    %5624 = vmatpush.msra.mxu0 %v5274
    %5625 = vmatpush.msra.mxu0 %v5268
    %5626 = vmatpush.msra.mxu0 %v5262
    %5627 = vmatpush.msra.mxu0 %v5256
    %5628 = vmatpush.msra.mxu0 %v5250
    %5629 = vmatpush.msra.mxu0 %v5244
    %5630 = vmatmul.f32.gmra.mxu0 %v5145
    %v5631 = vpop.f32.mrf.mxu0
    %v5632 = vadd.f32 %v5612, %v5631
    %5633 = vdwg.mxu0
    %5634 = vmatpush.msra.mxu0 %v5239
    %5635 = vmatpush.msra.mxu0 %v5233
    %5636 = vmatpush.msra.mxu0 %v5227
    %5637 = vmatpush.msra.mxu0 %v5221
    %5638 = vmatpush.msra.mxu0 %v5215
    %5639 = vmatpush.msra.mxu0 %v5209
    %5640 = vmatpush.msra.mxu0 %v5203
    %5641 = vmatpush.msra.mxu0 %v5197
    %5642 = vmatpush.msra.mxu0 %v5191
    %5643 = vmatpush.msra.mxu0 %v5185
    %5644 = vmatpush.msra.mxu0 %v5179
    %5645 = vmatpush.msra.mxu0 %v5173
    %5646 = vmatpush.msra.mxu0 %v5167
    %5647 = vmatpush.msra.mxu0 %v5161
    %5648 = vmatpush.msra.mxu0 %v5155
    %5649 = vmatpush.msra.mxu0 %v5149
    %5650 = vmatmul.f32.gmra.mxu0 %v4729
    %v5651 = vpop.f32.mrf.mxu0
    %v5652 = vadd.f32 %v5343, %v5651
    %5653 = vdwg.mxu0
    %5654 = vmatpush.msra.mxu0 %v5335
    %5655 = vmatpush.msra.mxu0 %v5329
    %5656 = vmatpush.msra.mxu0 %v5323
    %5657 = vmatpush.msra.mxu0 %v5317
    %5658 = vmatpush.msra.mxu0 %v5311
    %5659 = vmatpush.msra.mxu0 %v5305
    %5660 = vmatpush.msra.mxu0 %v5299
    %5661 = vmatpush.msra.mxu0 %v5293
    %5662 = vmatpush.msra.mxu0 %v5287
    %5663 = vmatpush.msra.mxu0 %v5281
    %5664 = vmatpush.msra.mxu0 %v5275
    %5665 = vmatpush.msra.mxu0 %v5269
    %5666 = vmatpush.msra.mxu0 %v5263
    %5667 = vmatpush.msra.mxu0 %v5257
    %5668 = vmatpush.msra.mxu0 %v5251
    %5669 = vmatpush.msra.mxu0 %v5245
    %5670 = vmatmul.f32.gmra.mxu0 %v5145
    %v5671 = vpop.f32.mrf.mxu0
    %v5672 = vadd.f32 %v5652, %v5671
    %5673 = vdwg.mxu0
    %5674 = vmatpush.msra.mxu0 %v5240
    %5675 = vmatpush.msra.mxu0 %v5234
    %5676 = vmatpush.msra.mxu0 %v5228
    %5677 = vmatpush.msra.mxu0 %v5222
    %5678 = vmatpush.msra.mxu0 %v5216
    %5679 = vmatpush.msra.mxu0 %v5210
    %5680 = vmatpush.msra.mxu0 %v5204
    %5681 = vmatpush.msra.mxu0 %v5198
    %5682 = vmatpush.msra.mxu0 %v5192
    %5683 = vmatpush.msra.mxu0 %v5186
    %5684 = vmatpush.msra.mxu0 %v5180
    %5685 = vmatpush.msra.mxu0 %v5174
    %5686 = vmatpush.msra.mxu0 %v5168
    %5687 = vmatpush.msra.mxu0 %v5162
    %5688 = vmatpush.msra.mxu0 %v5156
    %5689 = vmatpush.msra.mxu0 %v5150
    %5690 = vmatmul.f32.gmra.mxu0 %v4729
    %v5691 = vpop.f32.mrf.mxu0
    %v5692 = vadd.f32 %v5344, %v5691
    %5693 = vdwg.mxu0
    %5694 = vmatpush.msra.mxu0 %v5336
    %5695 = vmatpush.msra.mxu0 %v5330
    %5696 = vmatpush.msra.mxu0 %v5324
    %5697 = vmatpush.msra.mxu0 %v5318
    %5698 = vmatpush.msra.mxu0 %v5312
    %5699 = vmatpush.msra.mxu0 %v5306
    %5700 = vmatpush.msra.mxu0 %v5300
    %5701 = vmatpush.msra.mxu0 %v5294
    %5702 = vmatpush.msra.mxu0 %v5288
    %5703 = vmatpush.msra.mxu0 %v5282
    %5704 = vmatpush.msra.mxu0 %v5276
    %5705 = vmatpush.msra.mxu0 %v5270
    %5706 = vmatpush.msra.mxu0 %v5264
    %5707 = vmatpush.msra.mxu0 %v5258
    %5708 = vmatpush.msra.mxu0 %v5252
    %5709 = vmatpush.msra.mxu0 %v5246
    %5710 = vmatmul.f32.gmra.mxu0 %v5145
    %v5711 = vpop.f32.mrf.mxu0
    %v5712 = vadd.f32 %v5692, %v5711
    %5713 = vdwg.mxu0
    %5714 = vmatpush.msra.mxu0 %v5241
    %5715 = vmatpush.msra.mxu0 %v5235
    %5716 = vmatpush.msra.mxu0 %v5229
    %5717 = vmatpush.msra.mxu0 %v5223
    %5718 = vmatpush.msra.mxu0 %v5217
    %5719 = vmatpush.msra.mxu0 %v5211
    %5720 = vmatpush.msra.mxu0 %v5205
    %5721 = vmatpush.msra.mxu0 %v5199
    %5722 = vmatpush.msra.mxu0 %v5193
    %5723 = vmatpush.msra.mxu0 %v5187
    %5724 = vmatpush.msra.mxu0 %v5181
    %5725 = vmatpush.msra.mxu0 %v5175
    %5726 = vmatpush.msra.mxu0 %v5169
    %5727 = vmatpush.msra.mxu0 %v5163
    %5728 = vmatpush.msra.mxu0 %v5157
    %5729 = vmatpush.msra.mxu0 %v5151
    %5730 = vmatmul.f32.gmra.mxu0 %v4729
    %v5731 = vpop.f32.mrf.mxu0
    %v5732 = vadd.f32 %v5345, %v5731
    %5733 = vdwg.mxu0
    %5734 = vmatpush.msra.mxu0 %v5337
    %5735 = vmatpush.msra.mxu0 %v5331
    %5736 = vmatpush.msra.mxu0 %v5325
    %5737 = vmatpush.msra.mxu0 %v5319
    %5738 = vmatpush.msra.mxu0 %v5313
    %5739 = vmatpush.msra.mxu0 %v5307
    %5740 = vmatpush.msra.mxu0 %v5301
    %5741 = vmatpush.msra.mxu0 %v5295
    %5742 = vmatpush.msra.mxu0 %v5289
    %5743 = vmatpush.msra.mxu0 %v5283
    %5744 = vmatpush.msra.mxu0 %v5277
    %5745 = vmatpush.msra.mxu0 %v5271
    %5746 = vmatpush.msra.mxu0 %v5265
    %5747 = vmatpush.msra.mxu0 %v5259
    %5748 = vmatpush.msra.mxu0 %v5253
    %5749 = vmatpush.msra.mxu0 %v5247
    %5750 = vmatmul.f32.gmra.mxu0 %v5145
    %v5751 = vpop.f32.mrf.mxu0
    %v5752 = vadd.f32 %v5732, %v5751
    %5753 = vdwg.mxu0
    %5754 = vmatpush.msra.mxu0 %v5242
    %5755 = vmatpush.msra.mxu0 %v5236
    %5756 = vmatpush.msra.mxu0 %v5230
    %5757 = vmatpush.msra.mxu0 %v5224
    %5758 = vmatpush.msra.mxu0 %v5218
    %5759 = vmatpush.msra.mxu0 %v5212
    %5760 = vmatpush.msra.mxu0 %v5206
    %5761 = vmatpush.msra.mxu0 %v5200
    %5762 = vmatpush.msra.mxu0 %v5194
    %5763 = vmatpush.msra.mxu0 %v5188
    %5764 = vmatpush.msra.mxu0 %v5182
    %5765 = vmatpush.msra.mxu0 %v5176
    %5766 = vmatpush.msra.mxu0 %v5170
    %5767 = vmatpush.msra.mxu0 %v5164
    %5768 = vmatpush.msra.mxu0 %v5158
    %5769 = vmatpush.msra.mxu0 %v5152
    %5770 = vmatmul.f32.gmra.mxu0 %v4729
    %v5771 = vpop.f32.mrf.mxu0
    %v5772 = vadd.f32 %v5346, %v5771
    %5773 = vdwg.mxu0
    %5774 = vmatpush.msra.mxu0 %v5338
    %5775 = vmatpush.msra.mxu0 %v5332
    %5776 = vmatpush.msra.mxu0 %v5326
    %5777 = vmatpush.msra.mxu0 %v5320
    %5778 = vmatpush.msra.mxu0 %v5314
    %5779 = vmatpush.msra.mxu0 %v5308
    %5780 = vmatpush.msra.mxu0 %v5302
    %5781 = vmatpush.msra.mxu0 %v5296
    %5782 = vmatpush.msra.mxu0 %v5290
    %5783 = vmatpush.msra.mxu0 %v5284
    %5784 = vmatpush.msra.mxu0 %v5278
    %5785 = vmatpush.msra.mxu0 %v5272
    %5786 = vmatpush.msra.mxu0 %v5266
    %5787 = vmatpush.msra.mxu0 %v5260
    %5788 = vmatpush.msra.mxu0 %v5254
    %5789 = vmatpush.msra.mxu0 %v5248
    %5790 = vmatmul.f32.gmra.mxu0 %v5145
    %v5791 = vpop.f32.mrf.mxu0
    %v5792 = vadd.f32 %v5772, %v5791
    %5793 = vdwg.mxu0
    %5794 = vmatpush.msra.mxu0 %v5243
    %5795 = vmatpush.msra.mxu0 %v5237
    %5796 = vmatpush.msra.mxu0 %v5231
    %5797 = vmatpush.msra.mxu0 %v5225
    %5798 = vmatpush.msra.mxu0 %v5219
    %5799 = vmatpush.msra.mxu0 %v5213
    %5800 = vmatpush.msra.mxu0 %v5207
    %5801 = vmatpush.msra.mxu0 %v5201
    %5802 = vmatpush.msra.mxu0 %v5195
    %5803 = vmatpush.msra.mxu0 %v5189
    %5804 = vmatpush.msra.mxu0 %v5183
    %5805 = vmatpush.msra.mxu0 %v5177
    %5806 = vmatpush.msra.mxu0 %v5171
    %5807 = vmatpush.msra.mxu0 %v5165
    %5808 = vmatpush.msra.mxu0 %v5159
    %5809 = vmatpush.msra.mxu0 %v5153
    %5810 = vmatmul.f32.gmra.mxu0 %v4729
    %v5811 = vpop.f32.mrf.mxu0
    %v5812 = vadd.f32 %v5347, %v5811
    %5813 = vdwg.mxu0
    %5814 = vmatpush.msra.mxu0 %v5339
    %5815 = vmatpush.msra.mxu0 %v5333
    %5816 = vmatpush.msra.mxu0 %v5327
    %5817 = vmatpush.msra.mxu0 %v5321
    %5818 = vmatpush.msra.mxu0 %v5315
    %5819 = vmatpush.msra.mxu0 %v5309
    %5820 = vmatpush.msra.mxu0 %v5303
    %5821 = vmatpush.msra.mxu0 %v5297
    %5822 = vmatpush.msra.mxu0 %v5291
    %5823 = vmatpush.msra.mxu0 %v5285
    %5824 = vmatpush.msra.mxu0 %v5279
    %5825 = vmatpush.msra.mxu0 %v5273
    %5826 = vmatpush.msra.mxu0 %v5267
    %5827 = vmatpush.msra.mxu0 %v5261
    %5828 = vmatpush.msra.mxu0 %v5255
    %5829 = vmatpush.msra.mxu0 %v5249
    %5830 = vmatmul.f32.gmra.mxu0 %v5145
    %v5831 = vpop.f32.mrf.mxu0
    %v5832 = vadd.f32 %v5812, %v5831
    %5833 = vdwg.mxu0
    %v5834 = vld [vmem:[#allocation12] sm:$0xff]
    %v5835 = vld [vmem:[#allocation12 + $0x8] sm:$0xff]
    %v5836 = vld [vmem:[#allocation12 + $0x10] sm:$0xff]
    %v5837 = vld [vmem:[#allocation12 + $0x18] sm:$0xff]
    %v5838 = vld [vmem:[#allocation12 + $0x20] sm:$0xff]
    %v5839 = vld [vmem:[#allocation12 + $0x28] sm:$0xff]
    %v5840 = vld [vmem:[#allocation12 + $0x30] sm:$0xff]
    %v5841 = vld [vmem:[#allocation12 + $0x38] sm:$0xff]
    %v5842 = vld [vmem:[#allocation12 + $0x40] sm:$0xff]
    %v5843 = vld [vmem:[#allocation12 + $0x48] sm:$0xff]
    %v5844 = vld [vmem:[#allocation12 + $0x50] sm:$0xff]
    %v5845 = vld [vmem:[#allocation12 + $0x58] sm:$0xff]
    %v5846 = vld [vmem:[#allocation12 + $0x60] sm:$0xff]
    %v5847 = vld [vmem:[#allocation12 + $0x68] sm:$0xff]
    %v5848 = vld [vmem:[#allocation12 + $0x70] sm:$0xff]
    %v5849 = vld [vmem:[#allocation12 + $0x78] sm:$0xff]
    %v5850 = vld [vmem:[#allocation12 + $0x80] sm:$0xff]
    %v5851 = vld [vmem:[#allocation12 + $0x88] sm:$0xff]
    %v5852 = vld [vmem:[#allocation12 + $0x90] sm:$0xff]
    %v5853 = vld [vmem:[#allocation12 + $0x98] sm:$0xff]
    %v5854 = vld [vmem:[#allocation12 + $0xa0] sm:$0xff]
    %v5855 = vld [vmem:[#allocation12 + $0xa8] sm:$0xff]
    %v5856 = vld [vmem:[#allocation12 + $0xb0] sm:$0xff]
    %v5857 = vld [vmem:[#allocation12 + $0xb8] sm:$0xff]
    %v5858 = vld [vmem:[#allocation12 + $0xc0] sm:$0xff]
    %v5859 = vld [vmem:[#allocation12 + $0xc8] sm:$0xff]
    %v5860 = vld [vmem:[#allocation12 + $0xd0] sm:$0xff]
    %v5861 = vld [vmem:[#allocation12 + $0xd8] sm:$0xff]
    %v5862 = vld [vmem:[#allocation12 + $0xe0] sm:$0xff]
    %v5863 = vld [vmem:[#allocation12 + $0xe8] sm:$0xff]
    %v5864 = vld [vmem:[#allocation12 + $0xf0] sm:$0xff]
    %v5865 = vld [vmem:[#allocation12 + $0xf8] sm:$0xff]
    %v5866 = vld [vmem:[#allocation12 + $0x100] sm:$0xff]
    %v5867 = vld [vmem:[#allocation12 + $0x108] sm:$0xff]
    %v5868 = vld [vmem:[#allocation12 + $0x110] sm:$0xff]
    %v5869 = vld [vmem:[#allocation12 + $0x118] sm:$0xff]
    %v5870 = vld [vmem:[#allocation12 + $0x120] sm:$0xff]
    %v5871 = vld [vmem:[#allocation12 + $0x128] sm:$0xff]
    %v5872 = vld [vmem:[#allocation12 + $0x130] sm:$0xff]
    %v5873 = vld [vmem:[#allocation12 + $0x138] sm:$0xff]
    %v5874 = vld [vmem:[#allocation12 + $0x140] sm:$0xff]
    %v5875 = vld [vmem:[#allocation12 + $0x148] sm:$0xff]
    %v5876 = vld [vmem:[#allocation12 + $0x150] sm:$0xff]
    %v5877 = vld [vmem:[#allocation12 + $0x158] sm:$0xff]
    %v5878 = vld [vmem:[#allocation12 + $0x160] sm:$0xff]
    %v5879 = vld [vmem:[#allocation12 + $0x168] sm:$0xff]
    %v5880 = vld [vmem:[#allocation12 + $0x170] sm:$0xff]
    %v5881 = vld [vmem:[#allocation12 + $0x178] sm:$0xff]
    %v5882 = vld [vmem:[#allocation12 + $0x180] sm:$0xff]
    %v5883 = vld [vmem:[#allocation12 + $0x188] sm:$0xff]
    %v5884 = vld [vmem:[#allocation12 + $0x190] sm:$0xff]
    %v5885 = vld [vmem:[#allocation12 + $0x198] sm:$0xff]
    %v5886 = vld [vmem:[#allocation12 + $0x1a0] sm:$0xff]
    %v5887 = vld [vmem:[#allocation12 + $0x1a8] sm:$0xff]
    %v5888 = vld [vmem:[#allocation12 + $0x1b0] sm:$0xff]
    %v5889 = vld [vmem:[#allocation12 + $0x1b8] sm:$0xff]
    %v5890 = vld [vmem:[#allocation12 + $0x1c0] sm:$0xff]
    %v5891 = vld [vmem:[#allocation12 + $0x1c8] sm:$0xff]
    %v5892 = vld [vmem:[#allocation12 + $0x1d0] sm:$0xff]
    %v5893 = vld [vmem:[#allocation12 + $0x1d8] sm:$0xff]
    %v5894 = vld [vmem:[#allocation12 + $0x1e0] sm:$0xff]
    %v5895 = vld [vmem:[#allocation12 + $0x1e8] sm:$0xff]
    %v5896 = vld [vmem:[#allocation12 + $0x1f0] sm:$0xff]
    %v5897 = vld [vmem:[#allocation12 + $0x1f8] sm:$0xff]
    %v5898 = vmul.f32 %v5392, %v5472
    %v5899 = vmul.f32 %v5432, %v5512
    %5900 = vmatpush.msra.mxu0 %v5864
    %5901 = vmatpush.msra.mxu0 %v5862
    %5902 = vmatpush.msra.mxu0 %v5860
    %5903 = vmatpush.msra.mxu0 %v5858
    %5904 = vmatpush.msra.mxu0 %v5856
    %5905 = vmatpush.msra.mxu0 %v5854
    %5906 = vmatpush.msra.mxu0 %v5852
    %5907 = vmatpush.msra.mxu0 %v5850
    %5908 = vmatpush.msra.mxu0 %v5848
    %5909 = vmatpush.msra.mxu0 %v5846
    %5910 = vmatpush.msra.mxu0 %v5844
    %5911 = vmatpush.msra.mxu0 %v5842
    %5912 = vmatpush.msra.mxu0 %v5840
    %5913 = vmatpush.msra.mxu0 %v5838
    %5914 = vmatpush.msra.mxu0 %v5836
    %5915 = vmatpush.msra.mxu0 %v5834
    %5916 = vmatmul.f32.gmra.mxu0 %v5898
    %v5917 = vpop.f32.mrf.mxu0
    %v5918 = vadd.f32 0.0, %v5917
    %5919 = vdwg.mxu0
    %5920 = vmatpush.msra.mxu0 %v5896
    %5921 = vmatpush.msra.mxu0 %v5894
    %5922 = vmatpush.msra.mxu0 %v5892
    %5923 = vmatpush.msra.mxu0 %v5890
    %5924 = vmatpush.msra.mxu0 %v5888
    %5925 = vmatpush.msra.mxu0 %v5886
    %5926 = vmatpush.msra.mxu0 %v5884
    %5927 = vmatpush.msra.mxu0 %v5882
    %5928 = vmatpush.msra.mxu0 %v5880
    %5929 = vmatpush.msra.mxu0 %v5878
    %5930 = vmatpush.msra.mxu0 %v5876
    %5931 = vmatpush.msra.mxu0 %v5874
    %5932 = vmatpush.msra.mxu0 %v5872
    %5933 = vmatpush.msra.mxu0 %v5870
    %5934 = vmatpush.msra.mxu0 %v5868
    %5935 = vmatpush.msra.mxu0 %v5866
    %5936 = vmatmul.f32.gmra.mxu0 %v5899
    %v5937 = vpop.f32.mrf.mxu0
    %v5938 = vadd.f32 %v5918, %v5937
    %5939 = vdwg.mxu0
    %5940 = vmatpush.msra.mxu0 %v5865
    %5941 = vmatpush.msra.mxu0 %v5863
    %5942 = vmatpush.msra.mxu0 %v5861
    %5943 = vmatpush.msra.mxu0 %v5859
    %5944 = vmatpush.msra.mxu0 %v5857
    %5945 = vmatpush.msra.mxu0 %v5855
    %5946 = vmatpush.msra.mxu0 %v5853
    %5947 = vmatpush.msra.mxu0 %v5851
    %5948 = vmatpush.msra.mxu0 %v5849
    %5949 = vmatpush.msra.mxu0 %v5847
    %5950 = vmatpush.msra.mxu0 %v5845
    %5951 = vmatpush.msra.mxu0 %v5843
    %5952 = vmatpush.msra.mxu0 %v5841
    %5953 = vmatpush.msra.mxu0 %v5839
    %5954 = vmatpush.msra.mxu0 %v5837
    %5955 = vmatpush.msra.mxu0 %v5835
    %5956 = vmatmul.f32.gmra.mxu0 %v5898
    %v5957 = vpop.f32.mrf.mxu0
    %v5958 = vadd.f32 0.0, %v5957
    %5959 = vdwg.mxu0
    %5960 = vmatpush.msra.mxu0 %v5897
    %5961 = vmatpush.msra.mxu0 %v5895
    %5962 = vmatpush.msra.mxu0 %v5893
    %5963 = vmatpush.msra.mxu0 %v5891
    %5964 = vmatpush.msra.mxu0 %v5889
    %5965 = vmatpush.msra.mxu0 %v5887
    %5966 = vmatpush.msra.mxu0 %v5885
    %5967 = vmatpush.msra.mxu0 %v5883
    %5968 = vmatpush.msra.mxu0 %v5881
    %5969 = vmatpush.msra.mxu0 %v5879
    %5970 = vmatpush.msra.mxu0 %v5877
    %5971 = vmatpush.msra.mxu0 %v5875
    %5972 = vmatpush.msra.mxu0 %v5873
    %5973 = vmatpush.msra.mxu0 %v5871
    %5974 = vmatpush.msra.mxu0 %v5869
    %5975 = vmatpush.msra.mxu0 %v5867
    %5976 = vmatmul.f32.gmra.mxu0 %v5899
    %v5977 = vpop.f32.mrf.mxu0
    %v5978 = vadd.f32 %v5958, %v5977
    %5979 = vdwg.mxu0
    %v5980 = vmul.f32 %v5392, %v5712
    %v5981 = vmul.f32 %v5432, %v5752
    %5982 = vmatpush.msra.mxu0 %v5864
    %5983 = vmatpush.msra.mxu0 %v5862
    %5984 = vmatpush.msra.mxu0 %v5860
    %5985 = vmatpush.msra.mxu0 %v5858
    %5986 = vmatpush.msra.mxu0 %v5856
    %5987 = vmatpush.msra.mxu0 %v5854
    %5988 = vmatpush.msra.mxu0 %v5852
    %5989 = vmatpush.msra.mxu0 %v5850
    %5990 = vmatpush.msra.mxu0 %v5848
    %5991 = vmatpush.msra.mxu0 %v5846
    %5992 = vmatpush.msra.mxu0 %v5844
    %5993 = vmatpush.msra.mxu0 %v5842
    %5994 = vmatpush.msra.mxu0 %v5840
    %5995 = vmatpush.msra.mxu0 %v5838
    %5996 = vmatpush.msra.mxu0 %v5836
    %5997 = vmatpush.msra.mxu0 %v5834
    %5998 = vmatmul.f32.gmra.mxu0 %v5980
    %v5999 = vpop.f32.mrf.mxu0
    %v6000 = vadd.f32 0.0, %v5999
    %6001 = vdwg.mxu0
    %6002 = vmatpush.msra.mxu0 %v5896
    %6003 = vmatpush.msra.mxu0 %v5894
    %6004 = vmatpush.msra.mxu0 %v5892
    %6005 = vmatpush.msra.mxu0 %v5890
    %6006 = vmatpush.msra.mxu0 %v5888
    %6007 = vmatpush.msra.mxu0 %v5886
    %6008 = vmatpush.msra.mxu0 %v5884
    %6009 = vmatpush.msra.mxu0 %v5882
    %6010 = vmatpush.msra.mxu0 %v5880
    %6011 = vmatpush.msra.mxu0 %v5878
    %6012 = vmatpush.msra.mxu0 %v5876
    %6013 = vmatpush.msra.mxu0 %v5874
    %6014 = vmatpush.msra.mxu0 %v5872
    %6015 = vmatpush.msra.mxu0 %v5870
    %6016 = vmatpush.msra.mxu0 %v5868
    %6017 = vmatpush.msra.mxu0 %v5866
    %6018 = vmatmul.f32.gmra.mxu0 %v5981
    %v6019 = vpop.f32.mrf.mxu0
    %v6020 = vadd.f32 %v6000, %v6019
    %6021 = vdwg.mxu0
    %6022 = vmatpush.msra.mxu0 %v5865
    %6023 = vmatpush.msra.mxu0 %v5863
    %6024 = vmatpush.msra.mxu0 %v5861
    %6025 = vmatpush.msra.mxu0 %v5859
    %6026 = vmatpush.msra.mxu0 %v5857
    %6027 = vmatpush.msra.mxu0 %v5855
    %6028 = vmatpush.msra.mxu0 %v5853
    %6029 = vmatpush.msra.mxu0 %v5851
    %6030 = vmatpush.msra.mxu0 %v5849
    %6031 = vmatpush.msra.mxu0 %v5847
    %6032 = vmatpush.msra.mxu0 %v5845
    %6033 = vmatpush.msra.mxu0 %v5843
    %6034 = vmatpush.msra.mxu0 %v5841
    %6035 = vmatpush.msra.mxu0 %v5839
    %6036 = vmatpush.msra.mxu0 %v5837
    %6037 = vmatpush.msra.mxu0 %v5835
    %6038 = vmatmul.f32.gmra.mxu0 %v5980
    %v6039 = vpop.f32.mrf.mxu0
    %v6040 = vadd.f32 0.0, %v6039
    %6041 = vdwg.mxu0
    %6042 = vmatpush.msra.mxu0 %v5897
    %6043 = vmatpush.msra.mxu0 %v5895
    %6044 = vmatpush.msra.mxu0 %v5893
    %6045 = vmatpush.msra.mxu0 %v5891
    %6046 = vmatpush.msra.mxu0 %v5889
    %6047 = vmatpush.msra.mxu0 %v5887
    %6048 = vmatpush.msra.mxu0 %v5885
    %6049 = vmatpush.msra.mxu0 %v5883
    %6050 = vmatpush.msra.mxu0 %v5881
    %6051 = vmatpush.msra.mxu0 %v5879
    %6052 = vmatpush.msra.mxu0 %v5877
    %6053 = vmatpush.msra.mxu0 %v5875
    %6054 = vmatpush.msra.mxu0 %v5873
    %6055 = vmatpush.msra.mxu0 %v5871
    %6056 = vmatpush.msra.mxu0 %v5869
    %6057 = vmatpush.msra.mxu0 %v5867
    %6058 = vmatmul.f32.gmra.mxu0 %v5981
    %v6059 = vpop.f32.mrf.mxu0
    %v6060 = vadd.f32 %v6040, %v6059
    %6061 = vdwg.mxu0
    %v6062 = vmul.f32 %v5632, %v5472
    %v6063 = vmul.f32 %v5672, %v5512
    %6064 = vmatpush.msra.mxu0 %v5864
    %6065 = vmatpush.msra.mxu0 %v5862
    %6066 = vmatpush.msra.mxu0 %v5860
    %6067 = vmatpush.msra.mxu0 %v5858
    %6068 = vmatpush.msra.mxu0 %v5856
    %6069 = vmatpush.msra.mxu0 %v5854
    %6070 = vmatpush.msra.mxu0 %v5852
    %6071 = vmatpush.msra.mxu0 %v5850
    %6072 = vmatpush.msra.mxu0 %v5848
    %6073 = vmatpush.msra.mxu0 %v5846
    %6074 = vmatpush.msra.mxu0 %v5844
    %6075 = vmatpush.msra.mxu0 %v5842
    %6076 = vmatpush.msra.mxu0 %v5840
    %6077 = vmatpush.msra.mxu0 %v5838
    %6078 = vmatpush.msra.mxu0 %v5836
    %6079 = vmatpush.msra.mxu0 %v5834
    %6080 = vmatmul.f32.gmra.mxu0 %v6062
    %v6081 = vpop.f32.mrf.mxu0
    %v6082 = vadd.f32 0.0, %v6081
    %6083 = vdwg.mxu0
    %6084 = vmatpush.msra.mxu0 %v5896
    %6085 = vmatpush.msra.mxu0 %v5894
    %6086 = vmatpush.msra.mxu0 %v5892
    %6087 = vmatpush.msra.mxu0 %v5890
    %6088 = vmatpush.msra.mxu0 %v5888
    %6089 = vmatpush.msra.mxu0 %v5886
    %6090 = vmatpush.msra.mxu0 %v5884
    %6091 = vmatpush.msra.mxu0 %v5882
    %6092 = vmatpush.msra.mxu0 %v5880
    %6093 = vmatpush.msra.mxu0 %v5878
    %6094 = vmatpush.msra.mxu0 %v5876
    %6095 = vmatpush.msra.mxu0 %v5874
    %6096 = vmatpush.msra.mxu0 %v5872
    %6097 = vmatpush.msra.mxu0 %v5870
    %6098 = vmatpush.msra.mxu0 %v5868
    %6099 = vmatpush.msra.mxu0 %v5866
    %6100 = vmatmul.f32.gmra.mxu0 %v6063
    %v6101 = vpop.f32.mrf.mxu0
    %v6102 = vadd.f32 %v6082, %v6101
    %6103 = vdwg.mxu0
    %6104 = vmatpush.msra.mxu0 %v5865
    %6105 = vmatpush.msra.mxu0 %v5863
    %6106 = vmatpush.msra.mxu0 %v5861
    %6107 = vmatpush.msra.mxu0 %v5859
    %6108 = vmatpush.msra.mxu0 %v5857
    %6109 = vmatpush.msra.mxu0 %v5855
    %6110 = vmatpush.msra.mxu0 %v5853
    %6111 = vmatpush.msra.mxu0 %v5851
    %6112 = vmatpush.msra.mxu0 %v5849
    %6113 = vmatpush.msra.mxu0 %v5847
    %6114 = vmatpush.msra.mxu0 %v5845
    %6115 = vmatpush.msra.mxu0 %v5843
    %6116 = vmatpush.msra.mxu0 %v5841
    %6117 = vmatpush.msra.mxu0 %v5839
    %6118 = vmatpush.msra.mxu0 %v5837
    %6119 = vmatpush.msra.mxu0 %v5835
    %6120 = vmatmul.f32.gmra.mxu0 %v6062
    %v6121 = vpop.f32.mrf.mxu0
    %v6122 = vadd.f32 0.0, %v6121
    %6123 = vdwg.mxu0
    %6124 = vmatpush.msra.mxu0 %v5897
    %6125 = vmatpush.msra.mxu0 %v5895
    %6126 = vmatpush.msra.mxu0 %v5893
    %6127 = vmatpush.msra.mxu0 %v5891
    %6128 = vmatpush.msra.mxu0 %v5889
    %6129 = vmatpush.msra.mxu0 %v5887
    %6130 = vmatpush.msra.mxu0 %v5885
    %6131 = vmatpush.msra.mxu0 %v5883
    %6132 = vmatpush.msra.mxu0 %v5881
    %6133 = vmatpush.msra.mxu0 %v5879
    %6134 = vmatpush.msra.mxu0 %v5877
    %6135 = vmatpush.msra.mxu0 %v5875
    %6136 = vmatpush.msra.mxu0 %v5873
    %6137 = vmatpush.msra.mxu0 %v5871
    %6138 = vmatpush.msra.mxu0 %v5869
    %6139 = vmatpush.msra.mxu0 %v5867
    %6140 = vmatmul.f32.gmra.mxu0 %v6063
    %v6141 = vpop.f32.mrf.mxu0
    %v6142 = vadd.f32 %v6122, %v6141
    %6143 = vdwg.mxu0
    %v6144 = vmul.f32 %v5632, %v5712
    %v6145 = vmul.f32 %v5672, %v5752
    %6146 = vmatpush.msra.mxu0 %v5864
    %6147 = vmatpush.msra.mxu0 %v5862
    %6148 = vmatpush.msra.mxu0 %v5860
    %6149 = vmatpush.msra.mxu0 %v5858
    %6150 = vmatpush.msra.mxu0 %v5856
    %6151 = vmatpush.msra.mxu0 %v5854
    %6152 = vmatpush.msra.mxu0 %v5852
    %6153 = vmatpush.msra.mxu0 %v5850
    %6154 = vmatpush.msra.mxu0 %v5848
    %6155 = vmatpush.msra.mxu0 %v5846
    %6156 = vmatpush.msra.mxu0 %v5844
    %6157 = vmatpush.msra.mxu0 %v5842
    %6158 = vmatpush.msra.mxu0 %v5840
    %6159 = vmatpush.msra.mxu0 %v5838
    %6160 = vmatpush.msra.mxu0 %v5836
    %6161 = vmatpush.msra.mxu0 %v5834
    %6162 = vmatmul.f32.gmra.mxu0 %v6144
    %v6163 = vpop.f32.mrf.mxu0
    %v6164 = vadd.f32 0.0, %v6163
    %6165 = vdwg.mxu0
    %6166 = vmatpush.msra.mxu0 %v5896
    %6167 = vmatpush.msra.mxu0 %v5894
    %6168 = vmatpush.msra.mxu0 %v5892
    %6169 = vmatpush.msra.mxu0 %v5890
    %6170 = vmatpush.msra.mxu0 %v5888
    %6171 = vmatpush.msra.mxu0 %v5886
    %6172 = vmatpush.msra.mxu0 %v5884
    %6173 = vmatpush.msra.mxu0 %v5882
    %6174 = vmatpush.msra.mxu0 %v5880
    %6175 = vmatpush.msra.mxu0 %v5878
    %6176 = vmatpush.msra.mxu0 %v5876
    %6177 = vmatpush.msra.mxu0 %v5874
    %6178 = vmatpush.msra.mxu0 %v5872
    %6179 = vmatpush.msra.mxu0 %v5870
    %6180 = vmatpush.msra.mxu0 %v5868
    %6181 = vmatpush.msra.mxu0 %v5866
    %6182 = vmatmul.f32.gmra.mxu0 %v6145
    %v6183 = vpop.f32.mrf.mxu0
    %v6184 = vadd.f32 %v6164, %v6183
    %6185 = vdwg.mxu0
    %6186 = vmatpush.msra.mxu0 %v5865
    %6187 = vmatpush.msra.mxu0 %v5863
    %6188 = vmatpush.msra.mxu0 %v5861
    %6189 = vmatpush.msra.mxu0 %v5859
    %6190 = vmatpush.msra.mxu0 %v5857
    %6191 = vmatpush.msra.mxu0 %v5855
    %6192 = vmatpush.msra.mxu0 %v5853
    %6193 = vmatpush.msra.mxu0 %v5851
    %6194 = vmatpush.msra.mxu0 %v5849
    %6195 = vmatpush.msra.mxu0 %v5847
    %6196 = vmatpush.msra.mxu0 %v5845
    %6197 = vmatpush.msra.mxu0 %v5843
    %6198 = vmatpush.msra.mxu0 %v5841
    %6199 = vmatpush.msra.mxu0 %v5839
    %6200 = vmatpush.msra.mxu0 %v5837
    %6201 = vmatpush.msra.mxu0 %v5835
    %6202 = vmatmul.f32.gmra.mxu0 %v6144
    %v6203 = vpop.f32.mrf.mxu0
    %v6204 = vadd.f32 0.0, %v6203
    %6205 = vdwg.mxu0
    %6206 = vmatpush.msra.mxu0 %v5897
    %6207 = vmatpush.msra.mxu0 %v5895
    %6208 = vmatpush.msra.mxu0 %v5893
    %6209 = vmatpush.msra.mxu0 %v5891
    %6210 = vmatpush.msra.mxu0 %v5889
    %6211 = vmatpush.msra.mxu0 %v5887
    %6212 = vmatpush.msra.mxu0 %v5885
    %6213 = vmatpush.msra.mxu0 %v5883
    %6214 = vmatpush.msra.mxu0 %v5881
    %6215 = vmatpush.msra.mxu0 %v5879
    %6216 = vmatpush.msra.mxu0 %v5877
    %6217 = vmatpush.msra.mxu0 %v5875
    %6218 = vmatpush.msra.mxu0 %v5873
    %6219 = vmatpush.msra.mxu0 %v5871
    %6220 = vmatpush.msra.mxu0 %v5869
    %6221 = vmatpush.msra.mxu0 %v5867
    %6222 = vmatmul.f32.gmra.mxu0 %v6145
    %v6223 = vpop.f32.mrf.mxu0
    %v6224 = vadd.f32 %v6204, %v6223
    %6225 = vdwg.mxu0
    %v6226 = vmax.f32 %v5938, %v6020
    %v6227 = vmax.f32 %v5978, %v6060
    %v6228 = vsub.f32 %v5938, %v6226
    %v6229 = vsub.f32 %v5978, %v6227
    %v6230 = vmul.f32 %v6228, 1.442695
    %v6231 = vpow.pop %v6230
    %v6232 = vmul.f32 %v6229, 1.442695
    %v6233 = vpow.pop %v6232
    %v6234 = vsub.f32 %v6020, %v6226
    %v6235 = vsub.f32 %v6060, %v6227
    %v6236 = vmul.f32 %v6234, 1.442695
    %v6237 = vpow.pop %v6236
    %v6238 = vmul.f32 %v6235, 1.442695
    %v6239 = vpow.pop %v6238
    %v6240 = vadd.f32 %v6231, %v6237
    %v6241 = vadd.f32 %v6233, %v6239
    %v6242 = vrcp.pop %v6240
    %v6243 = vrcp.pop %v6241
    %v6244 = vmax.f32 %v6102, %v6184
    %v6245 = vmax.f32 %v6142, %v6224
    %v6246 = vsub.f32 %v6102, %v6244
    %v6247 = vsub.f32 %v6142, %v6245
    %v6248 = vmul.f32 %v6246, 1.442695
    %v6249 = vpow.pop %v6248
    %v6250 = vmul.f32 %v6247, 1.442695
    %v6251 = vpow.pop %v6250
    %v6252 = vsub.f32 %v6184, %v6244
    %v6253 = vsub.f32 %v6224, %v6245
    %v6254 = vmul.f32 %v6252, 1.442695
    %v6255 = vpow.pop %v6254
    %v6256 = vmul.f32 %v6253, 1.442695
    %v6257 = vpow.pop %v6256
    %v6258 = vadd.f32 %v6249, %v6255
    %v6259 = vadd.f32 %v6251, %v6257
    %v6260 = vrcp.pop %v6258
    %v6261 = vrcp.pop %v6259
    %v6262 = vmul.f32 %v6231, %v5552
    %v6263 = vmul.f32 %v6233, %v5592
    %v6264 = vmul.f32 %v6237, %v5792
    %v6265 = vmul.f32 %v6239, %v5832
    %v6266 = vadd.f32 %v6262, %v6264
    %v6267 = vadd.f32 %v6263, %v6265
    %v6268 = vmul.f32 %v6266, %v6242
    %v6269 = vmul.f32 %v6267, %v6243
    %v6270 = vmul.f32 %v6249, %v5552
    %v6271 = vmul.f32 %v6251, %v5592
    %v6272 = vmul.f32 %v6255, %v5792
    %v6273 = vmul.f32 %v6257, %v5832
    %v6274 = vadd.f32 %v6270, %v6272
    %v6275 = vadd.f32 %v6271, %v6273
    %v6276 = vmul.f32 %v6274, %v6260
    %v6277 = vmul.f32 %v6275, %v6261
    %v6278 = vld [vmem:[%s7] sm:$0xff]
    %v6279 = vld [vmem:[%s7 + $0x8] sm:$0xff]
    %v6280 = vld [vmem:[%s7 + $0x10] sm:$0xff]
    %v6281 = vld [vmem:[%s7 + $0x18] sm:$0xff]
    %v6282 = vld [vmem:[%s7 + $0x20] sm:$0xff]
    %v6283 = vld [vmem:[%s7 + $0x28] sm:$0xff]
    %v6284 = vld [vmem:[%s7 + $0x30] sm:$0xff]
    %v6285 = vld [vmem:[%s7 + $0x38] sm:$0xff]
    %v6286 = vld [vmem:[%s7 + $0x40] sm:$0xff]
    %v6287 = vld [vmem:[%s7 + $0x48] sm:$0xff]
    %v6288 = vld [vmem:[%s7 + $0x50] sm:$0xff]
    %v6289 = vld [vmem:[%s7 + $0x58] sm:$0xff]
    %v6290 = vld [vmem:[%s7 + $0x60] sm:$0xff]
    %v6291 = vld [vmem:[%s7 + $0x68] sm:$0xff]
    %v6292 = vld [vmem:[%s7 + $0x70] sm:$0xff]
    %v6293 = vld [vmem:[%s7 + $0x78] sm:$0xff]
    %v6294 = vld [vmem:[%s7 + $0x80] sm:$0xff]
    %v6295 = vld [vmem:[%s7 + $0x88] sm:$0xff]
    %v6296 = vld [vmem:[%s7 + $0x90] sm:$0xff]
    %v6297 = vld [vmem:[%s7 + $0x98] sm:$0xff]
    %v6298 = vld [vmem:[%s7 + $0xa0] sm:$0xff]
    %v6299 = vld [vmem:[%s7 + $0xa8] sm:$0xff]
    %v6300 = vld [vmem:[%s7 + $0xb0] sm:$0xff]
    %v6301 = vld [vmem:[%s7 + $0xb8] sm:$0xff]
    %v6302 = vld [vmem:[%s7 + $0xc0] sm:$0xff]
    %v6303 = vld [vmem:[%s7 + $0xc8] sm:$0xff]
    %v6304 = vld [vmem:[%s7 + $0xd0] sm:$0xff]
    %v6305 = vld [vmem:[%s7 + $0xd8] sm:$0xff]
    %v6306 = vld [vmem:[%s7 + $0xe0] sm:$0xff]
    %v6307 = vld [vmem:[%s7 + $0xe8] sm:$0xff]
    %v6308 = vld [vmem:[%s7 + $0xf0] sm:$0xff]
    %v6309 = vld [vmem:[%s7 + $0xf8] sm:$0xff]
    %v6310 = vld [vmem:[%s8] sm:$0xff]
    %v6311 = vld [vmem:[%s8 + $0x8] sm:$0xff]
    %v6312 = vld [vmem:[%s8 + $0x10] sm:$0xff]
    %v6313 = vld [vmem:[%s8 + $0x18] sm:$0xff]
    %v6314 = vld [vmem:[%s8 + $0x20] sm:$0xff]
    %v6315 = vld [vmem:[%s8 + $0x28] sm:$0xff]
    %v6316 = vld [vmem:[%s8 + $0x30] sm:$0xff]
    %v6317 = vld [vmem:[%s8 + $0x38] sm:$0xff]
    %v6318 = vld [vmem:[%s8 + $0x40] sm:$0xff]
    %v6319 = vld [vmem:[%s8 + $0x48] sm:$0xff]
    %v6320 = vld [vmem:[%s8 + $0x50] sm:$0xff]
    %v6321 = vld [vmem:[%s8 + $0x58] sm:$0xff]
    %v6322 = vld [vmem:[%s8 + $0x60] sm:$0xff]
    %v6323 = vld [vmem:[%s8 + $0x68] sm:$0xff]
    %v6324 = vld [vmem:[%s8 + $0x70] sm:$0xff]
    %v6325 = vld [vmem:[%s8 + $0x78] sm:$0xff]
    %v6326 = vld [vmem:[%s8 + $0x80] sm:$0xff]
    %v6327 = vld [vmem:[%s8 + $0x88] sm:$0xff]
    %v6328 = vld [vmem:[%s8 + $0x90] sm:$0xff]
    %v6329 = vld [vmem:[%s8 + $0x98] sm:$0xff]
    %v6330 = vld [vmem:[%s8 + $0xa0] sm:$0xff]
    %v6331 = vld [vmem:[%s8 + $0xa8] sm:$0xff]
    %v6332 = vld [vmem:[%s8 + $0xb0] sm:$0xff]
    %v6333 = vld [vmem:[%s8 + $0xb8] sm:$0xff]
    %v6334 = vld [vmem:[%s8 + $0xc0] sm:$0xff]
    %v6335 = vld [vmem:[%s8 + $0xc8] sm:$0xff]
    %v6336 = vld [vmem:[%s8 + $0xd0] sm:$0xff]
    %v6337 = vld [vmem:[%s8 + $0xd8] sm:$0xff]
    %v6338 = vld [vmem:[%s8 + $0xe0] sm:$0xff]
    %v6339 = vld [vmem:[%s8 + $0xe8] sm:$0xff]
    %v6340 = vld [vmem:[%s8 + $0xf0] sm:$0xff]
    %v6341 = vld [vmem:[%s8 + $0xf8] sm:$0xff]
    %6342 = vmatpush.msra.mxu0 %v6325
    %6343 = vmatpush.msra.mxu0 %v6324
    %6344 = vmatpush.msra.mxu0 %v6323
    %6345 = vmatpush.msra.mxu0 %v6322
    %6346 = vmatpush.msra.mxu0 %v6321
    %6347 = vmatpush.msra.mxu0 %v6320
    %6348 = vmatpush.msra.mxu0 %v6319
    %6349 = vmatpush.msra.mxu0 %v6318
    %6350 = vmatpush.msra.mxu0 %v6317
    %6351 = vmatpush.msra.mxu0 %v6316
    %6352 = vmatpush.msra.mxu0 %v6315
    %6353 = vmatpush.msra.mxu0 %v6314
    %6354 = vmatpush.msra.mxu0 %v6313
    %6355 = vmatpush.msra.mxu0 %v6312
    %6356 = vmatpush.msra.mxu0 %v6311
    %6357 = vmatpush.msra.mxu0 %v6310
    %6358 = vmatmul.f32.gmra.mxu0 %v6276
    %v6359 = vpop.f32.mrf.mxu0
    %v6360 = vadd.f32 0.0, %v6359
    %6361 = vdwg.mxu0
    %6362 = vmatpush.msra.mxu0 %v6341
    %6363 = vmatpush.msra.mxu0 %v6340
    %6364 = vmatpush.msra.mxu0 %v6339
    %6365 = vmatpush.msra.mxu0 %v6338
    %6366 = vmatpush.msra.mxu0 %v6337
    %6367 = vmatpush.msra.mxu0 %v6336
    %6368 = vmatpush.msra.mxu0 %v6335
    %6369 = vmatpush.msra.mxu0 %v6334
    %6370 = vmatpush.msra.mxu0 %v6333
    %6371 = vmatpush.msra.mxu0 %v6332
    %6372 = vmatpush.msra.mxu0 %v6331
    %6373 = vmatpush.msra.mxu0 %v6330
    %6374 = vmatpush.msra.mxu0 %v6329
    %6375 = vmatpush.msra.mxu0 %v6328
    %6376 = vmatpush.msra.mxu0 %v6327
    %6377 = vmatpush.msra.mxu0 %v6326
    %6378 = vmatmul.f32.gmra.mxu0 %v6277
    %v6379 = vpop.f32.mrf.mxu0
    %v6380 = vadd.f32 %v6360, %v6379
    %6381 = vdwg.mxu0
    %6382 = vmatpush.msra.mxu0 %v6293
    %6383 = vmatpush.msra.mxu0 %v6292
    %6384 = vmatpush.msra.mxu0 %v6291
    %6385 = vmatpush.msra.mxu0 %v6290
    %6386 = vmatpush.msra.mxu0 %v6289
    %6387 = vmatpush.msra.mxu0 %v6288
    %6388 = vmatpush.msra.mxu0 %v6287
    %6389 = vmatpush.msra.mxu0 %v6286
    %6390 = vmatpush.msra.mxu0 %v6285
    %6391 = vmatpush.msra.mxu0 %v6284
    %6392 = vmatpush.msra.mxu0 %v6283
    %6393 = vmatpush.msra.mxu0 %v6282
    %6394 = vmatpush.msra.mxu0 %v6281
    %6395 = vmatpush.msra.mxu0 %v6280
    %6396 = vmatpush.msra.mxu0 %v6279
    %6397 = vmatpush.msra.mxu0 %v6278
    %6398 = vmatmul.f32.gmra.mxu0 %v6268
    %v6399 = vpop.f32.mrf.mxu0
    %v6400 = vadd.f32 %v6380, %v6399
    %6401 = vdwg.mxu0
    %6402 = vmatpush.msra.mxu0 %v6309
    %6403 = vmatpush.msra.mxu0 %v6308
    %6404 = vmatpush.msra.mxu0 %v6307
    %6405 = vmatpush.msra.mxu0 %v6306
    %6406 = vmatpush.msra.mxu0 %v6305
    %6407 = vmatpush.msra.mxu0 %v6304
    %6408 = vmatpush.msra.mxu0 %v6303
    %6409 = vmatpush.msra.mxu0 %v6302
    %6410 = vmatpush.msra.mxu0 %v6301
    %6411 = vmatpush.msra.mxu0 %v6300
    %6412 = vmatpush.msra.mxu0 %v6299
    %6413 = vmatpush.msra.mxu0 %v6298
    %6414 = vmatpush.msra.mxu0 %v6297
    %6415 = vmatpush.msra.mxu0 %v6296
    %6416 = vmatpush.msra.mxu0 %v6295
    %6417 = vmatpush.msra.mxu0 %v6294
    %6418 = vmatmul.f32.gmra.mxu0 %v6269
    %v6419 = vpop.f32.mrf.mxu0
    %v6420 = vadd.f32 %v6400, %v6419
    %6421 = vdwg.mxu0
    %v6422 = vld [vmem:[#allocation13] sm:$0x1]
    %v6424 = vperm.slane %v6422, 0
    %v6426 = vadd.f32 %v6420, %v6424
    %vm6427 = vcmask 15360
    %6428 = vst.msk [vmem:[%s10] sm:$0xff] %vm6427, %v6426
    // Predicated region
    $region74: #{tpu_custom_call.1} parent=1 // pred_check
      _
    $region75: #{tpu_custom_call.1} parent=1 // pred_check_branch
      %6430 = sbr.rel (0) target = $region77
    $region76: #{tpu_custom_call.1} parent=1 // pred_region
      _
    $region77: #{tpu_custom_call.1} parent=1 // pred_fallthru
      _
    // Predicated region
    $region78: #{tpu_custom_call.1} parent=1 // pred_check
      _
    $region79: #{tpu_custom_call.1} parent=1 // pred_check_branch
      %6432 = sbr.rel (0) target = $region81
    $region80: #{tpu_custom_call.1} parent=1 // pred_region
      _
    $region81: #{tpu_custom_call.1} parent=1 // pred_fallthru
      _
    %6433 = vsyncpa [#allocation3], 1
    %6434 = vsyncpa [#allocation5], 1
    %6435 = vsyncpa [#allocation8], 1
    %6436 = vsyncpa [#allocation11], 1
    %6437 = vsyncpa [#allocation14], 1

</llo_original>
